<compile_context>
chip_gen: v7x
topology: tpu7x:2x2x1
jax: 0.10.0
libtpu: 0.0.40
codegen_flags: <defaults>
</compile_context>

<pallas_src>
import jax
import jax.numpy as jnp
from jax.experimental import pallas as pl
from jax.experimental.pallas import tpu as pltpu

LATENT_DIM = 100
H1, H2, H3 = 256, 512, 1024
OUT_DIM = 28 * 28  # 784


def _generator_kernel(z_ref, w1_ref, b1_ref,
                      w2_hbm, s2_ref, b2_ref,
                      w3_hbm, s3_ref, b3_ref,
                      w4_hbm, s4_ref, b4_ref,
                      out_ref,
                      w2_buf, w3_buf, w4_buf, sem):
    """Fused 4-layer MLP: (Linear+ReLU) x3 -> Linear -> Tanh.

    w2/w3/w4 are int8-per-channel in HBM and streamed with manual async DMAs;
    each layer waits only on its own weights.  Matmuls run bf16 x bf16 on the
    MXU with f32 accumulation; the per-output-channel dequant scale is folded
    into the (B, N) epilogue together with the bias.
    """
    cp2 = pltpu.make_async_copy(w2_hbm, w2_buf, sem.at[0])
    cp3 = pltpu.make_async_copy(w3_hbm, w3_buf, sem.at[1])
    cp4 = pltpu.make_async_copy(w4_hbm, w4_buf, sem.at[2])
    cp2.start()
    cp3.start()
    # cp4 (the biggest transfer) is started after cp2 lands so the earlier
    # layers' weights are not bandwidth-starved 3 ways.

    # Layer 1: (B, 100) @ (100, 256) + ReLU   (w1/b1 already resident in VMEM)
    h = jnp.dot(z_ref[...].astype(jnp.bfloat16), w1_ref[...],
                preferred_element_type=jnp.float32) + b1_ref[...]
    h = jnp.maximum(h, 0.0)

    # Layer 2: (B, 256) @ (256, 512) * s2 + b2, ReLU
    cp2.wait()
    cp4.start()
    w2 = w2_buf[...].astype(jnp.bfloat16)          # int8 -> bf16 is exact
    h = jnp.dot(h.astype(jnp.bfloat16), w2,
                preferred_element_type=jnp.float32) * s2_ref[...] + b2_ref[...]
    h = jnp.maximum(h, 0.0)

    # Layer 3: (B, 512) @ (512, 1024) * s3 + b3, ReLU
    cp3.wait()
    w3 = w3_buf[...].astype(jnp.bfloat16)
    h = jnp.dot(h.astype(jnp.bfloat16), w3,
                preferred_element_type=jnp.float32) * s3_ref[...] + b3_ref[...]
    h = jnp.maximum(h, 0.0)

    # Layer 4: (B, 1024) @ (1024, 784) * s4 + b4, Tanh
    cp4.wait()
    w4 = w4_buf[...].astype(jnp.bfloat16)
    h = jnp.dot(h.astype(jnp.bfloat16), w4,
                preferred_element_type=jnp.float32) * s4_ref[...] + b4_ref[...]
    out_ref[...] = jnp.tanh(h).astype(out_ref.dtype)


def generator_forward(z, params):
    """z: (B, LATENT_DIM) f32 -> (B, 1, 28, 28) f32 (NCHW, matching PyTorch)."""
    (w1, b1), (w2q, s2, b2), (w3q, s3, b3), (w4q, s4, b4) = params
    B = z.shape[0]

    vmem = pl.BlockSpec(memory_space=pltpu.MemorySpace.VMEM)
    hbm = pl.BlockSpec(memory_space=pl.ANY)

    w_elems = LATENT_DIM * H1 + H1 * H2 + H2 * H3 + H3 * OUT_DIM
    q_elems = H1 * H2 + H2 * H3 + H3 * OUT_DIM
    cost = pl.CostEstimate(
        flops=2 * B * w_elems,
        transcendentals=B * OUT_DIM,
        bytes_accessed=(LATENT_DIM * H1 * 2        # bf16 w1
                        + q_elems * 1              # int8 w2/w3/w4
                        + H1 * 4                   # f32 b1
                        + (H2 + H3 + OUT_DIM) * 8  # f32 scales + biases
                        + B * LATENT_DIM * 4       # z in
                        + B * OUT_DIM * 4),        # f32 out
    )

    flat = pl.pallas_call(
        _generator_kernel,
        out_shape=jax.ShapeDtypeStruct((B, OUT_DIM), jnp.float32),
        in_specs=[vmem, vmem, vmem,    # z, w1, b1
                  hbm, vmem, vmem,     # w2q (HBM), s2, b2
                  hbm, vmem, vmem,     # w3q (HBM), s3, b3
                  hbm, vmem, vmem],    # w4q (HBM), s4, b4
        out_specs=vmem,
        scratch_shapes=[
            pltpu.VMEM((H1, H2), jnp.int8),       # w2 staging
            pltpu.VMEM((H2, H3), jnp.int8),       # w3 staging
            pltpu.VMEM((H3, OUT_DIM), jnp.int8),  # w4 staging
            pltpu.SemaphoreType.DMA((3,)),
        ],
        compiler_params=pltpu.CompilerParams(vmem_limit_bytes=32 << 20),
        cost_estimate=cost,
    )(z, w1, b1, w2q, s2, b2, w3q, s3, b3, w4q, s4, b4)

    # .view(-1, 1, 28, 28) equivalent — pure reshape glue outside the kernel.
    return flat.reshape(B, 1, 28, 28)


def _quantize_per_out_channel(w):
    """Symmetric int8 per-output-channel quantization of a (K, N) weight."""
    absmax = jnp.max(jnp.abs(w), axis=0, keepdims=True)            # (1, N)
    scale = jnp.maximum(absmax, 1e-8) / 127.0
    wq = jnp.clip(jnp.round(w / scale), -127.0, 127.0).astype(jnp.int8)
    return wq, scale.astype(jnp.float32)


def init_params(key):
    """Deterministic init mimicking PyTorch nn.Linear default
    (U[-1/sqrt(fan_in), +1/sqrt(fan_in)]).

    Weights are stored transposed relative to PyTorch ((in, out) instead of
    (out, in)) so the kernel computes x @ W directly.  w1 is kept bf16 (it is
    ~50 KiB, negligible); w2/w3/w4 are quantized to int8 with per-output-
    channel f32 scales to halve the dominant HBM weight stream.
    """
    dims = [(LATENT_DIM, H1), (H1, H2), (H2, H3), (H3, OUT_DIM)]
    params = []
    for layer, (fan_in, fan_out) in enumerate(dims):
        key, kw, kb = jax.random.split(key, 3)
        bound = 1.0 / jnp.sqrt(jnp.float32(fan_in))
        w = jax.random.uniform(kw, (fan_in, fan_out), jnp.float32, -bound, bound)
        b = jax.random.uniform(kb, (1, fan_out), jnp.float32, -bound, bound)
        if layer == 0:
            params.append((w.astype(jnp.bfloat16), b))
        else:
            wq, s = _quantize_per_out_channel(w)
            params.append((wq, s, b))
    return params


def _reference_forward(z, params):
    """Plain-JAX reference mirroring the kernel's math exactly
    (bf16 activations, int8-per-channel weights, f32 accumulation)."""
    (w1, b1), (w2q, s2, b2), (w3q, s3, b3), (w4q, s4, b4) = params
    h = jnp.dot(z.astype(jnp.bfloat16), w1,
                preferred_element_type=jnp.float32) + b1
    h = jnp.maximum(h, 0.0)
    for wq, s, b in ((w2q, s2, b2), (w3q, s3, b3)):
        h = jnp.dot(h.astype(jnp.bfloat16), wq.astype(jnp.bfloat16),
                    preferred_element_type=jnp.float32) * s + b
        h = jnp.maximum(h, 0.0)
    h = jnp.dot(h.astype(jnp.bfloat16), w4q.astype(jnp.bfloat16),
                preferred_element_type=jnp.float32) * s4 + b4
    return jnp.tanh(h).reshape(-1, 1, 28, 28)


if __name__ == "__main__":
    key = jax.random.PRNGKey(0)
    kp, kz = jax.random.split(key)

    params = init_params(kp)
    batch = 16  # matches z = torch.randn(16, latent_dim)
    z = jax.random.normal(kz, (batch, LATENT_DIM), dtype=jnp.float32)

    out = generator_forward(z, params)
    jax.block_until_ready(out)

    assert out.shape == (batch, 1, 28, 28), out.shape
    ref = _reference_forward(z, params)
    # Reference mirrors the kernel's bf16/int8 math; only matmul
    # summation-order differences remain (both sides accumulate in f32).
    assert jnp.allclose(out, ref, atol=1e-3, rtol=1e-3), float(
        jnp.max(jnp.abs(out - ref)))

    print("KERNEL_OK")
</pallas_src>

<mosaic_0001>
module attributes {stable_mosaic.version = 11 : i64} {
  func.func @_generator_kernel(%arg0: memref<16x100xf32, #tpu.memory_space<vmem>>, %arg1: memref<100x256xbf16, #tpu.memory_space<vmem>>, %arg2: memref<1x256xf32, #tpu.memory_space<vmem>>, %arg3: memref<256x512xi8, #tpu.memory_space<any>>, %arg4: memref<1x512xf32, #tpu.memory_space<vmem>>, %arg5: memref<1x512xf32, #tpu.memory_space<vmem>>, %arg6: memref<512x1024xi8, #tpu.memory_space<any>>, %arg7: memref<1x1024xf32, #tpu.memory_space<vmem>>, %arg8: memref<1x1024xf32, #tpu.memory_space<vmem>>, %arg9: memref<1024x784xi8, #tpu.memory_space<any>>, %arg10: memref<1x784xf32, #tpu.memory_space<vmem>>, %arg11: memref<1x784xf32, #tpu.memory_space<vmem>>, %arg12: memref<16x784xf32, #tpu.memory_space<vmem>>, %arg13: memref<256x512xi8, #tpu.memory_space<vmem>>, %arg14: memref<512x1024xi8, #tpu.memory_space<vmem>>, %arg15: memref<1024x784xi8, #tpu.memory_space<vmem>>, %arg16: memref<3x!tpu.dma_semaphore, #tpu.memory_space<semaphore_mem>>) attributes {dimension_semantics = [], scalar_prefetch = 0 : i64, scratch_operands = 4 : i64, tpu.core_type = #tpu.core_type<tc>} {
    %c0_i32 = arith.constant 0 : i32
    %0 = tpu.memref_slice %arg16[%c0_i32] : memref<3x!tpu.dma_semaphore, #tpu.memory_space<semaphore_mem>> -> memref<1x!tpu.dma_semaphore, #tpu.memory_space<semaphore_mem>>
    %1 = tpu.memref_squeeze %0 : memref<1x!tpu.dma_semaphore, #tpu.memory_space<semaphore_mem>> -> memref<!tpu.dma_semaphore, #tpu.memory_space<semaphore_mem>>
    tpu.enqueue_dma source(%arg3 : memref<256x512xi8, #tpu.memory_space<any>>) target(%arg13 : memref<256x512xi8, #tpu.memory_space<vmem>>) target_semaphore(%1 : memref<!tpu.dma_semaphore, #tpu.memory_space<semaphore_mem>>)
    %c1_i32 = arith.constant 1 : i32
    %2 = tpu.memref_slice %arg16[%c1_i32] : memref<3x!tpu.dma_semaphore, #tpu.memory_space<semaphore_mem>> -> memref<1x!tpu.dma_semaphore, #tpu.memory_space<semaphore_mem>>
    %3 = tpu.memref_squeeze %2 : memref<1x!tpu.dma_semaphore, #tpu.memory_space<semaphore_mem>> -> memref<!tpu.dma_semaphore, #tpu.memory_space<semaphore_mem>>
    tpu.enqueue_dma source(%arg6 : memref<512x1024xi8, #tpu.memory_space<any>>) target(%arg14 : memref<512x1024xi8, #tpu.memory_space<vmem>>) target_semaphore(%3 : memref<!tpu.dma_semaphore, #tpu.memory_space<semaphore_mem>>)
    %c0 = arith.constant 0 : index
    %c0_0 = arith.constant 0 : index
    %4 = vector.load %arg0[%c0, %c0_0] : memref<16x100xf32, #tpu.memory_space<vmem>>, vector<16x100xf32>
    %5 = arith.truncf %4 : vector<16x100xf32> to vector<16x100xbf16>
    %c0_1 = arith.constant 0 : index
    %c0_2 = arith.constant 0 : index
    %6 = vector.load %arg1[%c0_1, %c0_2] : memref<100x256xbf16, #tpu.memory_space<vmem>>, vector<100x256xbf16>
    %cst = arith.constant dense<0.000000e+00> : vector<16x256xf32>
    %7 = tpu.matmul %5, %6, %cst {dimension_numbers = #tpu.dot_dimension_numbers<[1], [0], [0], [1], [0, 0, 1, 1], [], []>} : vector<16x100xbf16>, vector<100x256xbf16>, vector<16x256xf32> -> vector<16x256xf32>
    %c0_3 = arith.constant 0 : index
    %c0_4 = arith.constant 0 : index
    %8 = vector.load %arg2[%c0_3, %c0_4] : memref<1x256xf32, #tpu.memory_space<vmem>>, vector<1x256xf32>
    %9 = vector.broadcast %8 : vector<1x256xf32> to vector<16x256xf32>
    %10 = arith.addf %7, %9 : vector<16x256xf32>
    %cst_5 = arith.constant 0.000000e+00 : f32
    %11 = vector.broadcast %cst_5 : f32 to vector<16x256xf32>
    %12 = arith.maximumf %10, %11 : vector<16x256xf32>
    %c0_i32_6 = arith.constant 0 : i32
    %13 = tpu.memref_slice %arg16[%c0_i32_6] : memref<3x!tpu.dma_semaphore, #tpu.memory_space<semaphore_mem>> -> memref<1x!tpu.dma_semaphore, #tpu.memory_space<semaphore_mem>>
    %14 = tpu.memref_squeeze %13 : memref<1x!tpu.dma_semaphore, #tpu.memory_space<semaphore_mem>> -> memref<!tpu.dma_semaphore, #tpu.memory_space<semaphore_mem>>
    tpu.wait_dma2 semaphore(%14 : memref<!tpu.dma_semaphore, #tpu.memory_space<semaphore_mem>>) src(%arg3 : memref<256x512xi8, #tpu.memory_space<any>>) dst(%arg13 : memref<256x512xi8, #tpu.memory_space<vmem>>)
    %c2_i32 = arith.constant 2 : i32
    %15 = tpu.memref_slice %arg16[%c2_i32] : memref<3x!tpu.dma_semaphore, #tpu.memory_space<semaphore_mem>> -> memref<1x!tpu.dma_semaphore, #tpu.memory_space<semaphore_mem>>
    %16 = tpu.memref_squeeze %15 : memref<1x!tpu.dma_semaphore, #tpu.memory_space<semaphore_mem>> -> memref<!tpu.dma_semaphore, #tpu.memory_space<semaphore_mem>>
    tpu.enqueue_dma source(%arg9 : memref<1024x784xi8, #tpu.memory_space<any>>) target(%arg15 : memref<1024x784xi8, #tpu.memory_space<vmem>>) target_semaphore(%16 : memref<!tpu.dma_semaphore, #tpu.memory_space<semaphore_mem>>)
    %c0_7 = arith.constant 0 : index
    %c0_8 = arith.constant 0 : index
    %17 = vector.load %arg13[%c0_7, %c0_8] : memref<256x512xi8, #tpu.memory_space<vmem>>, vector<256x512xi8>
    %18 = arith.sitofp %17 : vector<256x512xi8> to vector<256x512xbf16>
    %19 = arith.truncf %12 : vector<16x256xf32> to vector<16x256xbf16>
    %cst_9 = arith.constant dense<0.000000e+00> : vector<16x512xf32>
    %20 = tpu.matmul %19, %18, %cst_9 {dimension_numbers = #tpu.dot_dimension_numbers<[1], [0], [0], [1], [0, 0, 1, 1], [], []>} : vector<16x256xbf16>, vector<256x512xbf16>, vector<16x512xf32> -> vector<16x512xf32>
    %c0_10 = arith.constant 0 : index
    %c0_11 = arith.constant 0 : index
    %21 = vector.load %arg4[%c0_10, %c0_11] : memref<1x512xf32, #tpu.memory_space<vmem>>, vector<1x512xf32>
    %22 = vector.broadcast %21 : vector<1x512xf32> to vector<16x512xf32>
    %23 = arith.mulf %20, %22 : vector<16x512xf32>
    %c0_12 = arith.constant 0 : index
    %c0_13 = arith.constant 0 : index
    %24 = vector.load %arg5[%c0_12, %c0_13] : memref<1x512xf32, #tpu.memory_space<vmem>>, vector<1x512xf32>
    %25 = vector.broadcast %24 : vector<1x512xf32> to vector<16x512xf32>
    %26 = arith.addf %23, %25 : vector<16x512xf32>
    %cst_14 = arith.constant 0.000000e+00 : f32
    %27 = vector.broadcast %cst_14 : f32 to vector<16x512xf32>
    %28 = arith.maximumf %26, %27 : vector<16x512xf32>
    %c1_i32_15 = arith.constant 1 : i32
    %29 = tpu.memref_slice %arg16[%c1_i32_15] : memref<3x!tpu.dma_semaphore, #tpu.memory_space<semaphore_mem>> -> memref<1x!tpu.dma_semaphore, #tpu.memory_space<semaphore_mem>>
    %30 = tpu.memref_squeeze %29 : memref<1x!tpu.dma_semaphore, #tpu.memory_space<semaphore_mem>> -> memref<!tpu.dma_semaphore, #tpu.memory_space<semaphore_mem>>
    tpu.wait_dma2 semaphore(%30 : memref<!tpu.dma_semaphore, #tpu.memory_space<semaphore_mem>>) src(%arg6 : memref<512x1024xi8, #tpu.memory_space<any>>) dst(%arg14 : memref<512x1024xi8, #tpu.memory_space<vmem>>)
    %c0_16 = arith.constant 0 : index
    %c0_17 = arith.constant 0 : index
    %31 = vector.load %arg14[%c0_16, %c0_17] : memref<512x1024xi8, #tpu.memory_space<vmem>>, vector<512x1024xi8>
    %32 = arith.sitofp %31 : vector<512x1024xi8> to vector<512x1024xbf16>
    %33 = arith.truncf %28 : vector<16x512xf32> to vector<16x512xbf16>
    %cst_18 = arith.constant dense<0.000000e+00> : vector<16x1024xf32>
    %34 = tpu.matmul %33, %32, %cst_18 {dimension_numbers = #tpu.dot_dimension_numbers<[1], [0], [0], [1], [0, 0, 1, 1], [], []>} : vector<16x512xbf16>, vector<512x1024xbf16>, vector<16x1024xf32> -> vector<16x1024xf32>
    %c0_19 = arith.constant 0 : index
    %c0_20 = arith.constant 0 : index
    %35 = vector.load %arg7[%c0_19, %c0_20] : memref<1x1024xf32, #tpu.memory_space<vmem>>, vector<1x1024xf32>
    %36 = vector.broadcast %35 : vector<1x1024xf32> to vector<16x1024xf32>
    %37 = arith.mulf %34, %36 : vector<16x1024xf32>
    %c0_21 = arith.constant 0 : index
    %c0_22 = arith.constant 0 : index
    %38 = vector.load %arg8[%c0_21, %c0_22] : memref<1x1024xf32, #tpu.memory_space<vmem>>, vector<1x1024xf32>
    %39 = vector.broadcast %38 : vector<1x1024xf32> to vector<16x1024xf32>
    %40 = arith.addf %37, %39 : vector<16x1024xf32>
    %cst_23 = arith.constant 0.000000e+00 : f32
    %41 = vector.broadcast %cst_23 : f32 to vector<16x1024xf32>
    %42 = arith.maximumf %40, %41 : vector<16x1024xf32>
    %c2_i32_24 = arith.constant 2 : i32
    %43 = tpu.memref_slice %arg16[%c2_i32_24] : memref<3x!tpu.dma_semaphore, #tpu.memory_space<semaphore_mem>> -> memref<1x!tpu.dma_semaphore, #tpu.memory_space<semaphore_mem>>
    %44 = tpu.memref_squeeze %43 : memref<1x!tpu.dma_semaphore, #tpu.memory_space<semaphore_mem>> -> memref<!tpu.dma_semaphore, #tpu.memory_space<semaphore_mem>>
    tpu.wait_dma2 semaphore(%44 : memref<!tpu.dma_semaphore, #tpu.memory_space<semaphore_mem>>) src(%arg9 : memref<1024x784xi8, #tpu.memory_space<any>>) dst(%arg15 : memref<1024x784xi8, #tpu.memory_space<vmem>>)
    %c0_25 = arith.constant 0 : index
    %c0_26 = arith.constant 0 : index
    %45 = vector.load %arg15[%c0_25, %c0_26] : memref<1024x784xi8, #tpu.memory_space<vmem>>, vector<1024x784xi8>
    %46 = arith.sitofp %45 : vector<1024x784xi8> to vector<1024x784xbf16>
    %47 = arith.truncf %42 : vector<16x1024xf32> to vector<16x1024xbf16>
    %cst_27 = arith.constant dense<0.000000e+00> : vector<16x784xf32>
    %48 = tpu.matmul %47, %46, %cst_27 {dimension_numbers = #tpu.dot_dimension_numbers<[1], [0], [0], [1], [0, 0, 1, 1], [], []>} : vector<16x1024xbf16>, vector<1024x784xbf16>, vector<16x784xf32> -> vector<16x784xf32>
    %c0_28 = arith.constant 0 : index
    %c0_29 = arith.constant 0 : index
    %49 = vector.load %arg10[%c0_28, %c0_29] : memref<1x784xf32, #tpu.memory_space<vmem>>, vector<1x784xf32>
    %50 = vector.broadcast %49 : vector<1x784xf32> to vector<16x784xf32>
    %51 = arith.mulf %48, %50 : vector<16x784xf32>
    %c0_30 = arith.constant 0 : index
    %c0_31 = arith.constant 0 : index
    %52 = vector.load %arg11[%c0_30, %c0_31] : memref<1x784xf32, #tpu.memory_space<vmem>>, vector<1x784xf32>
    %53 = vector.broadcast %52 : vector<1x784xf32> to vector<16x784xf32>
    %54 = arith.addf %51, %53 : vector<16x784xf32>
    %55 = math.tanh %54 : vector<16x784xf32>
    %c0_32 = arith.constant 0 : index
    %c0_33 = arith.constant 0 : index
    %56 = vector.load %arg12[%c0_32, %c0_33] : memref<16x784xf32, #tpu.memory_space<vmem>>, vector<16x784xf32>
    tpu.vector_store %arg12[%c0_32, %c0_33], %55 {strides = array<i32>} : memref<16x784xf32, #tpu.memory_space<vmem>>, vector<16x784xf32>,
    return
  }
}

</mosaic_0001>

<llo_original>
// kernel: tpu_custom_call.1
$region0: #{tpu_custom_call.1}
  #allocation0 [shape = 'u32[]', space=smem, size = 0x4, offset = 0x4, fixed_abs, tag = 'smem constant byte address 0x4 - core index']
  #allocation1 [shape = 'u32[144,128]{1,0:T(1,128)}', space=vmem, size = 0x12000, scoped, tag = 'internal scratch']
  #allocation2 [shape = 's8[256,512]{1,0:T(32,128)(4,1)}', space=vmem, size = 0x20000, scoped, tag = 'scratch operand']
  #allocation3 [shape = 's8[512,1024]{1,0:T(32,128)(4,1)}', space=vmem, size = 0x80000, scoped, tag = 'scratch operand']
  #allocation4 [shape = 's8[1024,784]{1,0:T(32,128)(4,1)}', space=vmem, size = 0xe0000, scoped, tag = 'scratch operand']
  #allocation5 [shape = 's32[3]{0}', space=sflag, size = 0xc, scoped, tag = 'scratch operand']
  #allocation8 [shape = 's32[]', space=sflag, size = 0x4, offset = 0, fixed_abs, tag = 'sflag constant byte address 0x0 - dummy sync flag']
  #allocation9 [shape = 's32[]', space=sflag, size = 0x4, offset = 0, fixed_abs, tag = 'sflag constant byte address 0x0 - dummy sync flag']
  #allocation10 [shape = 's32[]', space=sflag, size = 0x4, offset = 0, fixed_abs, tag = 'sflag constant byte address 0x0 - dummy sync flag']
  %s0 = inlined_call_operand.vmem [shape: f32[16,100], index: 0, kind: input, shape index: {}]
  %s1 = inlined_call_operand.vmem [shape: bf16[100,256], index: 1, kind: input, shape index: {}]
  %s2 = inlined_call_operand.vmem [shape: f32[1,256], index: 2, kind: input, shape index: {}]
  %s3 = inlined_call_operand.vmem [shape: s8[256,512], index: 3, kind: input, shape index: {}]
  %s4 = inlined_call_operand.vmem [shape: f32[1,512], index: 4, kind: input, shape index: {}]
  %s5 = inlined_call_operand.vmem [shape: f32[1,512], index: 5, kind: input, shape index: {}]
  %s6 = inlined_call_operand.vmem [shape: s8[512,1024], index: 6, kind: input, shape index: {}]
  %s7 = inlined_call_operand.vmem [shape: f32[1,1024], index: 7, kind: input, shape index: {}]
  %s8 = inlined_call_operand.vmem [shape: f32[1,1024], index: 8, kind: input, shape index: {}]
  %s9 = inlined_call_operand.vmem [shape: s8[1024,784], index: 9, kind: input, shape index: {}]
  %s10 = inlined_call_operand.vmem [shape: f32[1,784], index: 10, kind: input, shape index: {}]
  %s11 = inlined_call_operand.vmem [shape: f32[1,784], index: 11, kind: input, shape index: {}]
  %s12 = inlined_call_operand.hbm [shape: f32[16,784], index: 12, kind: output, shape index: {}]
  %s13 = sld [smem:[#allocation0]]
  $region148: #{tpu_custom_call.1} parent=0
    _
  %s15 = ssub.s32 1, %s13
  %s16 = scalar_select 0, %s15, %s13
  $region1: #{tpu_custom_call.1} parent=0
    #allocation6 [shape = 'u8[57344]{0}', space=vmem, size = 0xe000, scoped, tag = 'output window, operand 0, single buffered']
    #allocation7 [shape = 's32[1]{0}', space=sflag, size = 0x4, scoped, tag = 'scoped memory for tpu_custom_call.1']
    %17 = vsyncpa [#allocation7], 0
    // Predicated region
    $region2: #{tpu_custom_call.1} parent=1 // pred_check
      _
    $region3: #{tpu_custom_call.1} parent=1 // pred_check_branch
      %19 = sbr.rel (0) target = $region5
    $region4: #{tpu_custom_call.1} parent=1 // pred_region
      _
    $region5: #{tpu_custom_call.1} parent=1 // pred_fallthru
      _
    // Predicated region
    $region6: #{tpu_custom_call.1} parent=1 // pred_check
      _
    $region7: #{tpu_custom_call.1} parent=1 // pred_check_branch
      %21 = sbr.rel (0) target = $region9
    $region8: #{tpu_custom_call.1} parent=1 // pred_region
      _
    $region9: #{tpu_custom_call.1} parent=1 // pred_fallthru
      _
    // Predicated region
    $region10: #{tpu_custom_call.1} parent=1 // pred_check
      _
    $region11: #{tpu_custom_call.1} parent=1 // pred_check_branch
      %23 = sbr.rel (0) target = $region13
    $region12: #{tpu_custom_call.1} parent=1 // pred_region
      _
    $region13: #{tpu_custom_call.1} parent=1 // pred_fallthru
      _
    // Predicated region
    $region14: #{tpu_custom_call.1} parent=1 // pred_check
      _
    $region15: #{tpu_custom_call.1} parent=1 // pred_check_branch
      %25 = sbr.rel (0) target = $region17
    $region16: #{tpu_custom_call.1} parent=1 // pred_region
      _
    $region17: #{tpu_custom_call.1} parent=1 // pred_fallthru
      _
    // Predicated region
    $region18: #{tpu_custom_call.1} parent=1 // pred_check
      _
    $region19: #{tpu_custom_call.1} parent=1 // pred_check_branch
      %27 = sbr.rel (0) target = $region21
    $region20: #{tpu_custom_call.1} parent=1 // pred_region
      _
    $region21: #{tpu_custom_call.1} parent=1 // pred_fallthru
      _
    // Predicated region
    $region22: #{tpu_custom_call.1} parent=1 // pred_check
      _
    $region23: #{tpu_custom_call.1} parent=1 // pred_check_branch
      %29 = sbr.rel (0) target = $region25
    $region24: #{tpu_custom_call.1} parent=1 // pred_region
      _
    $region25: #{tpu_custom_call.1} parent=1 // pred_fallthru
      _
    // Predicated region
    $region26: #{tpu_custom_call.1} parent=1 // pred_check
      _
    $region27: #{tpu_custom_call.1} parent=1 // pred_check_branch
      %31 = sbr.rel (0) target = $region29
    $region28: #{tpu_custom_call.1} parent=1 // pred_region
      _
    $region29: #{tpu_custom_call.1} parent=1 // pred_fallthru
      _
    // Predicated region
    $region30: #{tpu_custom_call.1} parent=1 // pred_check
      _
    $region31: #{tpu_custom_call.1} parent=1 // pred_check_branch
      %33 = sbr.rel (0) target = $region33
    $region32: #{tpu_custom_call.1} parent=1 // pred_region
      _
    $region33: #{tpu_custom_call.1} parent=1 // pred_fallthru
      _
    // Predicated region
    $region34: #{tpu_custom_call.1} parent=1 // pred_check
      _
    $region35: #{tpu_custom_call.1} parent=1 // pred_check_branch
      %35 = sbr.rel (0) target = $region37
    $region36: #{tpu_custom_call.1} parent=1 // pred_region
      _
    $region37: #{tpu_custom_call.1} parent=1 // pred_fallthru
      _
    %p38 = scmp.lt.u32.totalorder 256, 8
    %p39 = pneg %p38
    // Predicated region
    $region38: #{tpu_custom_call.1} parent=1 // pred_check
      _
    $region39: #{tpu_custom_call.1} parent=1 // pred_check_branch
      %41 = sbr.rel (%p38) target = $region41
    $region40: #{tpu_custom_call.1} parent=1 // pred_region
      %s56 = sand.u32 256, 7
      %p57 = scmp.eq.s32.totalorder %s56, 0
      // Predicated region
      $region53: #{tpu_custom_call.1} parent=40 // pred_check
        %p58 = pneg %p57
      $region54: #{tpu_custom_call.1} parent=40 // pred_check_branch
        %60 = sbr.rel (%p58) target = $region56
      $region55: #{tpu_custom_call.1} parent=40 // pred_region
        loop: start=0, step=1, limit=1
        $region57: #{tpu_custom_call.1} parent=55 // loop_pre_header
          _
        $region58: #{tpu_custom_call.1} parent=55 // loop_header
          %s62 = sphi 0, %s66
          %p63 = scmp.ge.s32.totalorder %s62, 1
          %s67 = sphi %s3, %s3
          %s68 = sphi [#allocation2], [#allocation2]
        $region59: #{tpu_custom_call.1} parent=55 // loop_header_branch
          %65 = sbr.rel (%p63) target = $region63
        $region60: #{tpu_custom_call.1} parent=55 // loop_body
          %v69 = vld [vmem:[%s67] sm:$0xff]
          %70 = vst [vmem:[%s68] sm:$0xff] %v69
          %v71 = vld [vmem:[%s67 + $0x8] sm:$0xff]
          %72 = vst [vmem:[%s68 + $0x8] sm:$0xff] %v71
          %v73 = vld [vmem:[%s67 + $0x10] sm:$0xff]
          %74 = vst [vmem:[%s68 + $0x10] sm:$0xff] %v73
          %v75 = vld [vmem:[%s67 + $0x18] sm:$0xff]
          %76 = vst [vmem:[%s68 + $0x18] sm:$0xff] %v75
          %v77 = vld [vmem:[%s67 + $0x20] sm:$0xff]
          %78 = vst [vmem:[%s68 + $0x20] sm:$0xff] %v77
          %v79 = vld [vmem:[%s67 + $0x28] sm:$0xff]
          %80 = vst [vmem:[%s68 + $0x28] sm:$0xff] %v79
          %v81 = vld [vmem:[%s67 + $0x30] sm:$0xff]
          %82 = vst [vmem:[%s68 + $0x30] sm:$0xff] %v81
          %v83 = vld [vmem:[%s67 + $0x38] sm:$0xff]
          %84 = vst [vmem:[%s68 + $0x38] sm:$0xff] %v83
          %v85 = vld [vmem:[%s67 + $0x40] sm:$0xff]
          %86 = vst [vmem:[%s68 + $0x40] sm:$0xff] %v85
          %v87 = vld [vmem:[%s67 + $0x48] sm:$0xff]
          %88 = vst [vmem:[%s68 + $0x48] sm:$0xff] %v87
          %v89 = vld [vmem:[%s67 + $0x50] sm:$0xff]
          %90 = vst [vmem:[%s68 + $0x50] sm:$0xff] %v89
          %v91 = vld [vmem:[%s67 + $0x58] sm:$0xff]
          %92 = vst [vmem:[%s68 + $0x58] sm:$0xff] %v91
          %v93 = vld [vmem:[%s67 + $0x60] sm:$0xff]
          %94 = vst [vmem:[%s68 + $0x60] sm:$0xff] %v93
          %v95 = vld [vmem:[%s67 + $0x68] sm:$0xff]
          %96 = vst [vmem:[%s68 + $0x68] sm:$0xff] %v95
          %v97 = vld [vmem:[%s67 + $0x70] sm:$0xff]
          %98 = vst [vmem:[%s68 + $0x70] sm:$0xff] %v97
          %v99 = vld [vmem:[%s67 + $0x78] sm:$0xff]
          %100 = vst [vmem:[%s68 + $0x78] sm:$0xff] %v99
          %v101 = vld [vmem:[%s67 + $0x80] sm:$0xff]
          %102 = vst [vmem:[%s68 + $0x80] sm:$0xff] %v101
          %v103 = vld [vmem:[%s67 + $0x88] sm:$0xff]
          %104 = vst [vmem:[%s68 + $0x88] sm:$0xff] %v103
          %v105 = vld [vmem:[%s67 + $0x90] sm:$0xff]
          %106 = vst [vmem:[%s68 + $0x90] sm:$0xff] %v105
          %v107 = vld [vmem:[%s67 + $0x98] sm:$0xff]
          %108 = vst [vmem:[%s68 + $0x98] sm:$0xff] %v107
          %v109 = vld [vmem:[%s67 + $0xa0] sm:$0xff]
          %110 = vst [vmem:[%s68 + $0xa0] sm:$0xff] %v109
          %v111 = vld [vmem:[%s67 + $0xa8] sm:$0xff]
          %112 = vst [vmem:[%s68 + $0xa8] sm:$0xff] %v111
          %v113 = vld [vmem:[%s67 + $0xb0] sm:$0xff]
          %114 = vst [vmem:[%s68 + $0xb0] sm:$0xff] %v113
          %v115 = vld [vmem:[%s67 + $0xb8] sm:$0xff]
          %116 = vst [vmem:[%s68 + $0xb8] sm:$0xff] %v115
          %v117 = vld [vmem:[%s67 + $0xc0] sm:$0xff]
          %118 = vst [vmem:[%s68 + $0xc0] sm:$0xff] %v117
          %v119 = vld [vmem:[%s67 + $0xc8] sm:$0xff]
          %120 = vst [vmem:[%s68 + $0xc8] sm:$0xff] %v119
          %v121 = vld [vmem:[%s67 + $0xd0] sm:$0xff]
          %122 = vst [vmem:[%s68 + $0xd0] sm:$0xff] %v121
          %v123 = vld [vmem:[%s67 + $0xd8] sm:$0xff]
          %124 = vst [vmem:[%s68 + $0xd8] sm:$0xff] %v123
          %v125 = vld [vmem:[%s67 + $0xe0] sm:$0xff]
          %126 = vst [vmem:[%s68 + $0xe0] sm:$0xff] %v125
          %v127 = vld [vmem:[%s67 + $0xe8] sm:$0xff]
          %128 = vst [vmem:[%s68 + $0xe8] sm:$0xff] %v127
          %v129 = vld [vmem:[%s67 + $0xf0] sm:$0xff]
          %130 = vst [vmem:[%s68 + $0xf0] sm:$0xff] %v129
          %v131 = vld [vmem:[%s67 + $0xf8] sm:$0xff]
          %132 = vst [vmem:[%s68 + $0xf8] sm:$0xff] %v131
        $region61: #{tpu_custom_call.1} parent=55 // loop_footer
          %s66 = sadd.s32 1, %s62
        $region62: #{tpu_custom_call.1} parent=55 // loop_footer_branch
          %61 = sbr.rel target = $region58
        $region63: #{tpu_custom_call.1} parent=55 // loop_exit
          _
      $region56: #{tpu_custom_call.1} parent=40 // pred_fallthru
        _
      %p133 = pneg %p57
      // Predicated region
      $region64: #{tpu_custom_call.1} parent=40 // pred_check
        _
      $region65: #{tpu_custom_call.1} parent=40 // pred_check_branch
        %135 = sbr.rel (%p57) target = $region67
      $region66: #{tpu_custom_call.1} parent=40 // pred_region
        %s136 = sand.u32 256, 7
      $region67: #{tpu_custom_call.1} parent=40 // pred_fallthru
        _
    $region41: #{tpu_custom_call.1} parent=1 // pred_fallthru
      _
    // Predicated region
    $region42: #{tpu_custom_call.1} parent=1 // pred_check
      %p42 = pneg %p38
    $region43: #{tpu_custom_call.1} parent=1 // pred_check_branch
      %44 = sbr.rel (%p42) target = $region45
    $region44: #{tpu_custom_call.1} parent=1 // pred_region
      %s45 = sshllo.u32 0, 256
      loop: start=0, step=1, limit=1
      $region46: #{tpu_custom_call.1} parent=44 // loop_pre_header
        _
      $region47: #{tpu_custom_call.1} parent=44 // loop_header
        %s47 = sphi 0, %s51
        %p48 = scmp.ge.s32.totalorder %s47, 1
        %s52 = sphi %s3, %s3
        %s53 = sphi [#allocation2], [#allocation2]
      $region48: #{tpu_custom_call.1} parent=44 // loop_header_branch
        %50 = sbr.rel (%p48) target = $region52
      $region49: #{tpu_custom_call.1} parent=44 // loop_body
        %v54 = vld [vmem:[%s52] sm:%s45]
        %55 = vst [vmem:[%s53] sm:%s45] %v54
      $region50: #{tpu_custom_call.1} parent=44 // loop_footer
        %s51 = sadd.s32 1, %s47
      $region51: #{tpu_custom_call.1} parent=44 // loop_footer_branch
        %46 = sbr.rel target = $region47
      $region52: #{tpu_custom_call.1} parent=44 // loop_exit
        _
    $region45: #{tpu_custom_call.1} parent=1 // pred_fallthru
      _
    // Predicated region
    $region68: #{tpu_custom_call.1} parent=1 // pred_check
      _
    $region69: #{tpu_custom_call.1} parent=1 // pred_check_branch
      %139 = sbr.rel (0) target = $region71
    $region70: #{tpu_custom_call.1} parent=1 // pred_region
      %140 = vsyncadd [#allocation5], 4096
    $region71: #{tpu_custom_call.1} parent=1 // pred_fallthru
      _
    %s141 = scalar_lea.sflag [#allocation5], 1
    %p143 = scmp.lt.u32.totalorder 1024, 8
    %p144 = pneg %p143
    // Predicated region
    $region72: #{tpu_custom_call.1} parent=1 // pred_check
      _
    $region73: #{tpu_custom_call.1} parent=1 // pred_check_branch
      %146 = sbr.rel (%p143) target = $region75
    $region74: #{tpu_custom_call.1} parent=1 // pred_region
      %s161 = sand.u32 1024, 7
      %p162 = scmp.eq.s32.totalorder %s161, 0
      // Predicated region
      $region87: #{tpu_custom_call.1} parent=74 // pred_check
        %p163 = pneg %p162
      $region88: #{tpu_custom_call.1} parent=74 // pred_check_branch
        %165 = sbr.rel (%p163) target = $region90
      $region89: #{tpu_custom_call.1} parent=74 // pred_region
        loop: start=0, step=1, limit=1
        $region91: #{tpu_custom_call.1} parent=89 // loop_pre_header
          _
        $region92: #{tpu_custom_call.1} parent=89 // loop_header
          %s167 = sphi 0, %s171
          %p168 = scmp.ge.s32.totalorder %s167, 1
          %s172 = sphi %s6, %s6
          %s173 = sphi [#allocation3], [#allocation3]
        $region93: #{tpu_custom_call.1} parent=89 // loop_header_branch
          %170 = sbr.rel (%p168) target = $region97
        $region94: #{tpu_custom_call.1} parent=89 // loop_body
          %v174 = vld [vmem:[%s172] sm:$0xff]
          %175 = vst [vmem:[%s173] sm:$0xff] %v174
          %v176 = vld [vmem:[%s172 + $0x8] sm:$0xff]
          %177 = vst [vmem:[%s173 + $0x8] sm:$0xff] %v176
          %v178 = vld [vmem:[%s172 + $0x10] sm:$0xff]
          %179 = vst [vmem:[%s173 + $0x10] sm:$0xff] %v178
          %v180 = vld [vmem:[%s172 + $0x18] sm:$0xff]
          %181 = vst [vmem:[%s173 + $0x18] sm:$0xff] %v180
          %v182 = vld [vmem:[%s172 + $0x20] sm:$0xff]
          %183 = vst [vmem:[%s173 + $0x20] sm:$0xff] %v182
          %v184 = vld [vmem:[%s172 + $0x28] sm:$0xff]
          %185 = vst [vmem:[%s173 + $0x28] sm:$0xff] %v184
          %v186 = vld [vmem:[%s172 + $0x30] sm:$0xff]
          %187 = vst [vmem:[%s173 + $0x30] sm:$0xff] %v186
          %v188 = vld [vmem:[%s172 + $0x38] sm:$0xff]
          %189 = vst [vmem:[%s173 + $0x38] sm:$0xff] %v188
          %v190 = vld [vmem:[%s172 + $0x40] sm:$0xff]
          %191 = vst [vmem:[%s173 + $0x40] sm:$0xff] %v190
          %v192 = vld [vmem:[%s172 + $0x48] sm:$0xff]
          %193 = vst [vmem:[%s173 + $0x48] sm:$0xff] %v192
          %v194 = vld [vmem:[%s172 + $0x50] sm:$0xff]
          %195 = vst [vmem:[%s173 + $0x50] sm:$0xff] %v194
          %v196 = vld [vmem:[%s172 + $0x58] sm:$0xff]
          %197 = vst [vmem:[%s173 + $0x58] sm:$0xff] %v196
          %v198 = vld [vmem:[%s172 + $0x60] sm:$0xff]
          %199 = vst [vmem:[%s173 + $0x60] sm:$0xff] %v198
          %v200 = vld [vmem:[%s172 + $0x68] sm:$0xff]
          %201 = vst [vmem:[%s173 + $0x68] sm:$0xff] %v200
          %v202 = vld [vmem:[%s172 + $0x70] sm:$0xff]
          %203 = vst [vmem:[%s173 + $0x70] sm:$0xff] %v202
          %v204 = vld [vmem:[%s172 + $0x78] sm:$0xff]
          %205 = vst [vmem:[%s173 + $0x78] sm:$0xff] %v204
          %v206 = vld [vmem:[%s172 + $0x80] sm:$0xff]
          %207 = vst [vmem:[%s173 + $0x80] sm:$0xff] %v206
          %v208 = vld [vmem:[%s172 + $0x88] sm:$0xff]
          %209 = vst [vmem:[%s173 + $0x88] sm:$0xff] %v208
          %v210 = vld [vmem:[%s172 + $0x90] sm:$0xff]
          %211 = vst [vmem:[%s173 + $0x90] sm:$0xff] %v210
          %v212 = vld [vmem:[%s172 + $0x98] sm:$0xff]
          %213 = vst [vmem:[%s173 + $0x98] sm:$0xff] %v212
          %v214 = vld [vmem:[%s172 + $0xa0] sm:$0xff]
          %215 = vst [vmem:[%s173 + $0xa0] sm:$0xff] %v214
          %v216 = vld [vmem:[%s172 + $0xa8] sm:$0xff]
          %217 = vst [vmem:[%s173 + $0xa8] sm:$0xff] %v216
          %v218 = vld [vmem:[%s172 + $0xb0] sm:$0xff]
          %219 = vst [vmem:[%s173 + $0xb0] sm:$0xff] %v218
          %v220 = vld [vmem:[%s172 + $0xb8] sm:$0xff]
          %221 = vst [vmem:[%s173 + $0xb8] sm:$0xff] %v220
          %v222 = vld [vmem:[%s172 + $0xc0] sm:$0xff]
          %223 = vst [vmem:[%s173 + $0xc0] sm:$0xff] %v222
          %v224 = vld [vmem:[%s172 + $0xc8] sm:$0xff]
          %225 = vst [vmem:[%s173 + $0xc8] sm:$0xff] %v224
          %v226 = vld [vmem:[%s172 + $0xd0] sm:$0xff]
          %227 = vst [vmem:[%s173 + $0xd0] sm:$0xff] %v226
          %v228 = vld [vmem:[%s172 + $0xd8] sm:$0xff]
          %229 = vst [vmem:[%s173 + $0xd8] sm:$0xff] %v228
          %v230 = vld [vmem:[%s172 + $0xe0] sm:$0xff]
          %231 = vst [vmem:[%s173 + $0xe0] sm:$0xff] %v230
          %v232 = vld [vmem:[%s172 + $0xe8] sm:$0xff]
          %233 = vst [vmem:[%s173 + $0xe8] sm:$0xff] %v232
          %v234 = vld [vmem:[%s172 + $0xf0] sm:$0xff]
          %235 = vst [vmem:[%s173 + $0xf0] sm:$0xff] %v234
          %v236 = vld [vmem:[%s172 + $0xf8] sm:$0xff]
          %237 = vst [vmem:[%s173 + $0xf8] sm:$0xff] %v236
          %v238 = vld [vmem:[%s172 + $0x100] sm:$0xff]
          %239 = vst [vmem:[%s173 + $0x100] sm:$0xff] %v238
          %v240 = vld [vmem:[%s172 + $0x108] sm:$0xff]
          %241 = vst [vmem:[%s173 + $0x108] sm:$0xff] %v240
          %v242 = vld [vmem:[%s172 + $0x110] sm:$0xff]
          %243 = vst [vmem:[%s173 + $0x110] sm:$0xff] %v242
          %v244 = vld [vmem:[%s172 + $0x118] sm:$0xff]
          %245 = vst [vmem:[%s173 + $0x118] sm:$0xff] %v244
          %v246 = vld [vmem:[%s172 + $0x120] sm:$0xff]
          %247 = vst [vmem:[%s173 + $0x120] sm:$0xff] %v246
          %v248 = vld [vmem:[%s172 + $0x128] sm:$0xff]
          %249 = vst [vmem:[%s173 + $0x128] sm:$0xff] %v248
          %v250 = vld [vmem:[%s172 + $0x130] sm:$0xff]
          %251 = vst [vmem:[%s173 + $0x130] sm:$0xff] %v250
          %v252 = vld [vmem:[%s172 + $0x138] sm:$0xff]
          %253 = vst [vmem:[%s173 + $0x138] sm:$0xff] %v252
          %v254 = vld [vmem:[%s172 + $0x140] sm:$0xff]
          %255 = vst [vmem:[%s173 + $0x140] sm:$0xff] %v254
          %v256 = vld [vmem:[%s172 + $0x148] sm:$0xff]
          %257 = vst [vmem:[%s173 + $0x148] sm:$0xff] %v256
          %v258 = vld [vmem:[%s172 + $0x150] sm:$0xff]
          %259 = vst [vmem:[%s173 + $0x150] sm:$0xff] %v258
          %v260 = vld [vmem:[%s172 + $0x158] sm:$0xff]
          %261 = vst [vmem:[%s173 + $0x158] sm:$0xff] %v260
          %v262 = vld [vmem:[%s172 + $0x160] sm:$0xff]
          %263 = vst [vmem:[%s173 + $0x160] sm:$0xff] %v262
          %v264 = vld [vmem:[%s172 + $0x168] sm:$0xff]
          %265 = vst [vmem:[%s173 + $0x168] sm:$0xff] %v264
          %v266 = vld [vmem:[%s172 + $0x170] sm:$0xff]
          %267 = vst [vmem:[%s173 + $0x170] sm:$0xff] %v266
          %v268 = vld [vmem:[%s172 + $0x178] sm:$0xff]
          %269 = vst [vmem:[%s173 + $0x178] sm:$0xff] %v268
          %v270 = vld [vmem:[%s172 + $0x180] sm:$0xff]
          %271 = vst [vmem:[%s173 + $0x180] sm:$0xff] %v270
          %v272 = vld [vmem:[%s172 + $0x188] sm:$0xff]
          %273 = vst [vmem:[%s173 + $0x188] sm:$0xff] %v272
          %v274 = vld [vmem:[%s172 + $0x190] sm:$0xff]
          %275 = vst [vmem:[%s173 + $0x190] sm:$0xff] %v274
          %v276 = vld [vmem:[%s172 + $0x198] sm:$0xff]
          %277 = vst [vmem:[%s173 + $0x198] sm:$0xff] %v276
          %v278 = vld [vmem:[%s172 + $0x1a0] sm:$0xff]
          %279 = vst [vmem:[%s173 + $0x1a0] sm:$0xff] %v278
          %v280 = vld [vmem:[%s172 + $0x1a8] sm:$0xff]
          %281 = vst [vmem:[%s173 + $0x1a8] sm:$0xff] %v280
          %v282 = vld [vmem:[%s172 + $0x1b0] sm:$0xff]
          %283 = vst [vmem:[%s173 + $0x1b0] sm:$0xff] %v282
          %v284 = vld [vmem:[%s172 + $0x1b8] sm:$0xff]
          %285 = vst [vmem:[%s173 + $0x1b8] sm:$0xff] %v284
          %v286 = vld [vmem:[%s172 + $0x1c0] sm:$0xff]
          %287 = vst [vmem:[%s173 + $0x1c0] sm:$0xff] %v286
          %v288 = vld [vmem:[%s172 + $0x1c8] sm:$0xff]
          %289 = vst [vmem:[%s173 + $0x1c8] sm:$0xff] %v288
          %v290 = vld [vmem:[%s172 + $0x1d0] sm:$0xff]
          %291 = vst [vmem:[%s173 + $0x1d0] sm:$0xff] %v290
          %v292 = vld [vmem:[%s172 + $0x1d8] sm:$0xff]
          %293 = vst [vmem:[%s173 + $0x1d8] sm:$0xff] %v292
          %v294 = vld [vmem:[%s172 + $0x1e0] sm:$0xff]
          %295 = vst [vmem:[%s173 + $0x1e0] sm:$0xff] %v294
          %v296 = vld [vmem:[%s172 + $0x1e8] sm:$0xff]
          %297 = vst [vmem:[%s173 + $0x1e8] sm:$0xff] %v296
          %v298 = vld [vmem:[%s172 + $0x1f0] sm:$0xff]
          %299 = vst [vmem:[%s173 + $0x1f0] sm:$0xff] %v298
          %v300 = vld [vmem:[%s172 + $0x1f8] sm:$0xff]
          %301 = vst [vmem:[%s173 + $0x1f8] sm:$0xff] %v300
          %v302 = vld [vmem:[%s172 + $0x200] sm:$0xff]
          %303 = vst [vmem:[%s173 + $0x200] sm:$0xff] %v302
          %v304 = vld [vmem:[%s172 + $0x208] sm:$0xff]
          %305 = vst [vmem:[%s173 + $0x208] sm:$0xff] %v304
          %v306 = vld [vmem:[%s172 + $0x210] sm:$0xff]
          %307 = vst [vmem:[%s173 + $0x210] sm:$0xff] %v306
          %v308 = vld [vmem:[%s172 + $0x218] sm:$0xff]
          %309 = vst [vmem:[%s173 + $0x218] sm:$0xff] %v308
          %v310 = vld [vmem:[%s172 + $0x220] sm:$0xff]
          %311 = vst [vmem:[%s173 + $0x220] sm:$0xff] %v310
          %v312 = vld [vmem:[%s172 + $0x228] sm:$0xff]
          %313 = vst [vmem:[%s173 + $0x228] sm:$0xff] %v312
          %v314 = vld [vmem:[%s172 + $0x230] sm:$0xff]
          %315 = vst [vmem:[%s173 + $0x230] sm:$0xff] %v314
          %v316 = vld [vmem:[%s172 + $0x238] sm:$0xff]
          %317 = vst [vmem:[%s173 + $0x238] sm:$0xff] %v316
          %v318 = vld [vmem:[%s172 + $0x240] sm:$0xff]
          %319 = vst [vmem:[%s173 + $0x240] sm:$0xff] %v318
          %v320 = vld [vmem:[%s172 + $0x248] sm:$0xff]
          %321 = vst [vmem:[%s173 + $0x248] sm:$0xff] %v320
          %v322 = vld [vmem:[%s172 + $0x250] sm:$0xff]
          %323 = vst [vmem:[%s173 + $0x250] sm:$0xff] %v322
          %v324 = vld [vmem:[%s172 + $0x258] sm:$0xff]
          %325 = vst [vmem:[%s173 + $0x258] sm:$0xff] %v324
          %v326 = vld [vmem:[%s172 + $0x260] sm:$0xff]
          %327 = vst [vmem:[%s173 + $0x260] sm:$0xff] %v326
          %v328 = vld [vmem:[%s172 + $0x268] sm:$0xff]
          %329 = vst [vmem:[%s173 + $0x268] sm:$0xff] %v328
          %v330 = vld [vmem:[%s172 + $0x270] sm:$0xff]
          %331 = vst [vmem:[%s173 + $0x270] sm:$0xff] %v330
          %v332 = vld [vmem:[%s172 + $0x278] sm:$0xff]
          %333 = vst [vmem:[%s173 + $0x278] sm:$0xff] %v332
          %v334 = vld [vmem:[%s172 + $0x280] sm:$0xff]
          %335 = vst [vmem:[%s173 + $0x280] sm:$0xff] %v334
          %v336 = vld [vmem:[%s172 + $0x288] sm:$0xff]
          %337 = vst [vmem:[%s173 + $0x288] sm:$0xff] %v336
          %v338 = vld [vmem:[%s172 + $0x290] sm:$0xff]
          %339 = vst [vmem:[%s173 + $0x290] sm:$0xff] %v338
          %v340 = vld [vmem:[%s172 + $0x298] sm:$0xff]
          %341 = vst [vmem:[%s173 + $0x298] sm:$0xff] %v340
          %v342 = vld [vmem:[%s172 + $0x2a0] sm:$0xff]
          %343 = vst [vmem:[%s173 + $0x2a0] sm:$0xff] %v342
          %v344 = vld [vmem:[%s172 + $0x2a8] sm:$0xff]
          %345 = vst [vmem:[%s173 + $0x2a8] sm:$0xff] %v344
          %v346 = vld [vmem:[%s172 + $0x2b0] sm:$0xff]
          %347 = vst [vmem:[%s173 + $0x2b0] sm:$0xff] %v346
          %v348 = vld [vmem:[%s172 + $0x2b8] sm:$0xff]
          %349 = vst [vmem:[%s173 + $0x2b8] sm:$0xff] %v348
          %v350 = vld [vmem:[%s172 + $0x2c0] sm:$0xff]
          %351 = vst [vmem:[%s173 + $0x2c0] sm:$0xff] %v350
          %v352 = vld [vmem:[%s172 + $0x2c8] sm:$0xff]
          %353 = vst [vmem:[%s173 + $0x2c8] sm:$0xff] %v352
          %v354 = vld [vmem:[%s172 + $0x2d0] sm:$0xff]
          %355 = vst [vmem:[%s173 + $0x2d0] sm:$0xff] %v354
          %v356 = vld [vmem:[%s172 + $0x2d8] sm:$0xff]
          %357 = vst [vmem:[%s173 + $0x2d8] sm:$0xff] %v356
          %v358 = vld [vmem:[%s172 + $0x2e0] sm:$0xff]
          %359 = vst [vmem:[%s173 + $0x2e0] sm:$0xff] %v358
          %v360 = vld [vmem:[%s172 + $0x2e8] sm:$0xff]
          %361 = vst [vmem:[%s173 + $0x2e8] sm:$0xff] %v360
          %v362 = vld [vmem:[%s172 + $0x2f0] sm:$0xff]
          %363 = vst [vmem:[%s173 + $0x2f0] sm:$0xff] %v362
          %v364 = vld [vmem:[%s172 + $0x2f8] sm:$0xff]
          %365 = vst [vmem:[%s173 + $0x2f8] sm:$0xff] %v364
          %v366 = vld [vmem:[%s172 + $0x300] sm:$0xff]
          %367 = vst [vmem:[%s173 + $0x300] sm:$0xff] %v366
          %v368 = vld [vmem:[%s172 + $0x308] sm:$0xff]
          %369 = vst [vmem:[%s173 + $0x308] sm:$0xff] %v368
          %v370 = vld [vmem:[%s172 + $0x310] sm:$0xff]
          %371 = vst [vmem:[%s173 + $0x310] sm:$0xff] %v370
          %v372 = vld [vmem:[%s172 + $0x318] sm:$0xff]
          %373 = vst [vmem:[%s173 + $0x318] sm:$0xff] %v372
          %v374 = vld [vmem:[%s172 + $0x320] sm:$0xff]
          %375 = vst [vmem:[%s173 + $0x320] sm:$0xff] %v374
          %v376 = vld [vmem:[%s172 + $0x328] sm:$0xff]
          %377 = vst [vmem:[%s173 + $0x328] sm:$0xff] %v376
          %v378 = vld [vmem:[%s172 + $0x330] sm:$0xff]
          %379 = vst [vmem:[%s173 + $0x330] sm:$0xff] %v378
          %v380 = vld [vmem:[%s172 + $0x338] sm:$0xff]
          %381 = vst [vmem:[%s173 + $0x338] sm:$0xff] %v380
          %v382 = vld [vmem:[%s172 + $0x340] sm:$0xff]
          %383 = vst [vmem:[%s173 + $0x340] sm:$0xff] %v382
          %v384 = vld [vmem:[%s172 + $0x348] sm:$0xff]
          %385 = vst [vmem:[%s173 + $0x348] sm:$0xff] %v384
          %v386 = vld [vmem:[%s172 + $0x350] sm:$0xff]
          %387 = vst [vmem:[%s173 + $0x350] sm:$0xff] %v386
          %v388 = vld [vmem:[%s172 + $0x358] sm:$0xff]
          %389 = vst [vmem:[%s173 + $0x358] sm:$0xff] %v388
          %v390 = vld [vmem:[%s172 + $0x360] sm:$0xff]
          %391 = vst [vmem:[%s173 + $0x360] sm:$0xff] %v390
          %v392 = vld [vmem:[%s172 + $0x368] sm:$0xff]
          %393 = vst [vmem:[%s173 + $0x368] sm:$0xff] %v392
          %v394 = vld [vmem:[%s172 + $0x370] sm:$0xff]
          %395 = vst [vmem:[%s173 + $0x370] sm:$0xff] %v394
          %v396 = vld [vmem:[%s172 + $0x378] sm:$0xff]
          %397 = vst [vmem:[%s173 + $0x378] sm:$0xff] %v396
          %v398 = vld [vmem:[%s172 + $0x380] sm:$0xff]
          %399 = vst [vmem:[%s173 + $0x380] sm:$0xff] %v398
          %v400 = vld [vmem:[%s172 + $0x388] sm:$0xff]
          %401 = vst [vmem:[%s173 + $0x388] sm:$0xff] %v400
          %v402 = vld [vmem:[%s172 + $0x390] sm:$0xff]
          %403 = vst [vmem:[%s173 + $0x390] sm:$0xff] %v402
          %v404 = vld [vmem:[%s172 + $0x398] sm:$0xff]
          %405 = vst [vmem:[%s173 + $0x398] sm:$0xff] %v404
          %v406 = vld [vmem:[%s172 + $0x3a0] sm:$0xff]
          %407 = vst [vmem:[%s173 + $0x3a0] sm:$0xff] %v406
          %v408 = vld [vmem:[%s172 + $0x3a8] sm:$0xff]
          %409 = vst [vmem:[%s173 + $0x3a8] sm:$0xff] %v408
          %v410 = vld [vmem:[%s172 + $0x3b0] sm:$0xff]
          %411 = vst [vmem:[%s173 + $0x3b0] sm:$0xff] %v410
          %v412 = vld [vmem:[%s172 + $0x3b8] sm:$0xff]
          %413 = vst [vmem:[%s173 + $0x3b8] sm:$0xff] %v412
          %v414 = vld [vmem:[%s172 + $0x3c0] sm:$0xff]
          %415 = vst [vmem:[%s173 + $0x3c0] sm:$0xff] %v414
          %v416 = vld [vmem:[%s172 + $0x3c8] sm:$0xff]
          %417 = vst [vmem:[%s173 + $0x3c8] sm:$0xff] %v416
          %v418 = vld [vmem:[%s172 + $0x3d0] sm:$0xff]
          %419 = vst [vmem:[%s173 + $0x3d0] sm:$0xff] %v418
          %v420 = vld [vmem:[%s172 + $0x3d8] sm:$0xff]
          %421 = vst [vmem:[%s173 + $0x3d8] sm:$0xff] %v420
          %v422 = vld [vmem:[%s172 + $0x3e0] sm:$0xff]
          %423 = vst [vmem:[%s173 + $0x3e0] sm:$0xff] %v422
          %v424 = vld [vmem:[%s172 + $0x3e8] sm:$0xff]
          %425 = vst [vmem:[%s173 + $0x3e8] sm:$0xff] %v424
          %v426 = vld [vmem:[%s172 + $0x3f0] sm:$0xff]
          %427 = vst [vmem:[%s173 + $0x3f0] sm:$0xff] %v426
          %v428 = vld [vmem:[%s172 + $0x3f8] sm:$0xff]
          %429 = vst [vmem:[%s173 + $0x3f8] sm:$0xff] %v428
        $region95: #{tpu_custom_call.1} parent=89 // loop_footer
          %s171 = sadd.s32 1, %s167
        $region96: #{tpu_custom_call.1} parent=89 // loop_footer_branch
          %166 = sbr.rel target = $region92
        $region97: #{tpu_custom_call.1} parent=89 // loop_exit
          _
      $region90: #{tpu_custom_call.1} parent=74 // pred_fallthru
        _
      %p430 = pneg %p162
      // Predicated region
      $region98: #{tpu_custom_call.1} parent=74 // pred_check
        _
      $region99: #{tpu_custom_call.1} parent=74 // pred_check_branch
        %432 = sbr.rel (%p162) target = $region101
      $region100: #{tpu_custom_call.1} parent=74 // pred_region
        %s433 = sand.u32 1024, 7
      $region101: #{tpu_custom_call.1} parent=74 // pred_fallthru
        _
    $region75: #{tpu_custom_call.1} parent=1 // pred_fallthru
      _
    // Predicated region
    $region76: #{tpu_custom_call.1} parent=1 // pred_check
      %p147 = pneg %p143
    $region77: #{tpu_custom_call.1} parent=1 // pred_check_branch
      %149 = sbr.rel (%p147) target = $region79
    $region78: #{tpu_custom_call.1} parent=1 // pred_region
      %s150 = sshllo.u32 0, 1024
      loop: start=0, step=1, limit=1
      $region80: #{tpu_custom_call.1} parent=78 // loop_pre_header
        _
      $region81: #{tpu_custom_call.1} parent=78 // loop_header
        %s152 = sphi 0, %s156
        %p153 = scmp.ge.s32.totalorder %s152, 1
        %s157 = sphi %s6, %s6
        %s158 = sphi [#allocation3], [#allocation3]
      $region82: #{tpu_custom_call.1} parent=78 // loop_header_branch
        %155 = sbr.rel (%p153) target = $region86
      $region83: #{tpu_custom_call.1} parent=78 // loop_body
        %v159 = vld [vmem:[%s157] sm:%s150]
        %160 = vst [vmem:[%s158] sm:%s150] %v159
      $region84: #{tpu_custom_call.1} parent=78 // loop_footer
        %s156 = sadd.s32 1, %s152
      $region85: #{tpu_custom_call.1} parent=78 // loop_footer_branch
        %151 = sbr.rel target = $region81
      $region86: #{tpu_custom_call.1} parent=78 // loop_exit
        _
    $region79: #{tpu_custom_call.1} parent=1 // pred_fallthru
      _
    // Predicated region
    $region102: #{tpu_custom_call.1} parent=1 // pred_check
      _
    $region103: #{tpu_custom_call.1} parent=1 // pred_check_branch
      %436 = sbr.rel (0) target = $region105
    $region104: #{tpu_custom_call.1} parent=1 // pred_region
      %437 = vsyncadd %s141, 16384
    $region105: #{tpu_custom_call.1} parent=1 // pred_fallthru
      _
    %v438 = vld [vmem:[%s0] sm:$0xff]
    %v439 = vld [vmem:[%s0 + $0x8] sm:$0xff]
    %v440 = vpack.c.bf16 %v439, %v438
    %v441 = vld [vmem:[%s1] sm:$0xff]
    %v442 = vld [vmem:[%s1 + $0x8] sm:$0xff]
    %v443 = vld [vmem:[%s1 + $0x10] sm:$0xff]
    %v444 = vld [vmem:[%s1 + $0x18] sm:$0xff]
    %v445 = vld [vmem:[%s1 + $0x20] sm:$0xff]
    %v446 = vld [vmem:[%s1 + $0x28] sm:$0xff]
    %v447 = vld [vmem:[%s1 + $0x30] sm:$0xff]
    %v448 = vld [vmem:[%s1 + $0x38] sm:$0xff]
    %v449 = vld [vmem:[%s1 + $0x40] sm:$0xff]
    %v450 = vld [vmem:[%s1 + $0x48] sm:$0xff]
    %v451 = vld [vmem:[%s1 + $0x50] sm:$0xff]
    %v452 = vld [vmem:[%s1 + $0x58] sm:$0xff]
    %v453 = vld [vmem:[%s1 + $0x60] sm:$0x33]
    %v454 = vld [vmem:[%s2] sm:$0x3]
    %v456 = vlaneseq
    %v457 = vshrl.u32 %v456, 7
    %v458 = vsub.s32 0, %v457
    %v459 = vrot.slane %v454, %v458
    %v460 = vlaneseq
    %v461 = vshrl.u32 %v460, 7
    %v462 = vsub.s32 1, %v461
    %v463 = vrot.slane %v454, %v462
    %v479 = vunpack.c.l.b16 %v441
    %v480 = vunpack.c.h.b16 %v441
    %v481 = vunpack.c.l.b16 %v442
    %v482 = vunpack.c.h.b16 %v442
    %v483 = vunpack.c.l.b16 %v443
    %v484 = vunpack.c.h.b16 %v443
    %v485 = vunpack.c.l.b16 %v444
    %v486 = vunpack.c.h.b16 %v444
    %v487 = vunpack.c.l.b16 %v445
    %v488 = vunpack.c.h.b16 %v445
    %v489 = vunpack.c.l.b16 %v446
    %v490 = vunpack.c.h.b16 %v446
    %v491 = vunpack.c.l.b16 %v447
    %v492 = vunpack.c.h.b16 %v447
    %v493 = vunpack.c.l.b16 %v448
    %v494 = vunpack.c.h.b16 %v448
    %v495 = vunpack.c.l.b16 %v449
    %v496 = vunpack.c.h.b16 %v449
    %v497 = vunpack.c.l.b16 %v450
    %v498 = vunpack.c.h.b16 %v450
    %v499 = vunpack.c.l.b16 %v451
    %v500 = vunpack.c.h.b16 %v451
    %v501 = vunpack.c.l.b16 %v452
    %v502 = vunpack.c.h.b16 %v452
    %v503 = vunpack.c.l.b16 %v453
    %v504 = vunpack.c.h.b16 %v453
    %v505 = vpack.c.b16 %v481, %v479
    %v506 = vpack.c.b16 %v482, %v480
    %v507 = vpack.c.b16 %v485, %v483
    %v508 = vpack.c.b16 %v486, %v484
    %v509 = vpack.c.b16 %v489, %v487
    %v510 = vpack.c.b16 %v490, %v488
    %v511 = vpack.c.b16 %v493, %v491
    %v512 = vpack.c.b16 %v494, %v492
    %v513 = vpack.c.b16 %v497, %v495
    %v514 = vpack.c.b16 %v498, %v496
    %v515 = vpack.c.b16 %v501, %v499
    %v516 = vpack.c.b16 %v502, %v500
    %v517 = vpack.c.b16 %v503, %v503
    %v518 = vpack.c.b16 %v504, %v504
    %vm531 = vcmask 818176
    %v533 = vsel %vm531, %v440, 0
    %vm535 = vcmask 1041408
    %v537 = vsel %vm535, %v517, 0
    %v540 = vsel %vm535, %v518, 0
    %542 = vmatprep.subr.bf16.mxu0 %v506
    %543 = vmatpush1.bf16.msra.mxu0 %v505
    %544 = vmatprep.subr.bf16.mxu0 %v508
    %545 = vmatpush1.bf16.msra.mxu0 %v507
    %546 = vmatprep.subr.bf16.mxu0 %v510
    %547 = vmatpush1.bf16.msra.mxu0 %v509
    %548 = vmatprep.subr.bf16.mxu0 %v512
    %549 = vmatpush1.bf16.msra.mxu0 %v511
    %550 = vmatprep.subr.bf16.mxu0 %v514
    %551 = vmatpush1.bf16.msra.mxu0 %v513
    %552 = vmatprep.subr.bf16.mxu0 %v516
    %553 = vmatpush1.bf16.msra.mxu0 %v515
    %554 = vmatprep.subr.bf16.mxu0 %v540
    %555 = vmatpush1.bf16.msra.mxu0 %v537
    %556 = vmatprep.subr.bf16.mxu0 0
    %557 = vmatpush1.bf16.msra.mxu0 0
    %558 = vmatprep.subr.bf16.mxu0 0
    %559 = vmatpush1.bf16.msra.mxu0 0
    %560 = vmatprep.subr.bf16.mxu0 0
    %561 = vmatpush1.bf16.msra.mxu0 0
    %562 = vmatprep.subr.bf16.mxu0 0
    %563 = vmatpush1.bf16.msra.mxu0 0
    %564 = vmatprep.subr.bf16.mxu0 0
    %565 = vmatpush1.bf16.msra.mxu0 0
    %566 = vmatprep.subr.bf16.mxu0 0
    %567 = vmatpush1.bf16.msra.mxu0 0
    %568 = vmatprep.subr.bf16.mxu0 0
    %569 = vmatpush1.bf16.msra.mxu0 0
    %570 = vmatprep.subr.bf16.mxu0 0
    %571 = vmatpush1.bf16.msra.mxu0 0
    %572 = vmatprep.subr.bf16.mxu0 0
    %573 = vmatpush1.bf16.msra.mxu0 0
    %574 = vmatprep.mubr.bf16.mxu0 0
    %575 = vmatmul.mubr.bf16.gmra.mrb[0].mxu0 %v533
    %v576 = vpop.f32.mrb[0].mxu0
    %v577 = vadd.f32 %v459, %v576
    %v578 = vpop.f32.mrb[0].mxu0
    %v579 = vadd.f32 %v463, %v578
    %v580 = vpop.f32.mrb[0].mxu0
    %v581 = vadd.f32 %v459, %v580
    %v582 = vpop.f32.mrb[0].mxu0
    %v583 = vadd.f32 %v463, %v582
    %584 = vdwg.mxu0
    %v585 = vmax.f32 %v577, 0.0
    %v586 = vmax.f32 %v579, 0.0
    %v587 = vmax.f32 %v581, 0.0
    %v588 = vmax.f32 %v583, 0.0
    %s589 = smul.u32 2, 32
    %s590 = smul.u32 %s589, 4
    %s591 = sshll.u32 %s590, 4
    %592 = dma.done [#allocation5], %s591
    %s593 = scalar_lea.sflag [#allocation5], 2
    %p595 = scmp.lt.u32.totalorder 1792, 8
    %p596 = pneg %p595
    // Predicated region
    $region106: #{tpu_custom_call.1} parent=1 // pred_check
      _
    $region107: #{tpu_custom_call.1} parent=1 // pred_check_branch
      %598 = sbr.rel (%p595) target = $region109
    $region108: #{tpu_custom_call.1} parent=1 // pred_region
      %s613 = sand.u32 1792, 7
      %p614 = scmp.eq.s32.totalorder %s613, 0
      // Predicated region
      $region121: #{tpu_custom_call.1} parent=108 // pred_check
        %p615 = pneg %p614
      $region122: #{tpu_custom_call.1} parent=108 // pred_check_branch
        %617 = sbr.rel (%p615) target = $region124
      $region123: #{tpu_custom_call.1} parent=108 // pred_region
        loop: start=0, step=1, limit=1
        $region125: #{tpu_custom_call.1} parent=123 // loop_pre_header
          _
        $region126: #{tpu_custom_call.1} parent=123 // loop_header
          %s619 = sphi 0, %s623
          %p620 = scmp.ge.s32.totalorder %s619, 1
          %s624 = sphi %s9, %s9
          %s625 = sphi [#allocation4], [#allocation4]
        $region127: #{tpu_custom_call.1} parent=123 // loop_header_branch
          %622 = sbr.rel (%p620) target = $region131
        $region128: #{tpu_custom_call.1} parent=123 // loop_body
          %v626 = vld [vmem:[%s624] sm:$0xff]
          %627 = vst [vmem:[%s625] sm:$0xff] %v626
          %v628 = vld [vmem:[%s624 + $0x8] sm:$0xff]
          %629 = vst [vmem:[%s625 + $0x8] sm:$0xff] %v628
          %v630 = vld [vmem:[%s624 + $0x10] sm:$0xff]
          %631 = vst [vmem:[%s625 + $0x10] sm:$0xff] %v630
          %v632 = vld [vmem:[%s624 + $0x18] sm:$0xff]
          %633 = vst [vmem:[%s625 + $0x18] sm:$0xff] %v632
          %v634 = vld [vmem:[%s624 + $0x20] sm:$0xff]
          %635 = vst [vmem:[%s625 + $0x20] sm:$0xff] %v634
          %v636 = vld [vmem:[%s624 + $0x28] sm:$0xff]
          %637 = vst [vmem:[%s625 + $0x28] sm:$0xff] %v636
          %v638 = vld [vmem:[%s624 + $0x30] sm:$0xff]
          %639 = vst [vmem:[%s625 + $0x30] sm:$0xff] %v638
          %v640 = vld [vmem:[%s624 + $0x38] sm:$0xff]
          %641 = vst [vmem:[%s625 + $0x38] sm:$0xff] %v640
          %v642 = vld [vmem:[%s624 + $0x40] sm:$0xff]
          %643 = vst [vmem:[%s625 + $0x40] sm:$0xff] %v642
          %v644 = vld [vmem:[%s624 + $0x48] sm:$0xff]
          %645 = vst [vmem:[%s625 + $0x48] sm:$0xff] %v644
          %v646 = vld [vmem:[%s624 + $0x50] sm:$0xff]
          %647 = vst [vmem:[%s625 + $0x50] sm:$0xff] %v646
          %v648 = vld [vmem:[%s624 + $0x58] sm:$0xff]
          %649 = vst [vmem:[%s625 + $0x58] sm:$0xff] %v648
          %v650 = vld [vmem:[%s624 + $0x60] sm:$0xff]
          %651 = vst [vmem:[%s625 + $0x60] sm:$0xff] %v650
          %v652 = vld [vmem:[%s624 + $0x68] sm:$0xff]
          %653 = vst [vmem:[%s625 + $0x68] sm:$0xff] %v652
          %v654 = vld [vmem:[%s624 + $0x70] sm:$0xff]
          %655 = vst [vmem:[%s625 + $0x70] sm:$0xff] %v654
          %v656 = vld [vmem:[%s624 + $0x78] sm:$0xff]
          %657 = vst [vmem:[%s625 + $0x78] sm:$0xff] %v656
          %v658 = vld [vmem:[%s624 + $0x80] sm:$0xff]
          %659 = vst [vmem:[%s625 + $0x80] sm:$0xff] %v658
          %v660 = vld [vmem:[%s624 + $0x88] sm:$0xff]
          %661 = vst [vmem:[%s625 + $0x88] sm:$0xff] %v660
          %v662 = vld [vmem:[%s624 + $0x90] sm:$0xff]
          %663 = vst [vmem:[%s625 + $0x90] sm:$0xff] %v662
          %v664 = vld [vmem:[%s624 + $0x98] sm:$0xff]
          %665 = vst [vmem:[%s625 + $0x98] sm:$0xff] %v664
          %v666 = vld [vmem:[%s624 + $0xa0] sm:$0xff]
          %667 = vst [vmem:[%s625 + $0xa0] sm:$0xff] %v666
          %v668 = vld [vmem:[%s624 + $0xa8] sm:$0xff]
          %669 = vst [vmem:[%s625 + $0xa8] sm:$0xff] %v668
          %v670 = vld [vmem:[%s624 + $0xb0] sm:$0xff]
          %671 = vst [vmem:[%s625 + $0xb0] sm:$0xff] %v670
          %v672 = vld [vmem:[%s624 + $0xb8] sm:$0xff]
          %673 = vst [vmem:[%s625 + $0xb8] sm:$0xff] %v672
          %v674 = vld [vmem:[%s624 + $0xc0] sm:$0xff]
          %675 = vst [vmem:[%s625 + $0xc0] sm:$0xff] %v674
          %v676 = vld [vmem:[%s624 + $0xc8] sm:$0xff]
          %677 = vst [vmem:[%s625 + $0xc8] sm:$0xff] %v676
          %v678 = vld [vmem:[%s624 + $0xd0] sm:$0xff]
          %679 = vst [vmem:[%s625 + $0xd0] sm:$0xff] %v678
          %v680 = vld [vmem:[%s624 + $0xd8] sm:$0xff]
          %681 = vst [vmem:[%s625 + $0xd8] sm:$0xff] %v680
          %v682 = vld [vmem:[%s624 + $0xe0] sm:$0xff]
          %683 = vst [vmem:[%s625 + $0xe0] sm:$0xff] %v682
          %v684 = vld [vmem:[%s624 + $0xe8] sm:$0xff]
          %685 = vst [vmem:[%s625 + $0xe8] sm:$0xff] %v684
          %v686 = vld [vmem:[%s624 + $0xf0] sm:$0xff]
          %687 = vst [vmem:[%s625 + $0xf0] sm:$0xff] %v686
          %v688 = vld [vmem:[%s624 + $0xf8] sm:$0xff]
          %689 = vst [vmem:[%s625 + $0xf8] sm:$0xff] %v688
          %v690 = vld [vmem:[%s624 + $0x100] sm:$0xff]
          %691 = vst [vmem:[%s625 + $0x100] sm:$0xff] %v690
          %v692 = vld [vmem:[%s624 + $0x108] sm:$0xff]
          %693 = vst [vmem:[%s625 + $0x108] sm:$0xff] %v692
          %v694 = vld [vmem:[%s624 + $0x110] sm:$0xff]
          %695 = vst [vmem:[%s625 + $0x110] sm:$0xff] %v694
          %v696 = vld [vmem:[%s624 + $0x118] sm:$0xff]
          %697 = vst [vmem:[%s625 + $0x118] sm:$0xff] %v696
          %v698 = vld [vmem:[%s624 + $0x120] sm:$0xff]
          %699 = vst [vmem:[%s625 + $0x120] sm:$0xff] %v698
          %v700 = vld [vmem:[%s624 + $0x128] sm:$0xff]
          %701 = vst [vmem:[%s625 + $0x128] sm:$0xff] %v700
          %v702 = vld [vmem:[%s624 + $0x130] sm:$0xff]
          %703 = vst [vmem:[%s625 + $0x130] sm:$0xff] %v702
          %v704 = vld [vmem:[%s624 + $0x138] sm:$0xff]
          %705 = vst [vmem:[%s625 + $0x138] sm:$0xff] %v704
          %v706 = vld [vmem:[%s624 + $0x140] sm:$0xff]
          %707 = vst [vmem:[%s625 + $0x140] sm:$0xff] %v706
          %v708 = vld [vmem:[%s624 + $0x148] sm:$0xff]
          %709 = vst [vmem:[%s625 + $0x148] sm:$0xff] %v708
          %v710 = vld [vmem:[%s624 + $0x150] sm:$0xff]
          %711 = vst [vmem:[%s625 + $0x150] sm:$0xff] %v710
          %v712 = vld [vmem:[%s624 + $0x158] sm:$0xff]
          %713 = vst [vmem:[%s625 + $0x158] sm:$0xff] %v712
          %v714 = vld [vmem:[%s624 + $0x160] sm:$0xff]
          %715 = vst [vmem:[%s625 + $0x160] sm:$0xff] %v714
          %v716 = vld [vmem:[%s624 + $0x168] sm:$0xff]
          %717 = vst [vmem:[%s625 + $0x168] sm:$0xff] %v716
          %v718 = vld [vmem:[%s624 + $0x170] sm:$0xff]
          %719 = vst [vmem:[%s625 + $0x170] sm:$0xff] %v718
          %v720 = vld [vmem:[%s624 + $0x178] sm:$0xff]
          %721 = vst [vmem:[%s625 + $0x178] sm:$0xff] %v720
          %v722 = vld [vmem:[%s624 + $0x180] sm:$0xff]
          %723 = vst [vmem:[%s625 + $0x180] sm:$0xff] %v722
          %v724 = vld [vmem:[%s624 + $0x188] sm:$0xff]
          %725 = vst [vmem:[%s625 + $0x188] sm:$0xff] %v724
          %v726 = vld [vmem:[%s624 + $0x190] sm:$0xff]
          %727 = vst [vmem:[%s625 + $0x190] sm:$0xff] %v726
          %v728 = vld [vmem:[%s624 + $0x198] sm:$0xff]
          %729 = vst [vmem:[%s625 + $0x198] sm:$0xff] %v728
          %v730 = vld [vmem:[%s624 + $0x1a0] sm:$0xff]
          %731 = vst [vmem:[%s625 + $0x1a0] sm:$0xff] %v730
          %v732 = vld [vmem:[%s624 + $0x1a8] sm:$0xff]
          %733 = vst [vmem:[%s625 + $0x1a8] sm:$0xff] %v732
          %v734 = vld [vmem:[%s624 + $0x1b0] sm:$0xff]
          %735 = vst [vmem:[%s625 + $0x1b0] sm:$0xff] %v734
          %v736 = vld [vmem:[%s624 + $0x1b8] sm:$0xff]
          %737 = vst [vmem:[%s625 + $0x1b8] sm:$0xff] %v736
          %v738 = vld [vmem:[%s624 + $0x1c0] sm:$0xff]
          %739 = vst [vmem:[%s625 + $0x1c0] sm:$0xff] %v738
          %v740 = vld [vmem:[%s624 + $0x1c8] sm:$0xff]
          %741 = vst [vmem:[%s625 + $0x1c8] sm:$0xff] %v740
          %v742 = vld [vmem:[%s624 + $0x1d0] sm:$0xff]
          %743 = vst [vmem:[%s625 + $0x1d0] sm:$0xff] %v742
          %v744 = vld [vmem:[%s624 + $0x1d8] sm:$0xff]
          %745 = vst [vmem:[%s625 + $0x1d8] sm:$0xff] %v744
          %v746 = vld [vmem:[%s624 + $0x1e0] sm:$0xff]
          %747 = vst [vmem:[%s625 + $0x1e0] sm:$0xff] %v746
          %v748 = vld [vmem:[%s624 + $0x1e8] sm:$0xff]
          %749 = vst [vmem:[%s625 + $0x1e8] sm:$0xff] %v748
          %v750 = vld [vmem:[%s624 + $0x1f0] sm:$0xff]
          %751 = vst [vmem:[%s625 + $0x1f0] sm:$0xff] %v750
          %v752 = vld [vmem:[%s624 + $0x1f8] sm:$0xff]
          %753 = vst [vmem:[%s625 + $0x1f8] sm:$0xff] %v752
          %v754 = vld [vmem:[%s624 + $0x200] sm:$0xff]
          %755 = vst [vmem:[%s625 + $0x200] sm:$0xff] %v754
          %v756 = vld [vmem:[%s624 + $0x208] sm:$0xff]
          %757 = vst [vmem:[%s625 + $0x208] sm:$0xff] %v756
          %v758 = vld [vmem:[%s624 + $0x210] sm:$0xff]
          %759 = vst [vmem:[%s625 + $0x210] sm:$0xff] %v758
          %v760 = vld [vmem:[%s624 + $0x218] sm:$0xff]
          %761 = vst [vmem:[%s625 + $0x218] sm:$0xff] %v760
          %v762 = vld [vmem:[%s624 + $0x220] sm:$0xff]
          %763 = vst [vmem:[%s625 + $0x220] sm:$0xff] %v762
          %v764 = vld [vmem:[%s624 + $0x228] sm:$0xff]
          %765 = vst [vmem:[%s625 + $0x228] sm:$0xff] %v764
          %v766 = vld [vmem:[%s624 + $0x230] sm:$0xff]
          %767 = vst [vmem:[%s625 + $0x230] sm:$0xff] %v766
          %v768 = vld [vmem:[%s624 + $0x238] sm:$0xff]
          %769 = vst [vmem:[%s625 + $0x238] sm:$0xff] %v768
          %v770 = vld [vmem:[%s624 + $0x240] sm:$0xff]
          %771 = vst [vmem:[%s625 + $0x240] sm:$0xff] %v770
          %v772 = vld [vmem:[%s624 + $0x248] sm:$0xff]
          %773 = vst [vmem:[%s625 + $0x248] sm:$0xff] %v772
          %v774 = vld [vmem:[%s624 + $0x250] sm:$0xff]
          %775 = vst [vmem:[%s625 + $0x250] sm:$0xff] %v774
          %v776 = vld [vmem:[%s624 + $0x258] sm:$0xff]
          %777 = vst [vmem:[%s625 + $0x258] sm:$0xff] %v776
          %v778 = vld [vmem:[%s624 + $0x260] sm:$0xff]
          %779 = vst [vmem:[%s625 + $0x260] sm:$0xff] %v778
          %v780 = vld [vmem:[%s624 + $0x268] sm:$0xff]
          %781 = vst [vmem:[%s625 + $0x268] sm:$0xff] %v780
          %v782 = vld [vmem:[%s624 + $0x270] sm:$0xff]
          %783 = vst [vmem:[%s625 + $0x270] sm:$0xff] %v782
          %v784 = vld [vmem:[%s624 + $0x278] sm:$0xff]
          %785 = vst [vmem:[%s625 + $0x278] sm:$0xff] %v784
          %v786 = vld [vmem:[%s624 + $0x280] sm:$0xff]
          %787 = vst [vmem:[%s625 + $0x280] sm:$0xff] %v786
          %v788 = vld [vmem:[%s624 + $0x288] sm:$0xff]
          %789 = vst [vmem:[%s625 + $0x288] sm:$0xff] %v788
          %v790 = vld [vmem:[%s624 + $0x290] sm:$0xff]
          %791 = vst [vmem:[%s625 + $0x290] sm:$0xff] %v790
          %v792 = vld [vmem:[%s624 + $0x298] sm:$0xff]
          %793 = vst [vmem:[%s625 + $0x298] sm:$0xff] %v792
          %v794 = vld [vmem:[%s624 + $0x2a0] sm:$0xff]
          %795 = vst [vmem:[%s625 + $0x2a0] sm:$0xff] %v794
          %v796 = vld [vmem:[%s624 + $0x2a8] sm:$0xff]
          %797 = vst [vmem:[%s625 + $0x2a8] sm:$0xff] %v796
          %v798 = vld [vmem:[%s624 + $0x2b0] sm:$0xff]
          %799 = vst [vmem:[%s625 + $0x2b0] sm:$0xff] %v798
          %v800 = vld [vmem:[%s624 + $0x2b8] sm:$0xff]
          %801 = vst [vmem:[%s625 + $0x2b8] sm:$0xff] %v800
          %v802 = vld [vmem:[%s624 + $0x2c0] sm:$0xff]
          %803 = vst [vmem:[%s625 + $0x2c0] sm:$0xff] %v802
          %v804 = vld [vmem:[%s624 + $0x2c8] sm:$0xff]
          %805 = vst [vmem:[%s625 + $0x2c8] sm:$0xff] %v804
          %v806 = vld [vmem:[%s624 + $0x2d0] sm:$0xff]
          %807 = vst [vmem:[%s625 + $0x2d0] sm:$0xff] %v806
          %v808 = vld [vmem:[%s624 + $0x2d8] sm:$0xff]
          %809 = vst [vmem:[%s625 + $0x2d8] sm:$0xff] %v808
          %v810 = vld [vmem:[%s624 + $0x2e0] sm:$0xff]
          %811 = vst [vmem:[%s625 + $0x2e0] sm:$0xff] %v810
          %v812 = vld [vmem:[%s624 + $0x2e8] sm:$0xff]
          %813 = vst [vmem:[%s625 + $0x2e8] sm:$0xff] %v812
          %v814 = vld [vmem:[%s624 + $0x2f0] sm:$0xff]
          %815 = vst [vmem:[%s625 + $0x2f0] sm:$0xff] %v814
          %v816 = vld [vmem:[%s624 + $0x2f8] sm:$0xff]
          %817 = vst [vmem:[%s625 + $0x2f8] sm:$0xff] %v816
          %v818 = vld [vmem:[%s624 + $0x300] sm:$0xff]
          %819 = vst [vmem:[%s625 + $0x300] sm:$0xff] %v818
          %v820 = vld [vmem:[%s624 + $0x308] sm:$0xff]
          %821 = vst [vmem:[%s625 + $0x308] sm:$0xff] %v820
          %v822 = vld [vmem:[%s624 + $0x310] sm:$0xff]
          %823 = vst [vmem:[%s625 + $0x310] sm:$0xff] %v822
          %v824 = vld [vmem:[%s624 + $0x318] sm:$0xff]
          %825 = vst [vmem:[%s625 + $0x318] sm:$0xff] %v824
          %v826 = vld [vmem:[%s624 + $0x320] sm:$0xff]
          %827 = vst [vmem:[%s625 + $0x320] sm:$0xff] %v826
          %v828 = vld [vmem:[%s624 + $0x328] sm:$0xff]
          %829 = vst [vmem:[%s625 + $0x328] sm:$0xff] %v828
          %v830 = vld [vmem:[%s624 + $0x330] sm:$0xff]
          %831 = vst [vmem:[%s625 + $0x330] sm:$0xff] %v830
          %v832 = vld [vmem:[%s624 + $0x338] sm:$0xff]
          %833 = vst [vmem:[%s625 + $0x338] sm:$0xff] %v832
          %v834 = vld [vmem:[%s624 + $0x340] sm:$0xff]
          %835 = vst [vmem:[%s625 + $0x340] sm:$0xff] %v834
          %v836 = vld [vmem:[%s624 + $0x348] sm:$0xff]
          %837 = vst [vmem:[%s625 + $0x348] sm:$0xff] %v836
          %v838 = vld [vmem:[%s624 + $0x350] sm:$0xff]
          %839 = vst [vmem:[%s625 + $0x350] sm:$0xff] %v838
          %v840 = vld [vmem:[%s624 + $0x358] sm:$0xff]
          %841 = vst [vmem:[%s625 + $0x358] sm:$0xff] %v840
          %v842 = vld [vmem:[%s624 + $0x360] sm:$0xff]
          %843 = vst [vmem:[%s625 + $0x360] sm:$0xff] %v842
          %v844 = vld [vmem:[%s624 + $0x368] sm:$0xff]
          %845 = vst [vmem:[%s625 + $0x368] sm:$0xff] %v844
          %v846 = vld [vmem:[%s624 + $0x370] sm:$0xff]
          %847 = vst [vmem:[%s625 + $0x370] sm:$0xff] %v846
          %v848 = vld [vmem:[%s624 + $0x378] sm:$0xff]
          %849 = vst [vmem:[%s625 + $0x378] sm:$0xff] %v848
          %v850 = vld [vmem:[%s624 + $0x380] sm:$0xff]
          %851 = vst [vmem:[%s625 + $0x380] sm:$0xff] %v850
          %v852 = vld [vmem:[%s624 + $0x388] sm:$0xff]
          %853 = vst [vmem:[%s625 + $0x388] sm:$0xff] %v852
          %v854 = vld [vmem:[%s624 + $0x390] sm:$0xff]
          %855 = vst [vmem:[%s625 + $0x390] sm:$0xff] %v854
          %v856 = vld [vmem:[%s624 + $0x398] sm:$0xff]
          %857 = vst [vmem:[%s625 + $0x398] sm:$0xff] %v856
          %v858 = vld [vmem:[%s624 + $0x3a0] sm:$0xff]
          %859 = vst [vmem:[%s625 + $0x3a0] sm:$0xff] %v858
          %v860 = vld [vmem:[%s624 + $0x3a8] sm:$0xff]
          %861 = vst [vmem:[%s625 + $0x3a8] sm:$0xff] %v860
          %v862 = vld [vmem:[%s624 + $0x3b0] sm:$0xff]
          %863 = vst [vmem:[%s625 + $0x3b0] sm:$0xff] %v862
          %v864 = vld [vmem:[%s624 + $0x3b8] sm:$0xff]
          %865 = vst [vmem:[%s625 + $0x3b8] sm:$0xff] %v864
          %v866 = vld [vmem:[%s624 + $0x3c0] sm:$0xff]
          %867 = vst [vmem:[%s625 + $0x3c0] sm:$0xff] %v866
          %v868 = vld [vmem:[%s624 + $0x3c8] sm:$0xff]
          %869 = vst [vmem:[%s625 + $0x3c8] sm:$0xff] %v868
          %v870 = vld [vmem:[%s624 + $0x3d0] sm:$0xff]
          %871 = vst [vmem:[%s625 + $0x3d0] sm:$0xff] %v870
          %v872 = vld [vmem:[%s624 + $0x3d8] sm:$0xff]
          %873 = vst [vmem:[%s625 + $0x3d8] sm:$0xff] %v872
          %v874 = vld [vmem:[%s624 + $0x3e0] sm:$0xff]
          %875 = vst [vmem:[%s625 + $0x3e0] sm:$0xff] %v874
          %v876 = vld [vmem:[%s624 + $0x3e8] sm:$0xff]
          %877 = vst [vmem:[%s625 + $0x3e8] sm:$0xff] %v876
          %v878 = vld [vmem:[%s624 + $0x3f0] sm:$0xff]
          %879 = vst [vmem:[%s625 + $0x3f0] sm:$0xff] %v878
          %v880 = vld [vmem:[%s624 + $0x3f8] sm:$0xff]
          %881 = vst [vmem:[%s625 + $0x3f8] sm:$0xff] %v880
          %v882 = vld [vmem:[%s624 + $0x400] sm:$0xff]
          %883 = vst [vmem:[%s625 + $0x400] sm:$0xff] %v882
          %v884 = vld [vmem:[%s624 + $0x408] sm:$0xff]
          %885 = vst [vmem:[%s625 + $0x408] sm:$0xff] %v884
          %v886 = vld [vmem:[%s624 + $0x410] sm:$0xff]
          %887 = vst [vmem:[%s625 + $0x410] sm:$0xff] %v886
          %v888 = vld [vmem:[%s624 + $0x418] sm:$0xff]
          %889 = vst [vmem:[%s625 + $0x418] sm:$0xff] %v888
          %v890 = vld [vmem:[%s624 + $0x420] sm:$0xff]
          %891 = vst [vmem:[%s625 + $0x420] sm:$0xff] %v890
          %v892 = vld [vmem:[%s624 + $0x428] sm:$0xff]
          %893 = vst [vmem:[%s625 + $0x428] sm:$0xff] %v892
          %v894 = vld [vmem:[%s624 + $0x430] sm:$0xff]
          %895 = vst [vmem:[%s625 + $0x430] sm:$0xff] %v894
          %v896 = vld [vmem:[%s624 + $0x438] sm:$0xff]
          %897 = vst [vmem:[%s625 + $0x438] sm:$0xff] %v896
          %v898 = vld [vmem:[%s624 + $0x440] sm:$0xff]
          %899 = vst [vmem:[%s625 + $0x440] sm:$0xff] %v898
          %v900 = vld [vmem:[%s624 + $0x448] sm:$0xff]
          %901 = vst [vmem:[%s625 + $0x448] sm:$0xff] %v900
          %v902 = vld [vmem:[%s624 + $0x450] sm:$0xff]
          %903 = vst [vmem:[%s625 + $0x450] sm:$0xff] %v902
          %v904 = vld [vmem:[%s624 + $0x458] sm:$0xff]
          %905 = vst [vmem:[%s625 + $0x458] sm:$0xff] %v904
          %v906 = vld [vmem:[%s624 + $0x460] sm:$0xff]
          %907 = vst [vmem:[%s625 + $0x460] sm:$0xff] %v906
          %v908 = vld [vmem:[%s624 + $0x468] sm:$0xff]
          %909 = vst [vmem:[%s625 + $0x468] sm:$0xff] %v908
          %v910 = vld [vmem:[%s624 + $0x470] sm:$0xff]
          %911 = vst [vmem:[%s625 + $0x470] sm:$0xff] %v910
          %v912 = vld [vmem:[%s624 + $0x478] sm:$0xff]
          %913 = vst [vmem:[%s625 + $0x478] sm:$0xff] %v912
          %v914 = vld [vmem:[%s624 + $0x480] sm:$0xff]
          %915 = vst [vmem:[%s625 + $0x480] sm:$0xff] %v914
          %v916 = vld [vmem:[%s624 + $0x488] sm:$0xff]
          %917 = vst [vmem:[%s625 + $0x488] sm:$0xff] %v916
          %v918 = vld [vmem:[%s624 + $0x490] sm:$0xff]
          %919 = vst [vmem:[%s625 + $0x490] sm:$0xff] %v918
          %v920 = vld [vmem:[%s624 + $0x498] sm:$0xff]
          %921 = vst [vmem:[%s625 + $0x498] sm:$0xff] %v920
          %v922 = vld [vmem:[%s624 + $0x4a0] sm:$0xff]
          %923 = vst [vmem:[%s625 + $0x4a0] sm:$0xff] %v922
          %v924 = vld [vmem:[%s624 + $0x4a8] sm:$0xff]
          %925 = vst [vmem:[%s625 + $0x4a8] sm:$0xff] %v924
          %v926 = vld [vmem:[%s624 + $0x4b0] sm:$0xff]
          %927 = vst [vmem:[%s625 + $0x4b0] sm:$0xff] %v926
          %v928 = vld [vmem:[%s624 + $0x4b8] sm:$0xff]
          %929 = vst [vmem:[%s625 + $0x4b8] sm:$0xff] %v928
          %v930 = vld [vmem:[%s624 + $0x4c0] sm:$0xff]
          %931 = vst [vmem:[%s625 + $0x4c0] sm:$0xff] %v930
          %v932 = vld [vmem:[%s624 + $0x4c8] sm:$0xff]
          %933 = vst [vmem:[%s625 + $0x4c8] sm:$0xff] %v932
          %v934 = vld [vmem:[%s624 + $0x4d0] sm:$0xff]
          %935 = vst [vmem:[%s625 + $0x4d0] sm:$0xff] %v934
          %v936 = vld [vmem:[%s624 + $0x4d8] sm:$0xff]
          %937 = vst [vmem:[%s625 + $0x4d8] sm:$0xff] %v936
          %v938 = vld [vmem:[%s624 + $0x4e0] sm:$0xff]
          %939 = vst [vmem:[%s625 + $0x4e0] sm:$0xff] %v938
          %v940 = vld [vmem:[%s624 + $0x4e8] sm:$0xff]
          %941 = vst [vmem:[%s625 + $0x4e8] sm:$0xff] %v940
          %v942 = vld [vmem:[%s624 + $0x4f0] sm:$0xff]
          %943 = vst [vmem:[%s625 + $0x4f0] sm:$0xff] %v942
          %v944 = vld [vmem:[%s624 + $0x4f8] sm:$0xff]
          %945 = vst [vmem:[%s625 + $0x4f8] sm:$0xff] %v944
          %v946 = vld [vmem:[%s624 + $0x500] sm:$0xff]
          %947 = vst [vmem:[%s625 + $0x500] sm:$0xff] %v946
          %v948 = vld [vmem:[%s624 + $0x508] sm:$0xff]
          %949 = vst [vmem:[%s625 + $0x508] sm:$0xff] %v948
          %v950 = vld [vmem:[%s624 + $0x510] sm:$0xff]
          %951 = vst [vmem:[%s625 + $0x510] sm:$0xff] %v950
          %v952 = vld [vmem:[%s624 + $0x518] sm:$0xff]
          %953 = vst [vmem:[%s625 + $0x518] sm:$0xff] %v952
          %v954 = vld [vmem:[%s624 + $0x520] sm:$0xff]
          %955 = vst [vmem:[%s625 + $0x520] sm:$0xff] %v954
          %v956 = vld [vmem:[%s624 + $0x528] sm:$0xff]
          %957 = vst [vmem:[%s625 + $0x528] sm:$0xff] %v956
          %v958 = vld [vmem:[%s624 + $0x530] sm:$0xff]
          %959 = vst [vmem:[%s625 + $0x530] sm:$0xff] %v958
          %v960 = vld [vmem:[%s624 + $0x538] sm:$0xff]
          %961 = vst [vmem:[%s625 + $0x538] sm:$0xff] %v960
          %v962 = vld [vmem:[%s624 + $0x540] sm:$0xff]
          %963 = vst [vmem:[%s625 + $0x540] sm:$0xff] %v962
          %v964 = vld [vmem:[%s624 + $0x548] sm:$0xff]
          %965 = vst [vmem:[%s625 + $0x548] sm:$0xff] %v964
          %v966 = vld [vmem:[%s624 + $0x550] sm:$0xff]
          %967 = vst [vmem:[%s625 + $0x550] sm:$0xff] %v966
          %v968 = vld [vmem:[%s624 + $0x558] sm:$0xff]
          %969 = vst [vmem:[%s625 + $0x558] sm:$0xff] %v968
          %v970 = vld [vmem:[%s624 + $0x560] sm:$0xff]
          %971 = vst [vmem:[%s625 + $0x560] sm:$0xff] %v970
          %v972 = vld [vmem:[%s624 + $0x568] sm:$0xff]
          %973 = vst [vmem:[%s625 + $0x568] sm:$0xff] %v972
          %v974 = vld [vmem:[%s624 + $0x570] sm:$0xff]
          %975 = vst [vmem:[%s625 + $0x570] sm:$0xff] %v974
          %v976 = vld [vmem:[%s624 + $0x578] sm:$0xff]
          %977 = vst [vmem:[%s625 + $0x578] sm:$0xff] %v976
          %v978 = vld [vmem:[%s624 + $0x580] sm:$0xff]
          %979 = vst [vmem:[%s625 + $0x580] sm:$0xff] %v978
          %v980 = vld [vmem:[%s624 + $0x588] sm:$0xff]
          %981 = vst [vmem:[%s625 + $0x588] sm:$0xff] %v980
          %v982 = vld [vmem:[%s624 + $0x590] sm:$0xff]
          %983 = vst [vmem:[%s625 + $0x590] sm:$0xff] %v982
          %v984 = vld [vmem:[%s624 + $0x598] sm:$0xff]
          %985 = vst [vmem:[%s625 + $0x598] sm:$0xff] %v984
          %v986 = vld [vmem:[%s624 + $0x5a0] sm:$0xff]
          %987 = vst [vmem:[%s625 + $0x5a0] sm:$0xff] %v986
          %v988 = vld [vmem:[%s624 + $0x5a8] sm:$0xff]
          %989 = vst [vmem:[%s625 + $0x5a8] sm:$0xff] %v988
          %v990 = vld [vmem:[%s624 + $0x5b0] sm:$0xff]
          %991 = vst [vmem:[%s625 + $0x5b0] sm:$0xff] %v990
          %v992 = vld [vmem:[%s624 + $0x5b8] sm:$0xff]
          %993 = vst [vmem:[%s625 + $0x5b8] sm:$0xff] %v992
          %v994 = vld [vmem:[%s624 + $0x5c0] sm:$0xff]
          %995 = vst [vmem:[%s625 + $0x5c0] sm:$0xff] %v994
          %v996 = vld [vmem:[%s624 + $0x5c8] sm:$0xff]
          %997 = vst [vmem:[%s625 + $0x5c8] sm:$0xff] %v996
          %v998 = vld [vmem:[%s624 + $0x5d0] sm:$0xff]
          %999 = vst [vmem:[%s625 + $0x5d0] sm:$0xff] %v998
          %v1000 = vld [vmem:[%s624 + $0x5d8] sm:$0xff]
          %1001 = vst [vmem:[%s625 + $0x5d8] sm:$0xff] %v1000
          %v1002 = vld [vmem:[%s624 + $0x5e0] sm:$0xff]
          %1003 = vst [vmem:[%s625 + $0x5e0] sm:$0xff] %v1002
          %v1004 = vld [vmem:[%s624 + $0x5e8] sm:$0xff]
          %1005 = vst [vmem:[%s625 + $0x5e8] sm:$0xff] %v1004
          %v1006 = vld [vmem:[%s624 + $0x5f0] sm:$0xff]
          %1007 = vst [vmem:[%s625 + $0x5f0] sm:$0xff] %v1006
          %v1008 = vld [vmem:[%s624 + $0x5f8] sm:$0xff]
          %1009 = vst [vmem:[%s625 + $0x5f8] sm:$0xff] %v1008
          %v1010 = vld [vmem:[%s624 + $0x600] sm:$0xff]
          %1011 = vst [vmem:[%s625 + $0x600] sm:$0xff] %v1010
          %v1012 = vld [vmem:[%s624 + $0x608] sm:$0xff]
          %1013 = vst [vmem:[%s625 + $0x608] sm:$0xff] %v1012
          %v1014 = vld [vmem:[%s624 + $0x610] sm:$0xff]
          %1015 = vst [vmem:[%s625 + $0x610] sm:$0xff] %v1014
          %v1016 = vld [vmem:[%s624 + $0x618] sm:$0xff]
          %1017 = vst [vmem:[%s625 + $0x618] sm:$0xff] %v1016
          %v1018 = vld [vmem:[%s624 + $0x620] sm:$0xff]
          %1019 = vst [vmem:[%s625 + $0x620] sm:$0xff] %v1018
          %v1020 = vld [vmem:[%s624 + $0x628] sm:$0xff]
          %1021 = vst [vmem:[%s625 + $0x628] sm:$0xff] %v1020
          %v1022 = vld [vmem:[%s624 + $0x630] sm:$0xff]
          %1023 = vst [vmem:[%s625 + $0x630] sm:$0xff] %v1022
          %v1024 = vld [vmem:[%s624 + $0x638] sm:$0xff]
          %1025 = vst [vmem:[%s625 + $0x638] sm:$0xff] %v1024
          %v1026 = vld [vmem:[%s624 + $0x640] sm:$0xff]
          %1027 = vst [vmem:[%s625 + $0x640] sm:$0xff] %v1026
          %v1028 = vld [vmem:[%s624 + $0x648] sm:$0xff]
          %1029 = vst [vmem:[%s625 + $0x648] sm:$0xff] %v1028
          %v1030 = vld [vmem:[%s624 + $0x650] sm:$0xff]
          %1031 = vst [vmem:[%s625 + $0x650] sm:$0xff] %v1030
          %v1032 = vld [vmem:[%s624 + $0x658] sm:$0xff]
          %1033 = vst [vmem:[%s625 + $0x658] sm:$0xff] %v1032
          %v1034 = vld [vmem:[%s624 + $0x660] sm:$0xff]
          %1035 = vst [vmem:[%s625 + $0x660] sm:$0xff] %v1034
          %v1036 = vld [vmem:[%s624 + $0x668] sm:$0xff]
          %1037 = vst [vmem:[%s625 + $0x668] sm:$0xff] %v1036
          %v1038 = vld [vmem:[%s624 + $0x670] sm:$0xff]
          %1039 = vst [vmem:[%s625 + $0x670] sm:$0xff] %v1038
          %v1040 = vld [vmem:[%s624 + $0x678] sm:$0xff]
          %1041 = vst [vmem:[%s625 + $0x678] sm:$0xff] %v1040
          %v1042 = vld [vmem:[%s624 + $0x680] sm:$0xff]
          %1043 = vst [vmem:[%s625 + $0x680] sm:$0xff] %v1042
          %v1044 = vld [vmem:[%s624 + $0x688] sm:$0xff]
          %1045 = vst [vmem:[%s625 + $0x688] sm:$0xff] %v1044
          %v1046 = vld [vmem:[%s624 + $0x690] sm:$0xff]
          %1047 = vst [vmem:[%s625 + $0x690] sm:$0xff] %v1046
          %v1048 = vld [vmem:[%s624 + $0x698] sm:$0xff]
          %1049 = vst [vmem:[%s625 + $0x698] sm:$0xff] %v1048
          %v1050 = vld [vmem:[%s624 + $0x6a0] sm:$0xff]
          %1051 = vst [vmem:[%s625 + $0x6a0] sm:$0xff] %v1050
          %v1052 = vld [vmem:[%s624 + $0x6a8] sm:$0xff]
          %1053 = vst [vmem:[%s625 + $0x6a8] sm:$0xff] %v1052
          %v1054 = vld [vmem:[%s624 + $0x6b0] sm:$0xff]
          %1055 = vst [vmem:[%s625 + $0x6b0] sm:$0xff] %v1054
          %v1056 = vld [vmem:[%s624 + $0x6b8] sm:$0xff]
          %1057 = vst [vmem:[%s625 + $0x6b8] sm:$0xff] %v1056
          %v1058 = vld [vmem:[%s624 + $0x6c0] sm:$0xff]
          %1059 = vst [vmem:[%s625 + $0x6c0] sm:$0xff] %v1058
          %v1060 = vld [vmem:[%s624 + $0x6c8] sm:$0xff]
          %1061 = vst [vmem:[%s625 + $0x6c8] sm:$0xff] %v1060
          %v1062 = vld [vmem:[%s624 + $0x6d0] sm:$0xff]
          %1063 = vst [vmem:[%s625 + $0x6d0] sm:$0xff] %v1062
          %v1064 = vld [vmem:[%s624 + $0x6d8] sm:$0xff]
          %1065 = vst [vmem:[%s625 + $0x6d8] sm:$0xff] %v1064
          %v1066 = vld [vmem:[%s624 + $0x6e0] sm:$0xff]
          %1067 = vst [vmem:[%s625 + $0x6e0] sm:$0xff] %v1066
          %v1068 = vld [vmem:[%s624 + $0x6e8] sm:$0xff]
          %1069 = vst [vmem:[%s625 + $0x6e8] sm:$0xff] %v1068
          %v1070 = vld [vmem:[%s624 + $0x6f0] sm:$0xff]
          %1071 = vst [vmem:[%s625 + $0x6f0] sm:$0xff] %v1070
          %v1072 = vld [vmem:[%s624 + $0x6f8] sm:$0xff]
          %1073 = vst [vmem:[%s625 + $0x6f8] sm:$0xff] %v1072
        $region129: #{tpu_custom_call.1} parent=123 // loop_footer
          %s623 = sadd.s32 1, %s619
        $region130: #{tpu_custom_call.1} parent=123 // loop_footer_branch
          %618 = sbr.rel target = $region126
        $region131: #{tpu_custom_call.1} parent=123 // loop_exit
          _
      $region124: #{tpu_custom_call.1} parent=108 // pred_fallthru
        _
      %p1074 = pneg %p614
      // Predicated region
      $region132: #{tpu_custom_call.1} parent=108 // pred_check
        _
      $region133: #{tpu_custom_call.1} parent=108 // pred_check_branch
        %1076 = sbr.rel (%p614) target = $region135
      $region134: #{tpu_custom_call.1} parent=108 // pred_region
        %s1077 = sand.u32 1792, 7
      $region135: #{tpu_custom_call.1} parent=108 // pred_fallthru
        _
    $region109: #{tpu_custom_call.1} parent=1 // pred_fallthru
      _
    // Predicated region
    $region110: #{tpu_custom_call.1} parent=1 // pred_check
      %p599 = pneg %p595
    $region111: #{tpu_custom_call.1} parent=1 // pred_check_branch
      %601 = sbr.rel (%p599) target = $region113
    $region112: #{tpu_custom_call.1} parent=1 // pred_region
      %s602 = sshllo.u32 0, 1792
      loop: start=0, step=1, limit=1
      $region114: #{tpu_custom_call.1} parent=112 // loop_pre_header
        _
      $region115: #{tpu_custom_call.1} parent=112 // loop_header
        %s604 = sphi 0, %s608
        %p605 = scmp.ge.s32.totalorder %s604, 1
        %s609 = sphi %s9, %s9
        %s610 = sphi [#allocation4], [#allocation4]
      $region116: #{tpu_custom_call.1} parent=112 // loop_header_branch
        %607 = sbr.rel (%p605) target = $region120
      $region117: #{tpu_custom_call.1} parent=112 // loop_body
        %v611 = vld [vmem:[%s609] sm:%s602]
        %612 = vst [vmem:[%s610] sm:%s602] %v611
      $region118: #{tpu_custom_call.1} parent=112 // loop_footer
        %s608 = sadd.s32 1, %s604
      $region119: #{tpu_custom_call.1} parent=112 // loop_footer_branch
        %603 = sbr.rel target = $region115
      $region120: #{tpu_custom_call.1} parent=112 // loop_exit
        _
    $region113: #{tpu_custom_call.1} parent=1 // pred_fallthru
      _
    // Predicated region
    $region136: #{tpu_custom_call.1} parent=1 // pred_check
      _
    $region137: #{tpu_custom_call.1} parent=1 // pred_check_branch
      %1080 = sbr.rel (0) target = $region139
    $region138: #{tpu_custom_call.1} parent=1 // pred_region
      %1081 = vsyncadd %s593, 28672
    $region139: #{tpu_custom_call.1} parent=1 // pred_fallthru
      _
    %v1082 = vld [vmem:[#allocation2] sm:$0xff]
    %v1083 = vld [vmem:[#allocation2 + $0x8] sm:$0xff]
    %v1084 = vld [vmem:[#allocation2 + $0x10] sm:$0xff]
    %v1085 = vld [vmem:[#allocation2 + $0x18] sm:$0xff]
    %v1086 = vld [vmem:[#allocation2 + $0x20] sm:$0xff]
    %v1087 = vld [vmem:[#allocation2 + $0x28] sm:$0xff]
    %v1088 = vld [vmem:[#allocation2 + $0x30] sm:$0xff]
    %v1089 = vld [vmem:[#allocation2 + $0x38] sm:$0xff]
    %v1090 = vld [vmem:[#allocation2 + $0x40] sm:$0xff]
    %v1091 = vld [vmem:[#allocation2 + $0x48] sm:$0xff]
    %v1092 = vld [vmem:[#allocation2 + $0x50] sm:$0xff]
    %v1093 = vld [vmem:[#allocation2 + $0x58] sm:$0xff]
    %v1094 = vld [vmem:[#allocation2 + $0x60] sm:$0xff]
    %v1095 = vld [vmem:[#allocation2 + $0x68] sm:$0xff]
    %v1096 = vld [vmem:[#allocation2 + $0x70] sm:$0xff]
    %v1097 = vld [vmem:[#allocation2 + $0x78] sm:$0xff]
    %v1098 = vld [vmem:[#allocation2 + $0x80] sm:$0xff]
    %v1099 = vld [vmem:[#allocation2 + $0x88] sm:$0xff]
    %v1100 = vld [vmem:[#allocation2 + $0x90] sm:$0xff]
    %v1101 = vld [vmem:[#allocation2 + $0x98] sm:$0xff]
    %v1102 = vld [vmem:[#allocation2 + $0xa0] sm:$0xff]
    %v1103 = vld [vmem:[#allocation2 + $0xa8] sm:$0xff]
    %v1104 = vld [vmem:[#allocation2 + $0xb0] sm:$0xff]
    %v1105 = vld [vmem:[#allocation2 + $0xb8] sm:$0xff]
    %v1106 = vld [vmem:[#allocation2 + $0xc0] sm:$0xff]
    %v1107 = vld [vmem:[#allocation2 + $0xc8] sm:$0xff]
    %v1108 = vld [vmem:[#allocation2 + $0xd0] sm:$0xff]
    %v1109 = vld [vmem:[#allocation2 + $0xd8] sm:$0xff]
    %v1110 = vld [vmem:[#allocation2 + $0xe0] sm:$0xff]
    %v1111 = vld [vmem:[#allocation2 + $0xe8] sm:$0xff]
    %v1112 = vld [vmem:[#allocation2 + $0xf0] sm:$0xff]
    %v1113 = vld [vmem:[#allocation2 + $0xf8] sm:$0xff]
    %v1114 = vunpack.c.l.s8.bf16 %v1082
    %v1115 = vunpack.c.l.s8.bf16 %v1083
    %v1116 = vunpack.c.l.s8.bf16 %v1084
    %v1117 = vunpack.c.l.s8.bf16 %v1085
    %v1118 = vunpack.c.h.s8.bf16 %v1082
    %v1119 = vunpack.c.h.s8.bf16 %v1083
    %v1120 = vunpack.c.h.s8.bf16 %v1084
    %v1121 = vunpack.c.h.s8.bf16 %v1085
    %v1122 = vunpack.c.l.s8.bf16 %v1086
    %v1123 = vunpack.c.l.s8.bf16 %v1087
    %v1124 = vunpack.c.l.s8.bf16 %v1088
    %v1125 = vunpack.c.l.s8.bf16 %v1089
    %v1126 = vunpack.c.h.s8.bf16 %v1086
    %v1127 = vunpack.c.h.s8.bf16 %v1087
    %v1128 = vunpack.c.h.s8.bf16 %v1088
    %v1129 = vunpack.c.h.s8.bf16 %v1089
    %v1130 = vunpack.c.l.s8.bf16 %v1090
    %v1131 = vunpack.c.l.s8.bf16 %v1091
    %v1132 = vunpack.c.l.s8.bf16 %v1092
    %v1133 = vunpack.c.l.s8.bf16 %v1093
    %v1134 = vunpack.c.h.s8.bf16 %v1090
    %v1135 = vunpack.c.h.s8.bf16 %v1091
    %v1136 = vunpack.c.h.s8.bf16 %v1092
    %v1137 = vunpack.c.h.s8.bf16 %v1093
    %v1138 = vunpack.c.l.s8.bf16 %v1094
    %v1139 = vunpack.c.l.s8.bf16 %v1095
    %v1140 = vunpack.c.l.s8.bf16 %v1096
    %v1141 = vunpack.c.l.s8.bf16 %v1097
    %v1142 = vunpack.c.h.s8.bf16 %v1094
    %v1143 = vunpack.c.h.s8.bf16 %v1095
    %v1144 = vunpack.c.h.s8.bf16 %v1096
    %v1145 = vunpack.c.h.s8.bf16 %v1097
    %v1146 = vunpack.c.l.s8.bf16 %v1098
    %v1147 = vunpack.c.l.s8.bf16 %v1099
    %v1148 = vunpack.c.l.s8.bf16 %v1100
    %v1149 = vunpack.c.l.s8.bf16 %v1101
    %v1150 = vunpack.c.h.s8.bf16 %v1098
    %v1151 = vunpack.c.h.s8.bf16 %v1099
    %v1152 = vunpack.c.h.s8.bf16 %v1100
    %v1153 = vunpack.c.h.s8.bf16 %v1101
    %v1154 = vunpack.c.l.s8.bf16 %v1102
    %v1155 = vunpack.c.l.s8.bf16 %v1103
    %v1156 = vunpack.c.l.s8.bf16 %v1104
    %v1157 = vunpack.c.l.s8.bf16 %v1105
    %v1158 = vunpack.c.h.s8.bf16 %v1102
    %v1159 = vunpack.c.h.s8.bf16 %v1103
    %v1160 = vunpack.c.h.s8.bf16 %v1104
    %v1161 = vunpack.c.h.s8.bf16 %v1105
    %v1162 = vunpack.c.l.s8.bf16 %v1106
    %v1163 = vunpack.c.l.s8.bf16 %v1107
    %v1164 = vunpack.c.l.s8.bf16 %v1108
    %v1165 = vunpack.c.l.s8.bf16 %v1109
    %v1166 = vunpack.c.h.s8.bf16 %v1106
    %v1167 = vunpack.c.h.s8.bf16 %v1107
    %v1168 = vunpack.c.h.s8.bf16 %v1108
    %v1169 = vunpack.c.h.s8.bf16 %v1109
    %v1170 = vunpack.c.l.s8.bf16 %v1110
    %v1171 = vunpack.c.l.s8.bf16 %v1111
    %v1172 = vunpack.c.l.s8.bf16 %v1112
    %v1173 = vunpack.c.l.s8.bf16 %v1113
    %v1174 = vunpack.c.h.s8.bf16 %v1110
    %v1175 = vunpack.c.h.s8.bf16 %v1111
    %v1176 = vunpack.c.h.s8.bf16 %v1112
    %v1177 = vunpack.c.h.s8.bf16 %v1113
    %v1178 = vpack.c.bf16 %v587, %v585
    %v1179 = vpack.c.bf16 %v588, %v586
    %1180 = vmatprep.subr.bf16.mxu0 %v1115
    %1181 = vmatpush1.bf16.msra.mxu0 %v1114
    %1182 = vmatprep.subr.bf16.mxu0 %v1119
    %1183 = vmatpush1.bf16.msra.mxu0 %v1118
    %1184 = vmatprep.subr.bf16.mxu0 %v1123
    %1185 = vmatpush1.bf16.msra.mxu0 %v1122
    %1186 = vmatprep.subr.bf16.mxu0 %v1127
    %1187 = vmatpush1.bf16.msra.mxu0 %v1126
    %1188 = vmatprep.subr.bf16.mxu0 %v1131
    %1189 = vmatpush1.bf16.msra.mxu0 %v1130
    %1190 = vmatprep.subr.bf16.mxu0 %v1135
    %1191 = vmatpush1.bf16.msra.mxu0 %v1134
    %1192 = vmatprep.subr.bf16.mxu0 %v1139
    %1193 = vmatpush1.bf16.msra.mxu0 %v1138
    %1194 = vmatprep.subr.bf16.mxu0 %v1143
    %1195 = vmatpush1.bf16.msra.mxu0 %v1142
    %1196 = vmatprep.subr.bf16.mxu0 %v1147
    %1197 = vmatpush1.bf16.msra.mxu0 %v1146
    %1198 = vmatprep.subr.bf16.mxu0 %v1151
    %1199 = vmatpush1.bf16.msra.mxu0 %v1150
    %1200 = vmatprep.subr.bf16.mxu0 %v1155
    %1201 = vmatpush1.bf16.msra.mxu0 %v1154
    %1202 = vmatprep.subr.bf16.mxu0 %v1159
    %1203 = vmatpush1.bf16.msra.mxu0 %v1158
    %1204 = vmatprep.subr.bf16.mxu0 %v1163
    %1205 = vmatpush1.bf16.msra.mxu0 %v1162
    %1206 = vmatprep.subr.bf16.mxu0 %v1167
    %1207 = vmatpush1.bf16.msra.mxu0 %v1166
    %1208 = vmatprep.subr.bf16.mxu0 %v1171
    %1209 = vmatpush1.bf16.msra.mxu0 %v1170
    %1210 = vmatprep.subr.bf16.mxu0 %v1175
    %1211 = vmatpush1.bf16.msra.mxu0 %v1174
    %1212 = vmatprep.mubr.bf16.mxu0 %v1179
    %1213 = vmatmul.mubr.bf16.gmra.mrb[0].mxu0 %v1178
    %v1214 = vpop.f32.mrb[0].mxu0
    %v1215 = vadd.f32 0.0, %v1214
    %v1216 = vpop.f32.mrb[0].mxu0
    %v1217 = vadd.f32 0.0, %v1216
    %v1218 = vpop.f32.mrb[0].mxu0
    %v1219 = vadd.f32 0.0, %v1218
    %v1220 = vpop.f32.mrb[0].mxu0
    %v1221 = vadd.f32 0.0, %v1220
    %1222 = vdwg.mxu0
    %1223 = vmatprep.subr.bf16.mxu0 %v1117
    %1224 = vmatpush1.bf16.msra.mxu0 %v1116
    %1225 = vmatprep.subr.bf16.mxu0 %v1121
    %1226 = vmatpush1.bf16.msra.mxu0 %v1120
    %1227 = vmatprep.subr.bf16.mxu0 %v1125
    %1228 = vmatpush1.bf16.msra.mxu0 %v1124
    %1229 = vmatprep.subr.bf16.mxu0 %v1129
    %1230 = vmatpush1.bf16.msra.mxu0 %v1128
    %1231 = vmatprep.subr.bf16.mxu0 %v1133
    %1232 = vmatpush1.bf16.msra.mxu0 %v1132
    %1233 = vmatprep.subr.bf16.mxu0 %v1137
    %1234 = vmatpush1.bf16.msra.mxu0 %v1136
    %1235 = vmatprep.subr.bf16.mxu0 %v1141
    %1236 = vmatpush1.bf16.msra.mxu0 %v1140
    %1237 = vmatprep.subr.bf16.mxu0 %v1145
    %1238 = vmatpush1.bf16.msra.mxu0 %v1144
    %1239 = vmatprep.subr.bf16.mxu0 %v1149
    %1240 = vmatpush1.bf16.msra.mxu0 %v1148
    %1241 = vmatprep.subr.bf16.mxu0 %v1153
    %1242 = vmatpush1.bf16.msra.mxu0 %v1152
    %1243 = vmatprep.subr.bf16.mxu0 %v1157
    %1244 = vmatpush1.bf16.msra.mxu0 %v1156
    %1245 = vmatprep.subr.bf16.mxu0 %v1161
    %1246 = vmatpush1.bf16.msra.mxu0 %v1160
    %1247 = vmatprep.subr.bf16.mxu0 %v1165
    %1248 = vmatpush1.bf16.msra.mxu0 %v1164
    %1249 = vmatprep.subr.bf16.mxu0 %v1169
    %1250 = vmatpush1.bf16.msra.mxu0 %v1168
    %1251 = vmatprep.subr.bf16.mxu0 %v1173
    %1252 = vmatpush1.bf16.msra.mxu0 %v1172
    %1253 = vmatprep.subr.bf16.mxu0 %v1177
    %1254 = vmatpush1.bf16.msra.mxu0 %v1176
    %1255 = vmatprep.mubr.bf16.mxu0 %v1179
    %1256 = vmatmul.mubr.bf16.gmra.mrb[0].mxu0 %v1178
    %v1257 = vpop.f32.mrb[0].mxu0
    %v1258 = vadd.f32 0.0, %v1257
    %v1259 = vpop.f32.mrb[0].mxu0
    %v1260 = vadd.f32 0.0, %v1259
    %v1261 = vpop.f32.mrb[0].mxu0
    %v1262 = vadd.f32 0.0, %v1261
    %v1263 = vpop.f32.mrb[0].mxu0
    %v1264 = vadd.f32 0.0, %v1263
    %1265 = vdwg.mxu0
    %v1266 = vld [vmem:[%s4] sm:$0xf]
    %v1268 = vlaneseq
    %v1269 = vshrl.u32 %v1268, 7
    %v1270 = vsub.s32 0, %v1269
    %v1271 = vrot.slane %v1266, %v1270
    %v1272 = vlaneseq
    %v1273 = vshrl.u32 %v1272, 7
    %v1274 = vsub.s32 1, %v1273
    %v1275 = vrot.slane %v1266, %v1274
    %v1276 = vlaneseq
    %v1277 = vshrl.u32 %v1276, 7
    %v1278 = vsub.s32 2, %v1277
    %v1279 = vrot.slane %v1266, %v1278
    %v1280 = vlaneseq
    %v1281 = vshrl.u32 %v1280, 7
    %v1282 = vsub.s32 3, %v1281
    %v1283 = vrot.slane %v1266, %v1282
    %v1288 = vmul.f32 %v1215, %v1271
    %v1289 = vmul.f32 %v1217, %v1275
    %v1290 = vmul.f32 %v1258, %v1279
    %v1291 = vmul.f32 %v1260, %v1283
    %v1292 = vmul.f32 %v1219, %v1271
    %v1293 = vmul.f32 %v1221, %v1275
    %v1294 = vmul.f32 %v1262, %v1279
    %v1295 = vmul.f32 %v1264, %v1283
    %v1296 = vld [vmem:[%s5] sm:$0xf]
    %v1298 = vlaneseq
    %v1299 = vshrl.u32 %v1298, 7
    %v1300 = vsub.s32 0, %v1299
    %v1301 = vrot.slane %v1296, %v1300
    %v1302 = vlaneseq
    %v1303 = vshrl.u32 %v1302, 7
    %v1304 = vsub.s32 1, %v1303
    %v1305 = vrot.slane %v1296, %v1304
    %v1306 = vlaneseq
    %v1307 = vshrl.u32 %v1306, 7
    %v1308 = vsub.s32 2, %v1307
    %v1309 = vrot.slane %v1296, %v1308
    %v1310 = vlaneseq
    %v1311 = vshrl.u32 %v1310, 7
    %v1312 = vsub.s32 3, %v1311
    %v1313 = vrot.slane %v1296, %v1312
    %v1318 = vadd.f32 %v1288, %v1301
    %v1319 = vadd.f32 %v1289, %v1305
    %v1320 = vadd.f32 %v1290, %v1309
    %v1321 = vadd.f32 %v1291, %v1313
    %v1322 = vadd.f32 %v1292, %v1301
    %v1323 = vadd.f32 %v1293, %v1305
    %v1324 = vadd.f32 %v1294, %v1309
    %v1325 = vadd.f32 %v1295, %v1313
    %v1326 = vmax.f32 %v1318, 0.0
    %v1327 = vmax.f32 %v1319, 0.0
    %v1328 = vmax.f32 %v1320, 0.0
    %v1329 = vmax.f32 %v1321, 0.0
    %v1330 = vmax.f32 %v1322, 0.0
    %v1331 = vmax.f32 %v1323, 0.0
    %v1332 = vmax.f32 %v1324, 0.0
    %v1333 = vmax.f32 %v1325, 0.0
    %s1334 = smul.u32 2, 64
    %s1335 = smul.u32 %s1334, 8
    %s1336 = sshll.u32 %s1335, 4
    %1337 = dma.done %s141, %s1336
    %v1338 = vld [vmem:[#allocation3] sm:$0xff]
    %v1339 = vld [vmem:[#allocation3 + $0x8] sm:$0xff]
    %v1340 = vld [vmem:[#allocation3 + $0x10] sm:$0xff]
    %v1341 = vld [vmem:[#allocation3 + $0x18] sm:$0xff]
    %v1342 = vld [vmem:[#allocation3 + $0x20] sm:$0xff]
    %v1343 = vld [vmem:[#allocation3 + $0x28] sm:$0xff]
    %v1344 = vld [vmem:[#allocation3 + $0x30] sm:$0xff]
    %v1345 = vld [vmem:[#allocation3 + $0x38] sm:$0xff]
    %v1346 = vld [vmem:[#allocation3 + $0x40] sm:$0xff]
    %v1347 = vld [vmem:[#allocation3 + $0x48] sm:$0xff]
    %v1348 = vld [vmem:[#allocation3 + $0x50] sm:$0xff]
    %v1349 = vld [vmem:[#allocation3 + $0x58] sm:$0xff]
    %v1350 = vld [vmem:[#allocation3 + $0x60] sm:$0xff]
    %v1351 = vld [vmem:[#allocation3 + $0x68] sm:$0xff]
    %v1352 = vld [vmem:[#allocation3 + $0x70] sm:$0xff]
    %v1353 = vld [vmem:[#allocation3 + $0x78] sm:$0xff]
    %v1354 = vld [vmem:[#allocation3 + $0x80] sm:$0xff]
    %v1355 = vld [vmem:[#allocation3 + $0x88] sm:$0xff]
    %v1356 = vld [vmem:[#allocation3 + $0x90] sm:$0xff]
    %v1357 = vld [vmem:[#allocation3 + $0x98] sm:$0xff]
    %v1358 = vld [vmem:[#allocation3 + $0xa0] sm:$0xff]
    %v1359 = vld [vmem:[#allocation3 + $0xa8] sm:$0xff]
    %v1360 = vld [vmem:[#allocation3 + $0xb0] sm:$0xff]
    %v1361 = vld [vmem:[#allocation3 + $0xb8] sm:$0xff]
    %v1362 = vld [vmem:[#allocation3 + $0xc0] sm:$0xff]
    %v1363 = vld [vmem:[#allocation3 + $0xc8] sm:$0xff]
    %v1364 = vld [vmem:[#allocation3 + $0xd0] sm:$0xff]
    %v1365 = vld [vmem:[#allocation3 + $0xd8] sm:$0xff]
    %v1366 = vld [vmem:[#allocation3 + $0xe0] sm:$0xff]
    %v1367 = vld [vmem:[#allocation3 + $0xe8] sm:$0xff]
    %v1368 = vld [vmem:[#allocation3 + $0xf0] sm:$0xff]
    %v1369 = vld [vmem:[#allocation3 + $0xf8] sm:$0xff]
    %v1370 = vld [vmem:[#allocation3 + $0x100] sm:$0xff]
    %v1371 = vld [vmem:[#allocation3 + $0x108] sm:$0xff]
    %v1372 = vld [vmem:[#allocation3 + $0x110] sm:$0xff]
    %v1373 = vld [vmem:[#allocation3 + $0x118] sm:$0xff]
    %v1374 = vld [vmem:[#allocation3 + $0x120] sm:$0xff]
    %v1375 = vld [vmem:[#allocation3 + $0x128] sm:$0xff]
    %v1376 = vld [vmem:[#allocation3 + $0x130] sm:$0xff]
    %v1377 = vld [vmem:[#allocation3 + $0x138] sm:$0xff]
    %v1378 = vld [vmem:[#allocation3 + $0x140] sm:$0xff]
    %v1379 = vld [vmem:[#allocation3 + $0x148] sm:$0xff]
    %v1380 = vld [vmem:[#allocation3 + $0x150] sm:$0xff]
    %v1381 = vld [vmem:[#allocation3 + $0x158] sm:$0xff]
    %v1382 = vld [vmem:[#allocation3 + $0x160] sm:$0xff]
    %v1383 = vld [vmem:[#allocation3 + $0x168] sm:$0xff]
    %v1384 = vld [vmem:[#allocation3 + $0x170] sm:$0xff]
    %v1385 = vld [vmem:[#allocation3 + $0x178] sm:$0xff]
    %v1386 = vld [vmem:[#allocation3 + $0x180] sm:$0xff]
    %v1387 = vld [vmem:[#allocation3 + $0x188] sm:$0xff]
    %v1388 = vld [vmem:[#allocation3 + $0x190] sm:$0xff]
    %v1389 = vld [vmem:[#allocation3 + $0x198] sm:$0xff]
    %v1390 = vld [vmem:[#allocation3 + $0x1a0] sm:$0xff]
    %v1391 = vld [vmem:[#allocation3 + $0x1a8] sm:$0xff]
    %v1392 = vld [vmem:[#allocation3 + $0x1b0] sm:$0xff]
    %v1393 = vld [vmem:[#allocation3 + $0x1b8] sm:$0xff]
    %v1394 = vld [vmem:[#allocation3 + $0x1c0] sm:$0xff]
    %v1395 = vld [vmem:[#allocation3 + $0x1c8] sm:$0xff]
    %v1396 = vld [vmem:[#allocation3 + $0x1d0] sm:$0xff]
    %v1397 = vld [vmem:[#allocation3 + $0x1d8] sm:$0xff]
    %v1398 = vld [vmem:[#allocation3 + $0x1e0] sm:$0xff]
    %v1399 = vld [vmem:[#allocation3 + $0x1e8] sm:$0xff]
    %v1400 = vld [vmem:[#allocation3 + $0x1f0] sm:$0xff]
    %v1401 = vld [vmem:[#allocation3 + $0x1f8] sm:$0xff]
    %v1402 = vld [vmem:[#allocation3 + $0x200] sm:$0xff]
    %v1403 = vld [vmem:[#allocation3 + $0x208] sm:$0xff]
    %v1404 = vld [vmem:[#allocation3 + $0x210] sm:$0xff]
    %v1405 = vld [vmem:[#allocation3 + $0x218] sm:$0xff]
    %v1406 = vld [vmem:[#allocation3 + $0x220] sm:$0xff]
    %v1407 = vld [vmem:[#allocation3 + $0x228] sm:$0xff]
    %v1408 = vld [vmem:[#allocation3 + $0x230] sm:$0xff]
    %v1409 = vld [vmem:[#allocation3 + $0x238] sm:$0xff]
    %v1410 = vld [vmem:[#allocation3 + $0x240] sm:$0xff]
    %v1411 = vld [vmem:[#allocation3 + $0x248] sm:$0xff]
    %v1412 = vld [vmem:[#allocation3 + $0x250] sm:$0xff]
    %v1413 = vld [vmem:[#allocation3 + $0x258] sm:$0xff]
    %v1414 = vld [vmem:[#allocation3 + $0x260] sm:$0xff]
    %v1415 = vld [vmem:[#allocation3 + $0x268] sm:$0xff]
    %v1416 = vld [vmem:[#allocation3 + $0x270] sm:$0xff]
    %v1417 = vld [vmem:[#allocation3 + $0x278] sm:$0xff]
    %v1418 = vld [vmem:[#allocation3 + $0x280] sm:$0xff]
    %v1419 = vld [vmem:[#allocation3 + $0x288] sm:$0xff]
    %v1420 = vld [vmem:[#allocation3 + $0x290] sm:$0xff]
    %v1421 = vld [vmem:[#allocation3 + $0x298] sm:$0xff]
    %v1422 = vld [vmem:[#allocation3 + $0x2a0] sm:$0xff]
    %v1423 = vld [vmem:[#allocation3 + $0x2a8] sm:$0xff]
    %v1424 = vld [vmem:[#allocation3 + $0x2b0] sm:$0xff]
    %v1425 = vld [vmem:[#allocation3 + $0x2b8] sm:$0xff]
    %v1426 = vld [vmem:[#allocation3 + $0x2c0] sm:$0xff]
    %v1427 = vld [vmem:[#allocation3 + $0x2c8] sm:$0xff]
    %v1428 = vld [vmem:[#allocation3 + $0x2d0] sm:$0xff]
    %v1429 = vld [vmem:[#allocation3 + $0x2d8] sm:$0xff]
    %v1430 = vld [vmem:[#allocation3 + $0x2e0] sm:$0xff]
    %v1431 = vld [vmem:[#allocation3 + $0x2e8] sm:$0xff]
    %v1432 = vld [vmem:[#allocation3 + $0x2f0] sm:$0xff]
    %v1433 = vld [vmem:[#allocation3 + $0x2f8] sm:$0xff]
    %v1434 = vld [vmem:[#allocation3 + $0x300] sm:$0xff]
    %v1435 = vld [vmem:[#allocation3 + $0x308] sm:$0xff]
    %v1436 = vld [vmem:[#allocation3 + $0x310] sm:$0xff]
    %v1437 = vld [vmem:[#allocation3 + $0x318] sm:$0xff]
    %v1438 = vld [vmem:[#allocation3 + $0x320] sm:$0xff]
    %v1439 = vld [vmem:[#allocation3 + $0x328] sm:$0xff]
    %v1440 = vld [vmem:[#allocation3 + $0x330] sm:$0xff]
    %v1441 = vld [vmem:[#allocation3 + $0x338] sm:$0xff]
    %v1442 = vld [vmem:[#allocation3 + $0x340] sm:$0xff]
    %v1443 = vld [vmem:[#allocation3 + $0x348] sm:$0xff]
    %v1444 = vld [vmem:[#allocation3 + $0x350] sm:$0xff]
    %v1445 = vld [vmem:[#allocation3 + $0x358] sm:$0xff]
    %v1446 = vld [vmem:[#allocation3 + $0x360] sm:$0xff]
    %v1447 = vld [vmem:[#allocation3 + $0x368] sm:$0xff]
    %v1448 = vld [vmem:[#allocation3 + $0x370] sm:$0xff]
    %v1449 = vld [vmem:[#allocation3 + $0x378] sm:$0xff]
    %v1450 = vld [vmem:[#allocation3 + $0x380] sm:$0xff]
    %v1451 = vld [vmem:[#allocation3 + $0x388] sm:$0xff]
    %v1452 = vld [vmem:[#allocation3 + $0x390] sm:$0xff]
    %v1453 = vld [vmem:[#allocation3 + $0x398] sm:$0xff]
    %v1454 = vld [vmem:[#allocation3 + $0x3a0] sm:$0xff]
    %v1455 = vld [vmem:[#allocation3 + $0x3a8] sm:$0xff]
    %v1456 = vld [vmem:[#allocation3 + $0x3b0] sm:$0xff]
    %v1457 = vld [vmem:[#allocation3 + $0x3b8] sm:$0xff]
    %v1458 = vld [vmem:[#allocation3 + $0x3c0] sm:$0xff]
    %v1459 = vld [vmem:[#allocation3 + $0x3c8] sm:$0xff]
    %v1460 = vld [vmem:[#allocation3 + $0x3d0] sm:$0xff]
    %v1461 = vld [vmem:[#allocation3 + $0x3d8] sm:$0xff]
    %v1462 = vld [vmem:[#allocation3 + $0x3e0] sm:$0xff]
    %v1463 = vld [vmem:[#allocation3 + $0x3e8] sm:$0xff]
    %v1464 = vld [vmem:[#allocation3 + $0x3f0] sm:$0xff]
    %v1465 = vld [vmem:[#allocation3 + $0x3f8] sm:$0xff]
    %v1466 = vunpack.c.l.s8.bf16 %v1338
    %v1467 = vunpack.c.l.s8.bf16 %v1339
    %v1468 = vunpack.c.l.s8.bf16 %v1340
    %v1469 = vunpack.c.l.s8.bf16 %v1341
    %v1470 = vunpack.c.l.s8.bf16 %v1342
    %v1471 = vunpack.c.l.s8.bf16 %v1343
    %v1472 = vunpack.c.l.s8.bf16 %v1344
    %v1473 = vunpack.c.l.s8.bf16 %v1345
    %v1474 = vunpack.c.h.s8.bf16 %v1338
    %v1475 = vunpack.c.h.s8.bf16 %v1339
    %v1476 = vunpack.c.h.s8.bf16 %v1340
    %v1477 = vunpack.c.h.s8.bf16 %v1341
    %v1478 = vunpack.c.h.s8.bf16 %v1342
    %v1479 = vunpack.c.h.s8.bf16 %v1343
    %v1480 = vunpack.c.h.s8.bf16 %v1344
    %v1481 = vunpack.c.h.s8.bf16 %v1345
    %v1482 = vunpack.c.l.s8.bf16 %v1346
    %v1483 = vunpack.c.l.s8.bf16 %v1347
    %v1484 = vunpack.c.l.s8.bf16 %v1348
    %v1485 = vunpack.c.l.s8.bf16 %v1349
    %v1486 = vunpack.c.l.s8.bf16 %v1350
    %v1487 = vunpack.c.l.s8.bf16 %v1351
    %v1488 = vunpack.c.l.s8.bf16 %v1352
    %v1489 = vunpack.c.l.s8.bf16 %v1353
    %v1490 = vunpack.c.h.s8.bf16 %v1346
    %v1491 = vunpack.c.h.s8.bf16 %v1347
    %v1492 = vunpack.c.h.s8.bf16 %v1348
    %v1493 = vunpack.c.h.s8.bf16 %v1349
    %v1494 = vunpack.c.h.s8.bf16 %v1350
    %v1495 = vunpack.c.h.s8.bf16 %v1351
    %v1496 = vunpack.c.h.s8.bf16 %v1352
    %v1497 = vunpack.c.h.s8.bf16 %v1353
    %v1498 = vunpack.c.l.s8.bf16 %v1354
    %v1499 = vunpack.c.l.s8.bf16 %v1355
    %v1500 = vunpack.c.l.s8.bf16 %v1356
    %v1501 = vunpack.c.l.s8.bf16 %v1357
    %v1502 = vunpack.c.l.s8.bf16 %v1358
    %v1503 = vunpack.c.l.s8.bf16 %v1359
    %v1504 = vunpack.c.l.s8.bf16 %v1360
    %v1505 = vunpack.c.l.s8.bf16 %v1361
    %v1506 = vunpack.c.h.s8.bf16 %v1354
    %v1507 = vunpack.c.h.s8.bf16 %v1355
    %v1508 = vunpack.c.h.s8.bf16 %v1356
    %v1509 = vunpack.c.h.s8.bf16 %v1357
    %v1510 = vunpack.c.h.s8.bf16 %v1358
    %v1511 = vunpack.c.h.s8.bf16 %v1359
    %v1512 = vunpack.c.h.s8.bf16 %v1360
    %v1513 = vunpack.c.h.s8.bf16 %v1361
    %v1514 = vunpack.c.l.s8.bf16 %v1362
    %v1515 = vunpack.c.l.s8.bf16 %v1363
    %v1516 = vunpack.c.l.s8.bf16 %v1364
    %v1517 = vunpack.c.l.s8.bf16 %v1365
    %v1518 = vunpack.c.l.s8.bf16 %v1366
    %v1519 = vunpack.c.l.s8.bf16 %v1367
    %v1520 = vunpack.c.l.s8.bf16 %v1368
    %v1521 = vunpack.c.l.s8.bf16 %v1369
    %v1522 = vunpack.c.h.s8.bf16 %v1362
    %v1523 = vunpack.c.h.s8.bf16 %v1363
    %v1524 = vunpack.c.h.s8.bf16 %v1364
    %v1525 = vunpack.c.h.s8.bf16 %v1365
    %v1526 = vunpack.c.h.s8.bf16 %v1366
    %v1527 = vunpack.c.h.s8.bf16 %v1367
    %v1528 = vunpack.c.h.s8.bf16 %v1368
    %v1529 = vunpack.c.h.s8.bf16 %v1369
    %v1530 = vunpack.c.l.s8.bf16 %v1370
    %v1531 = vunpack.c.l.s8.bf16 %v1371
    %v1532 = vunpack.c.l.s8.bf16 %v1372
    %v1533 = vunpack.c.l.s8.bf16 %v1373
    %v1534 = vunpack.c.l.s8.bf16 %v1374
    %v1535 = vunpack.c.l.s8.bf16 %v1375
    %v1536 = vunpack.c.l.s8.bf16 %v1376
    %v1537 = vunpack.c.l.s8.bf16 %v1377
    %v1538 = vunpack.c.h.s8.bf16 %v1370
    %v1539 = vunpack.c.h.s8.bf16 %v1371
    %v1540 = vunpack.c.h.s8.bf16 %v1372
    %v1541 = vunpack.c.h.s8.bf16 %v1373
    %v1542 = vunpack.c.h.s8.bf16 %v1374
    %v1543 = vunpack.c.h.s8.bf16 %v1375
    %v1544 = vunpack.c.h.s8.bf16 %v1376
    %v1545 = vunpack.c.h.s8.bf16 %v1377
    %v1546 = vunpack.c.l.s8.bf16 %v1378
    %v1547 = vunpack.c.l.s8.bf16 %v1379
    %v1548 = vunpack.c.l.s8.bf16 %v1380
    %v1549 = vunpack.c.l.s8.bf16 %v1381
    %v1550 = vunpack.c.l.s8.bf16 %v1382
    %v1551 = vunpack.c.l.s8.bf16 %v1383
    %v1552 = vunpack.c.l.s8.bf16 %v1384
    %v1553 = vunpack.c.l.s8.bf16 %v1385
    %v1554 = vunpack.c.h.s8.bf16 %v1378
    %v1555 = vunpack.c.h.s8.bf16 %v1379
    %v1556 = vunpack.c.h.s8.bf16 %v1380
    %v1557 = vunpack.c.h.s8.bf16 %v1381
    %v1558 = vunpack.c.h.s8.bf16 %v1382
    %v1559 = vunpack.c.h.s8.bf16 %v1383
    %v1560 = vunpack.c.h.s8.bf16 %v1384
    %v1561 = vunpack.c.h.s8.bf16 %v1385
    %v1562 = vunpack.c.l.s8.bf16 %v1386
    %v1563 = vunpack.c.l.s8.bf16 %v1387
    %v1564 = vunpack.c.l.s8.bf16 %v1388
    %v1565 = vunpack.c.l.s8.bf16 %v1389
    %v1566 = vunpack.c.l.s8.bf16 %v1390
    %v1567 = vunpack.c.l.s8.bf16 %v1391
    %v1568 = vunpack.c.l.s8.bf16 %v1392
    %v1569 = vunpack.c.l.s8.bf16 %v1393
    %v1570 = vunpack.c.h.s8.bf16 %v1386
    %v1571 = vunpack.c.h.s8.bf16 %v1387
    %v1572 = vunpack.c.h.s8.bf16 %v1388
    %v1573 = vunpack.c.h.s8.bf16 %v1389
    %v1574 = vunpack.c.h.s8.bf16 %v1390
    %v1575 = vunpack.c.h.s8.bf16 %v1391
    %v1576 = vunpack.c.h.s8.bf16 %v1392
    %v1577 = vunpack.c.h.s8.bf16 %v1393
    %v1578 = vunpack.c.l.s8.bf16 %v1394
    %v1579 = vunpack.c.l.s8.bf16 %v1395
    %v1580 = vunpack.c.l.s8.bf16 %v1396
    %v1581 = vunpack.c.l.s8.bf16 %v1397
    %v1582 = vunpack.c.l.s8.bf16 %v1398
    %v1583 = vunpack.c.l.s8.bf16 %v1399
    %v1584 = vunpack.c.l.s8.bf16 %v1400
    %v1585 = vunpack.c.l.s8.bf16 %v1401
    %v1586 = vunpack.c.h.s8.bf16 %v1394
    %v1587 = vunpack.c.h.s8.bf16 %v1395
    %v1588 = vunpack.c.h.s8.bf16 %v1396
    %v1589 = vunpack.c.h.s8.bf16 %v1397
    %v1590 = vunpack.c.h.s8.bf16 %v1398
    %v1591 = vunpack.c.h.s8.bf16 %v1399
    %v1592 = vunpack.c.h.s8.bf16 %v1400
    %v1593 = vunpack.c.h.s8.bf16 %v1401
    %v1594 = vunpack.c.l.s8.bf16 %v1402
    %v1595 = vunpack.c.l.s8.bf16 %v1403
    %v1596 = vunpack.c.l.s8.bf16 %v1404
    %v1597 = vunpack.c.l.s8.bf16 %v1405
    %v1598 = vunpack.c.l.s8.bf16 %v1406
    %v1599 = vunpack.c.l.s8.bf16 %v1407
    %v1600 = vunpack.c.l.s8.bf16 %v1408
    %v1601 = vunpack.c.l.s8.bf16 %v1409
    %v1602 = vunpack.c.h.s8.bf16 %v1402
    %v1603 = vunpack.c.h.s8.bf16 %v1403
    %v1604 = vunpack.c.h.s8.bf16 %v1404
    %v1605 = vunpack.c.h.s8.bf16 %v1405
    %v1606 = vunpack.c.h.s8.bf16 %v1406
    %v1607 = vunpack.c.h.s8.bf16 %v1407
    %v1608 = vunpack.c.h.s8.bf16 %v1408
    %v1609 = vunpack.c.h.s8.bf16 %v1409
    %v1610 = vunpack.c.l.s8.bf16 %v1410
    %v1611 = vunpack.c.l.s8.bf16 %v1411
    %v1612 = vunpack.c.l.s8.bf16 %v1412
    %v1613 = vunpack.c.l.s8.bf16 %v1413
    %v1614 = vunpack.c.l.s8.bf16 %v1414
    %v1615 = vunpack.c.l.s8.bf16 %v1415
    %v1616 = vunpack.c.l.s8.bf16 %v1416
    %v1617 = vunpack.c.l.s8.bf16 %v1417
    %v1618 = vunpack.c.h.s8.bf16 %v1410
    %v1619 = vunpack.c.h.s8.bf16 %v1411
    %v1620 = vunpack.c.h.s8.bf16 %v1412
    %v1621 = vunpack.c.h.s8.bf16 %v1413
    %v1622 = vunpack.c.h.s8.bf16 %v1414
    %v1623 = vunpack.c.h.s8.bf16 %v1415
    %v1624 = vunpack.c.h.s8.bf16 %v1416
    %v1625 = vunpack.c.h.s8.bf16 %v1417
    %v1626 = vunpack.c.l.s8.bf16 %v1418
    %v1627 = vunpack.c.l.s8.bf16 %v1419
    %v1628 = vunpack.c.l.s8.bf16 %v1420
    %v1629 = vunpack.c.l.s8.bf16 %v1421
    %v1630 = vunpack.c.l.s8.bf16 %v1422
    %v1631 = vunpack.c.l.s8.bf16 %v1423
    %v1632 = vunpack.c.l.s8.bf16 %v1424
    %v1633 = vunpack.c.l.s8.bf16 %v1425
    %v1634 = vunpack.c.h.s8.bf16 %v1418
    %v1635 = vunpack.c.h.s8.bf16 %v1419
    %v1636 = vunpack.c.h.s8.bf16 %v1420
    %v1637 = vunpack.c.h.s8.bf16 %v1421
    %v1638 = vunpack.c.h.s8.bf16 %v1422
    %v1639 = vunpack.c.h.s8.bf16 %v1423
    %v1640 = vunpack.c.h.s8.bf16 %v1424
    %v1641 = vunpack.c.h.s8.bf16 %v1425
    %v1642 = vunpack.c.l.s8.bf16 %v1426
    %v1643 = vunpack.c.l.s8.bf16 %v1427
    %v1644 = vunpack.c.l.s8.bf16 %v1428
    %v1645 = vunpack.c.l.s8.bf16 %v1429
    %v1646 = vunpack.c.l.s8.bf16 %v1430
    %v1647 = vunpack.c.l.s8.bf16 %v1431
    %v1648 = vunpack.c.l.s8.bf16 %v1432
    %v1649 = vunpack.c.l.s8.bf16 %v1433
    %v1650 = vunpack.c.h.s8.bf16 %v1426
    %v1651 = vunpack.c.h.s8.bf16 %v1427
    %v1652 = vunpack.c.h.s8.bf16 %v1428
    %v1653 = vunpack.c.h.s8.bf16 %v1429
    %v1654 = vunpack.c.h.s8.bf16 %v1430
    %v1655 = vunpack.c.h.s8.bf16 %v1431
    %v1656 = vunpack.c.h.s8.bf16 %v1432
    %v1657 = vunpack.c.h.s8.bf16 %v1433
    %v1658 = vunpack.c.l.s8.bf16 %v1434
    %v1659 = vunpack.c.l.s8.bf16 %v1435
    %v1660 = vunpack.c.l.s8.bf16 %v1436
    %v1661 = vunpack.c.l.s8.bf16 %v1437
    %v1662 = vunpack.c.l.s8.bf16 %v1438
    %v1663 = vunpack.c.l.s8.bf16 %v1439
    %v1664 = vunpack.c.l.s8.bf16 %v1440
    %v1665 = vunpack.c.l.s8.bf16 %v1441
    %v1666 = vunpack.c.h.s8.bf16 %v1434
    %v1667 = vunpack.c.h.s8.bf16 %v1435
    %v1668 = vunpack.c.h.s8.bf16 %v1436
    %v1669 = vunpack.c.h.s8.bf16 %v1437
    %v1670 = vunpack.c.h.s8.bf16 %v1438
    %v1671 = vunpack.c.h.s8.bf16 %v1439
    %v1672 = vunpack.c.h.s8.bf16 %v1440
    %v1673 = vunpack.c.h.s8.bf16 %v1441
    %v1674 = vunpack.c.l.s8.bf16 %v1442
    %v1675 = vunpack.c.l.s8.bf16 %v1443
    %v1676 = vunpack.c.l.s8.bf16 %v1444
    %v1677 = vunpack.c.l.s8.bf16 %v1445
    %v1678 = vunpack.c.l.s8.bf16 %v1446
    %v1679 = vunpack.c.l.s8.bf16 %v1447
    %v1680 = vunpack.c.l.s8.bf16 %v1448
    %v1681 = vunpack.c.l.s8.bf16 %v1449
    %v1682 = vunpack.c.h.s8.bf16 %v1442
    %v1683 = vunpack.c.h.s8.bf16 %v1443
    %v1684 = vunpack.c.h.s8.bf16 %v1444
    %v1685 = vunpack.c.h.s8.bf16 %v1445
    %v1686 = vunpack.c.h.s8.bf16 %v1446
    %v1687 = vunpack.c.h.s8.bf16 %v1447
    %v1688 = vunpack.c.h.s8.bf16 %v1448
    %v1689 = vunpack.c.h.s8.bf16 %v1449
    %v1690 = vunpack.c.l.s8.bf16 %v1450
    %v1691 = vunpack.c.l.s8.bf16 %v1451
    %v1692 = vunpack.c.l.s8.bf16 %v1452
    %v1693 = vunpack.c.l.s8.bf16 %v1453
    %v1694 = vunpack.c.l.s8.bf16 %v1454
    %v1695 = vunpack.c.l.s8.bf16 %v1455
    %v1696 = vunpack.c.l.s8.bf16 %v1456
    %v1697 = vunpack.c.l.s8.bf16 %v1457
    %v1698 = vunpack.c.h.s8.bf16 %v1450
    %v1699 = vunpack.c.h.s8.bf16 %v1451
    %v1700 = vunpack.c.h.s8.bf16 %v1452
    %v1701 = vunpack.c.h.s8.bf16 %v1453
    %v1702 = vunpack.c.h.s8.bf16 %v1454
    %v1703 = vunpack.c.h.s8.bf16 %v1455
    %v1704 = vunpack.c.h.s8.bf16 %v1456
    %v1705 = vunpack.c.h.s8.bf16 %v1457
    %v1706 = vunpack.c.l.s8.bf16 %v1458
    %v1707 = vunpack.c.l.s8.bf16 %v1459
    %v1708 = vunpack.c.l.s8.bf16 %v1460
    %v1709 = vunpack.c.l.s8.bf16 %v1461
    %v1710 = vunpack.c.l.s8.bf16 %v1462
    %v1711 = vunpack.c.l.s8.bf16 %v1463
    %v1712 = vunpack.c.l.s8.bf16 %v1464
    %v1713 = vunpack.c.l.s8.bf16 %v1465
    %v1714 = vunpack.c.h.s8.bf16 %v1458
    %v1715 = vunpack.c.h.s8.bf16 %v1459
    %v1716 = vunpack.c.h.s8.bf16 %v1460
    %v1717 = vunpack.c.h.s8.bf16 %v1461
    %v1718 = vunpack.c.h.s8.bf16 %v1462
    %v1719 = vunpack.c.h.s8.bf16 %v1463
    %v1720 = vunpack.c.h.s8.bf16 %v1464
    %v1721 = vunpack.c.h.s8.bf16 %v1465
    %v1722 = vpack.c.bf16 %v1330, %v1326
    %v1723 = vpack.c.bf16 %v1331, %v1327
    %v1724 = vpack.c.bf16 %v1332, %v1328
    %v1725 = vpack.c.bf16 %v1333, %v1329
    %1726 = vmatprep.subr.bf16.mxu0 %v1467
    %1727 = vmatpush1.bf16.msra.mxu0 %v1466
    %1728 = vmatprep.subr.bf16.mxu0 %v1475
    %1729 = vmatpush1.bf16.msra.mxu0 %v1474
    %1730 = vmatprep.subr.bf16.mxu0 %v1483
    %1731 = vmatpush1.bf16.msra.mxu0 %v1482
    %1732 = vmatprep.subr.bf16.mxu0 %v1491
    %1733 = vmatpush1.bf16.msra.mxu0 %v1490
    %1734 = vmatprep.subr.bf16.mxu0 %v1499
    %1735 = vmatpush1.bf16.msra.mxu0 %v1498
    %1736 = vmatprep.subr.bf16.mxu0 %v1507
    %1737 = vmatpush1.bf16.msra.mxu0 %v1506
    %1738 = vmatprep.subr.bf16.mxu0 %v1515
    %1739 = vmatpush1.bf16.msra.mxu0 %v1514
    %1740 = vmatprep.subr.bf16.mxu0 %v1523
    %1741 = vmatpush1.bf16.msra.mxu0 %v1522
    %1742 = vmatprep.subr.bf16.mxu0 %v1531
    %1743 = vmatpush1.bf16.msra.mxu0 %v1530
    %1744 = vmatprep.subr.bf16.mxu0 %v1539
    %1745 = vmatpush1.bf16.msra.mxu0 %v1538
    %1746 = vmatprep.subr.bf16.mxu0 %v1547
    %1747 = vmatpush1.bf16.msra.mxu0 %v1546
    %1748 = vmatprep.subr.bf16.mxu0 %v1555
    %1749 = vmatpush1.bf16.msra.mxu0 %v1554
    %1750 = vmatprep.subr.bf16.mxu0 %v1563
    %1751 = vmatpush1.bf16.msra.mxu0 %v1562
    %1752 = vmatprep.subr.bf16.mxu0 %v1571
    %1753 = vmatpush1.bf16.msra.mxu0 %v1570
    %1754 = vmatprep.subr.bf16.mxu0 %v1579
    %1755 = vmatpush1.bf16.msra.mxu0 %v1578
    %1756 = vmatprep.subr.bf16.mxu0 %v1587
    %1757 = vmatpush1.bf16.msra.mxu0 %v1586
    %1758 = vmatprep.mubr.bf16.mxu0 %v1723
    %1759 = vmatmul.mubr.bf16.gmra.mrb[0].mxu0 %v1722
    %v1760 = vpop.f32.mrb[0].mxu0
    %v1761 = vadd.f32 0.0, %v1760
    %v1762 = vpop.f32.mrb[0].mxu0
    %v1763 = vadd.f32 0.0, %v1762
    %v1764 = vpop.f32.mrb[0].mxu0
    %v1765 = vadd.f32 0.0, %v1764
    %v1766 = vpop.f32.mrb[0].mxu0
    %v1767 = vadd.f32 0.0, %v1766
    %1768 = vdwg.mxu0
    %1769 = vmatprep.subr.bf16.mxu0 %v1595
    %1770 = vmatpush1.bf16.msra.mxu0 %v1594
    %1771 = vmatprep.subr.bf16.mxu0 %v1603
    %1772 = vmatpush1.bf16.msra.mxu0 %v1602
    %1773 = vmatprep.subr.bf16.mxu0 %v1611
    %1774 = vmatpush1.bf16.msra.mxu0 %v1610
    %1775 = vmatprep.subr.bf16.mxu0 %v1619
    %1776 = vmatpush1.bf16.msra.mxu0 %v1618
    %1777 = vmatprep.subr.bf16.mxu0 %v1627
    %1778 = vmatpush1.bf16.msra.mxu0 %v1626
    %1779 = vmatprep.subr.bf16.mxu0 %v1635
    %1780 = vmatpush1.bf16.msra.mxu0 %v1634
    %1781 = vmatprep.subr.bf16.mxu0 %v1643
    %1782 = vmatpush1.bf16.msra.mxu0 %v1642
    %1783 = vmatprep.subr.bf16.mxu0 %v1651
    %1784 = vmatpush1.bf16.msra.mxu0 %v1650
    %1785 = vmatprep.subr.bf16.mxu0 %v1659
    %1786 = vmatpush1.bf16.msra.mxu0 %v1658
    %1787 = vmatprep.subr.bf16.mxu0 %v1667
    %1788 = vmatpush1.bf16.msra.mxu0 %v1666
    %1789 = vmatprep.subr.bf16.mxu0 %v1675
    %1790 = vmatpush1.bf16.msra.mxu0 %v1674
    %1791 = vmatprep.subr.bf16.mxu0 %v1683
    %1792 = vmatpush1.bf16.msra.mxu0 %v1682
    %1793 = vmatprep.subr.bf16.mxu0 %v1691
    %1794 = vmatpush1.bf16.msra.mxu0 %v1690
    %1795 = vmatprep.subr.bf16.mxu0 %v1699
    %1796 = vmatpush1.bf16.msra.mxu0 %v1698
    %1797 = vmatprep.subr.bf16.mxu0 %v1707
    %1798 = vmatpush1.bf16.msra.mxu0 %v1706
    %1799 = vmatprep.subr.bf16.mxu0 %v1715
    %1800 = vmatpush1.bf16.msra.mxu0 %v1714
    %1801 = vmatprep.mubr.bf16.mxu0 %v1725
    %1802 = vmatmul.mubr.bf16.gmra.mrb[0].mxu0 %v1724
    %v1803 = vpop.f32.mrb[0].mxu0
    %v1804 = vadd.f32 %v1761, %v1803
    %v1805 = vpop.f32.mrb[0].mxu0
    %v1806 = vadd.f32 %v1763, %v1805
    %v1807 = vpop.f32.mrb[0].mxu0
    %v1808 = vadd.f32 %v1765, %v1807
    %v1809 = vpop.f32.mrb[0].mxu0
    %v1810 = vadd.f32 %v1767, %v1809
    %1811 = vdwg.mxu0
    %1812 = vmatprep.subr.bf16.mxu0 %v1469
    %1813 = vmatpush1.bf16.msra.mxu0 %v1468
    %1814 = vmatprep.subr.bf16.mxu0 %v1477
    %1815 = vmatpush1.bf16.msra.mxu0 %v1476
    %1816 = vmatprep.subr.bf16.mxu0 %v1485
    %1817 = vmatpush1.bf16.msra.mxu0 %v1484
    %1818 = vmatprep.subr.bf16.mxu0 %v1493
    %1819 = vmatpush1.bf16.msra.mxu0 %v1492
    %1820 = vmatprep.subr.bf16.mxu0 %v1501
    %1821 = vmatpush1.bf16.msra.mxu0 %v1500
    %1822 = vmatprep.subr.bf16.mxu0 %v1509
    %1823 = vmatpush1.bf16.msra.mxu0 %v1508
    %1824 = vmatprep.subr.bf16.mxu0 %v1517
    %1825 = vmatpush1.bf16.msra.mxu0 %v1516
    %1826 = vmatprep.subr.bf16.mxu0 %v1525
    %1827 = vmatpush1.bf16.msra.mxu0 %v1524
    %1828 = vmatprep.subr.bf16.mxu0 %v1533
    %1829 = vmatpush1.bf16.msra.mxu0 %v1532
    %1830 = vmatprep.subr.bf16.mxu0 %v1541
    %1831 = vmatpush1.bf16.msra.mxu0 %v1540
    %1832 = vmatprep.subr.bf16.mxu0 %v1549
    %1833 = vmatpush1.bf16.msra.mxu0 %v1548
    %1834 = vmatprep.subr.bf16.mxu0 %v1557
    %1835 = vmatpush1.bf16.msra.mxu0 %v1556
    %1836 = vmatprep.subr.bf16.mxu0 %v1565
    %1837 = vmatpush1.bf16.msra.mxu0 %v1564
    %1838 = vmatprep.subr.bf16.mxu0 %v1573
    %1839 = vmatpush1.bf16.msra.mxu0 %v1572
    %1840 = vmatprep.subr.bf16.mxu0 %v1581
    %1841 = vmatpush1.bf16.msra.mxu0 %v1580
    %1842 = vmatprep.subr.bf16.mxu0 %v1589
    %1843 = vmatpush1.bf16.msra.mxu0 %v1588
    %1844 = vmatprep.mubr.bf16.mxu0 %v1723
    %1845 = vmatmul.mubr.bf16.gmra.mrb[0].mxu0 %v1722
    %v1846 = vpop.f32.mrb[0].mxu0
    %v1847 = vadd.f32 0.0, %v1846
    %v1848 = vpop.f32.mrb[0].mxu0
    %v1849 = vadd.f32 0.0, %v1848
    %v1850 = vpop.f32.mrb[0].mxu0
    %v1851 = vadd.f32 0.0, %v1850
    %v1852 = vpop.f32.mrb[0].mxu0
    %v1853 = vadd.f32 0.0, %v1852
    %1854 = vdwg.mxu0
    %1855 = vmatprep.subr.bf16.mxu0 %v1597
    %1856 = vmatpush1.bf16.msra.mxu0 %v1596
    %1857 = vmatprep.subr.bf16.mxu0 %v1605
    %1858 = vmatpush1.bf16.msra.mxu0 %v1604
    %1859 = vmatprep.subr.bf16.mxu0 %v1613
    %1860 = vmatpush1.bf16.msra.mxu0 %v1612
    %1861 = vmatprep.subr.bf16.mxu0 %v1621
    %1862 = vmatpush1.bf16.msra.mxu0 %v1620
    %1863 = vmatprep.subr.bf16.mxu0 %v1629
    %1864 = vmatpush1.bf16.msra.mxu0 %v1628
    %1865 = vmatprep.subr.bf16.mxu0 %v1637
    %1866 = vmatpush1.bf16.msra.mxu0 %v1636
    %1867 = vmatprep.subr.bf16.mxu0 %v1645
    %1868 = vmatpush1.bf16.msra.mxu0 %v1644
    %1869 = vmatprep.subr.bf16.mxu0 %v1653
    %1870 = vmatpush1.bf16.msra.mxu0 %v1652
    %1871 = vmatprep.subr.bf16.mxu0 %v1661
    %1872 = vmatpush1.bf16.msra.mxu0 %v1660
    %1873 = vmatprep.subr.bf16.mxu0 %v1669
    %1874 = vmatpush1.bf16.msra.mxu0 %v1668
    %1875 = vmatprep.subr.bf16.mxu0 %v1677
    %1876 = vmatpush1.bf16.msra.mxu0 %v1676
    %1877 = vmatprep.subr.bf16.mxu0 %v1685
    %1878 = vmatpush1.bf16.msra.mxu0 %v1684
    %1879 = vmatprep.subr.bf16.mxu0 %v1693
    %1880 = vmatpush1.bf16.msra.mxu0 %v1692
    %1881 = vmatprep.subr.bf16.mxu0 %v1701
    %1882 = vmatpush1.bf16.msra.mxu0 %v1700
    %1883 = vmatprep.subr.bf16.mxu0 %v1709
    %1884 = vmatpush1.bf16.msra.mxu0 %v1708
    %1885 = vmatprep.subr.bf16.mxu0 %v1717
    %1886 = vmatpush1.bf16.msra.mxu0 %v1716
    %1887 = vmatprep.mubr.bf16.mxu0 %v1725
    %1888 = vmatmul.mubr.bf16.gmra.mrb[0].mxu0 %v1724
    %v1889 = vpop.f32.mrb[0].mxu0
    %v1890 = vadd.f32 %v1847, %v1889
    %v1891 = vpop.f32.mrb[0].mxu0
    %v1892 = vadd.f32 %v1849, %v1891
    %v1893 = vpop.f32.mrb[0].mxu0
    %v1894 = vadd.f32 %v1851, %v1893
    %v1895 = vpop.f32.mrb[0].mxu0
    %v1896 = vadd.f32 %v1853, %v1895
    %1897 = vdwg.mxu0
    %1898 = vmatprep.subr.bf16.mxu0 %v1471
    %1899 = vmatpush1.bf16.msra.mxu0 %v1470
    %1900 = vmatprep.subr.bf16.mxu0 %v1479
    %1901 = vmatpush1.bf16.msra.mxu0 %v1478
    %1902 = vmatprep.subr.bf16.mxu0 %v1487
    %1903 = vmatpush1.bf16.msra.mxu0 %v1486
    %1904 = vmatprep.subr.bf16.mxu0 %v1495
    %1905 = vmatpush1.bf16.msra.mxu0 %v1494
    %1906 = vmatprep.subr.bf16.mxu0 %v1503
    %1907 = vmatpush1.bf16.msra.mxu0 %v1502
    %1908 = vmatprep.subr.bf16.mxu0 %v1511
    %1909 = vmatpush1.bf16.msra.mxu0 %v1510
    %1910 = vmatprep.subr.bf16.mxu0 %v1519
    %1911 = vmatpush1.bf16.msra.mxu0 %v1518
    %1912 = vmatprep.subr.bf16.mxu0 %v1527
    %1913 = vmatpush1.bf16.msra.mxu0 %v1526
    %1914 = vmatprep.subr.bf16.mxu0 %v1535
    %1915 = vmatpush1.bf16.msra.mxu0 %v1534
    %1916 = vmatprep.subr.bf16.mxu0 %v1543
    %1917 = vmatpush1.bf16.msra.mxu0 %v1542
    %1918 = vmatprep.subr.bf16.mxu0 %v1551
    %1919 = vmatpush1.bf16.msra.mxu0 %v1550
    %1920 = vmatprep.subr.bf16.mxu0 %v1559
    %1921 = vmatpush1.bf16.msra.mxu0 %v1558
    %1922 = vmatprep.subr.bf16.mxu0 %v1567
    %1923 = vmatpush1.bf16.msra.mxu0 %v1566
    %1924 = vmatprep.subr.bf16.mxu0 %v1575
    %1925 = vmatpush1.bf16.msra.mxu0 %v1574
    %1926 = vmatprep.subr.bf16.mxu0 %v1583
    %1927 = vmatpush1.bf16.msra.mxu0 %v1582
    %1928 = vmatprep.subr.bf16.mxu0 %v1591
    %1929 = vmatpush1.bf16.msra.mxu0 %v1590
    %1930 = vmatprep.mubr.bf16.mxu0 %v1723
    %1931 = vmatmul.mubr.bf16.gmra.mrb[0].mxu0 %v1722
    %v1932 = vpop.f32.mrb[0].mxu0
    %v1933 = vadd.f32 0.0, %v1932
    %v1934 = vpop.f32.mrb[0].mxu0
    %v1935 = vadd.f32 0.0, %v1934
    %v1936 = vpop.f32.mrb[0].mxu0
    %v1937 = vadd.f32 0.0, %v1936
    %v1938 = vpop.f32.mrb[0].mxu0
    %v1939 = vadd.f32 0.0, %v1938
    %1940 = vdwg.mxu0
    %1941 = vmatprep.subr.bf16.mxu0 %v1599
    %1942 = vmatpush1.bf16.msra.mxu0 %v1598
    %1943 = vmatprep.subr.bf16.mxu0 %v1607
    %1944 = vmatpush1.bf16.msra.mxu0 %v1606
    %1945 = vmatprep.subr.bf16.mxu0 %v1615
    %1946 = vmatpush1.bf16.msra.mxu0 %v1614
    %1947 = vmatprep.subr.bf16.mxu0 %v1623
    %1948 = vmatpush1.bf16.msra.mxu0 %v1622
    %1949 = vmatprep.subr.bf16.mxu0 %v1631
    %1950 = vmatpush1.bf16.msra.mxu0 %v1630
    %1951 = vmatprep.subr.bf16.mxu0 %v1639
    %1952 = vmatpush1.bf16.msra.mxu0 %v1638
    %1953 = vmatprep.subr.bf16.mxu0 %v1647
    %1954 = vmatpush1.bf16.msra.mxu0 %v1646
    %1955 = vmatprep.subr.bf16.mxu0 %v1655
    %1956 = vmatpush1.bf16.msra.mxu0 %v1654
    %1957 = vmatprep.subr.bf16.mxu0 %v1663
    %1958 = vmatpush1.bf16.msra.mxu0 %v1662
    %1959 = vmatprep.subr.bf16.mxu0 %v1671
    %1960 = vmatpush1.bf16.msra.mxu0 %v1670
    %1961 = vmatprep.subr.bf16.mxu0 %v1679
    %1962 = vmatpush1.bf16.msra.mxu0 %v1678
    %1963 = vmatprep.subr.bf16.mxu0 %v1687
    %1964 = vmatpush1.bf16.msra.mxu0 %v1686
    %1965 = vmatprep.subr.bf16.mxu0 %v1695
    %1966 = vmatpush1.bf16.msra.mxu0 %v1694
    %1967 = vmatprep.subr.bf16.mxu0 %v1703
    %1968 = vmatpush1.bf16.msra.mxu0 %v1702
    %1969 = vmatprep.subr.bf16.mxu0 %v1711
    %1970 = vmatpush1.bf16.msra.mxu0 %v1710
    %1971 = vmatprep.subr.bf16.mxu0 %v1719
    %1972 = vmatpush1.bf16.msra.mxu0 %v1718
    %1973 = vmatprep.mubr.bf16.mxu0 %v1725
    %1974 = vmatmul.mubr.bf16.gmra.mrb[0].mxu0 %v1724
    %v1975 = vpop.f32.mrb[0].mxu0
    %v1976 = vadd.f32 %v1933, %v1975
    %v1977 = vpop.f32.mrb[0].mxu0
    %v1978 = vadd.f32 %v1935, %v1977
    %v1979 = vpop.f32.mrb[0].mxu0
    %v1980 = vadd.f32 %v1937, %v1979
    %v1981 = vpop.f32.mrb[0].mxu0
    %v1982 = vadd.f32 %v1939, %v1981
    %1983 = vdwg.mxu0
    %1984 = vmatprep.subr.bf16.mxu0 %v1473
    %1985 = vmatpush1.bf16.msra.mxu0 %v1472
    %1986 = vmatprep.subr.bf16.mxu0 %v1481
    %1987 = vmatpush1.bf16.msra.mxu0 %v1480
    %1988 = vmatprep.subr.bf16.mxu0 %v1489
    %1989 = vmatpush1.bf16.msra.mxu0 %v1488
    %1990 = vmatprep.subr.bf16.mxu0 %v1497
    %1991 = vmatpush1.bf16.msra.mxu0 %v1496
    %1992 = vmatprep.subr.bf16.mxu0 %v1505
    %1993 = vmatpush1.bf16.msra.mxu0 %v1504
    %1994 = vmatprep.subr.bf16.mxu0 %v1513
    %1995 = vmatpush1.bf16.msra.mxu0 %v1512
    %1996 = vmatprep.subr.bf16.mxu0 %v1521
    %1997 = vmatpush1.bf16.msra.mxu0 %v1520
    %1998 = vmatprep.subr.bf16.mxu0 %v1529
    %1999 = vmatpush1.bf16.msra.mxu0 %v1528
    %2000 = vmatprep.subr.bf16.mxu0 %v1537
    %2001 = vmatpush1.bf16.msra.mxu0 %v1536
    %2002 = vmatprep.subr.bf16.mxu0 %v1545
    %2003 = vmatpush1.bf16.msra.mxu0 %v1544
    %2004 = vmatprep.subr.bf16.mxu0 %v1553
    %2005 = vmatpush1.bf16.msra.mxu0 %v1552
    %2006 = vmatprep.subr.bf16.mxu0 %v1561
    %2007 = vmatpush1.bf16.msra.mxu0 %v1560
    %2008 = vmatprep.subr.bf16.mxu0 %v1569
    %2009 = vmatpush1.bf16.msra.mxu0 %v1568
    %2010 = vmatprep.subr.bf16.mxu0 %v1577
    %2011 = vmatpush1.bf16.msra.mxu0 %v1576
    %2012 = vmatprep.subr.bf16.mxu0 %v1585
    %2013 = vmatpush1.bf16.msra.mxu0 %v1584
    %2014 = vmatprep.subr.bf16.mxu0 %v1593
    %2015 = vmatpush1.bf16.msra.mxu0 %v1592
    %2016 = vmatprep.mubr.bf16.mxu0 %v1723
    %2017 = vmatmul.mubr.bf16.gmra.mrb[0].mxu0 %v1722
    %v2018 = vpop.f32.mrb[0].mxu0
    %v2019 = vadd.f32 0.0, %v2018
    %v2020 = vpop.f32.mrb[0].mxu0
    %v2021 = vadd.f32 0.0, %v2020
    %v2022 = vpop.f32.mrb[0].mxu0
    %v2023 = vadd.f32 0.0, %v2022
    %v2024 = vpop.f32.mrb[0].mxu0
    %v2025 = vadd.f32 0.0, %v2024
    %2026 = vdwg.mxu0
    %2027 = vmatprep.subr.bf16.mxu0 %v1601
    %2028 = vmatpush1.bf16.msra.mxu0 %v1600
    %2029 = vmatprep.subr.bf16.mxu0 %v1609
    %2030 = vmatpush1.bf16.msra.mxu0 %v1608
    %2031 = vmatprep.subr.bf16.mxu0 %v1617
    %2032 = vmatpush1.bf16.msra.mxu0 %v1616
    %2033 = vmatprep.subr.bf16.mxu0 %v1625
    %2034 = vmatpush1.bf16.msra.mxu0 %v1624
    %2035 = vmatprep.subr.bf16.mxu0 %v1633
    %2036 = vmatpush1.bf16.msra.mxu0 %v1632
    %2037 = vmatprep.subr.bf16.mxu0 %v1641
    %2038 = vmatpush1.bf16.msra.mxu0 %v1640
    %2039 = vmatprep.subr.bf16.mxu0 %v1649
    %2040 = vmatpush1.bf16.msra.mxu0 %v1648
    %2041 = vmatprep.subr.bf16.mxu0 %v1657
    %2042 = vmatpush1.bf16.msra.mxu0 %v1656
    %2043 = vmatprep.subr.bf16.mxu0 %v1665
    %2044 = vmatpush1.bf16.msra.mxu0 %v1664
    %2045 = vmatprep.subr.bf16.mxu0 %v1673
    %2046 = vmatpush1.bf16.msra.mxu0 %v1672
    %2047 = vmatprep.subr.bf16.mxu0 %v1681
    %2048 = vmatpush1.bf16.msra.mxu0 %v1680
    %2049 = vmatprep.subr.bf16.mxu0 %v1689
    %2050 = vmatpush1.bf16.msra.mxu0 %v1688
    %2051 = vmatprep.subr.bf16.mxu0 %v1697
    %2052 = vmatpush1.bf16.msra.mxu0 %v1696
    %2053 = vmatprep.subr.bf16.mxu0 %v1705
    %2054 = vmatpush1.bf16.msra.mxu0 %v1704
    %2055 = vmatprep.subr.bf16.mxu0 %v1713
    %2056 = vmatpush1.bf16.msra.mxu0 %v1712
    %2057 = vmatprep.subr.bf16.mxu0 %v1721
    %2058 = vmatpush1.bf16.msra.mxu0 %v1720
    %2059 = vmatprep.mubr.bf16.mxu0 %v1725
    %2060 = vmatmul.mubr.bf16.gmra.mrb[0].mxu0 %v1724
    %v2061 = vpop.f32.mrb[0].mxu0
    %v2062 = vadd.f32 %v2019, %v2061
    %v2063 = vpop.f32.mrb[0].mxu0
    %v2064 = vadd.f32 %v2021, %v2063
    %v2065 = vpop.f32.mrb[0].mxu0
    %v2066 = vadd.f32 %v2023, %v2065
    %v2067 = vpop.f32.mrb[0].mxu0
    %v2068 = vadd.f32 %v2025, %v2067
    %2069 = vdwg.mxu0
    %v2070 = vld [vmem:[%s7] sm:$0xff]
    %v2072 = vlaneseq
    %v2073 = vshrl.u32 %v2072, 7
    %v2074 = vsub.s32 0, %v2073
    %v2075 = vrot.slane %v2070, %v2074
    %v2076 = vlaneseq
    %v2077 = vshrl.u32 %v2076, 7
    %v2078 = vsub.s32 1, %v2077
    %v2079 = vrot.slane %v2070, %v2078
    %v2080 = vlaneseq
    %v2081 = vshrl.u32 %v2080, 7
    %v2082 = vsub.s32 2, %v2081
    %v2083 = vrot.slane %v2070, %v2082
    %v2084 = vlaneseq
    %v2085 = vshrl.u32 %v2084, 7
    %v2086 = vsub.s32 3, %v2085
    %v2087 = vrot.slane %v2070, %v2086
    %v2088 = vlaneseq
    %v2089 = vshrl.u32 %v2088, 7
    %v2090 = vsub.s32 4, %v2089
    %v2091 = vrot.slane %v2070, %v2090
    %v2092 = vlaneseq
    %v2093 = vshrl.u32 %v2092, 7
    %v2094 = vsub.s32 5, %v2093
    %v2095 = vrot.slane %v2070, %v2094
    %v2096 = vlaneseq
    %v2097 = vshrl.u32 %v2096, 7
    %v2098 = vsub.s32 6, %v2097
    %v2099 = vrot.slane %v2070, %v2098
    %v2100 = vlaneseq
    %v2101 = vshrl.u32 %v2100, 7
    %v2102 = vsub.s32 7, %v2101
    %v2103 = vrot.slane %v2070, %v2102
    %v2112 = vmul.f32 %v1804, %v2075
    %v2113 = vmul.f32 %v1806, %v2079
    %v2114 = vmul.f32 %v1890, %v2083
    %v2115 = vmul.f32 %v1892, %v2087
    %v2116 = vmul.f32 %v1976, %v2091
    %v2117 = vmul.f32 %v1978, %v2095
    %v2118 = vmul.f32 %v2062, %v2099
    %v2119 = vmul.f32 %v2064, %v2103
    %v2120 = vmul.f32 %v1808, %v2075
    %v2121 = vmul.f32 %v1810, %v2079
    %v2122 = vmul.f32 %v1894, %v2083
    %v2123 = vmul.f32 %v1896, %v2087
    %v2124 = vmul.f32 %v1980, %v2091
    %v2125 = vmul.f32 %v1982, %v2095
    %v2126 = vmul.f32 %v2066, %v2099
    %v2127 = vmul.f32 %v2068, %v2103
    %v2128 = vld [vmem:[%s8] sm:$0xff]
    %v2130 = vlaneseq
    %v2131 = vshrl.u32 %v2130, 7
    %v2132 = vsub.s32 0, %v2131
    %v2133 = vrot.slane %v2128, %v2132
    %v2134 = vlaneseq
    %v2135 = vshrl.u32 %v2134, 7
    %v2136 = vsub.s32 1, %v2135
    %v2137 = vrot.slane %v2128, %v2136
    %v2138 = vlaneseq
    %v2139 = vshrl.u32 %v2138, 7
    %v2140 = vsub.s32 2, %v2139
    %v2141 = vrot.slane %v2128, %v2140
    %v2142 = vlaneseq
    %v2143 = vshrl.u32 %v2142, 7
    %v2144 = vsub.s32 3, %v2143
    %v2145 = vrot.slane %v2128, %v2144
    %v2146 = vlaneseq
    %v2147 = vshrl.u32 %v2146, 7
    %v2148 = vsub.s32 4, %v2147
    %v2149 = vrot.slane %v2128, %v2148
    %v2150 = vlaneseq
    %v2151 = vshrl.u32 %v2150, 7
    %v2152 = vsub.s32 5, %v2151
    %v2153 = vrot.slane %v2128, %v2152
    %v2154 = vlaneseq
    %v2155 = vshrl.u32 %v2154, 7
    %v2156 = vsub.s32 6, %v2155
    %v2157 = vrot.slane %v2128, %v2156
    %v2158 = vlaneseq
    %v2159 = vshrl.u32 %v2158, 7
    %v2160 = vsub.s32 7, %v2159
    %v2161 = vrot.slane %v2128, %v2160
    %v2170 = vadd.f32 %v2112, %v2133
    %v2171 = vadd.f32 %v2113, %v2137
    %v2172 = vadd.f32 %v2114, %v2141
    %v2173 = vadd.f32 %v2115, %v2145
    %v2174 = vadd.f32 %v2116, %v2149
    %v2175 = vadd.f32 %v2117, %v2153
    %v2176 = vadd.f32 %v2118, %v2157
    %v2177 = vadd.f32 %v2119, %v2161
    %v2178 = vadd.f32 %v2120, %v2133
    %v2179 = vadd.f32 %v2121, %v2137
    %v2180 = vadd.f32 %v2122, %v2141
    %v2181 = vadd.f32 %v2123, %v2145
    %v2182 = vadd.f32 %v2124, %v2149
    %v2183 = vadd.f32 %v2125, %v2153
    %v2184 = vadd.f32 %v2126, %v2157
    %v2185 = vadd.f32 %v2127, %v2161
    %v2186 = vmax.f32 %v2170, 0.0
    %v2187 = vmax.f32 %v2171, 0.0
    %v2188 = vmax.f32 %v2172, 0.0
    %v2189 = vmax.f32 %v2173, 0.0
    %v2190 = vmax.f32 %v2174, 0.0
    %v2191 = vmax.f32 %v2175, 0.0
    %v2192 = vmax.f32 %v2176, 0.0
    %v2193 = vmax.f32 %v2177, 0.0
    %v2194 = vmax.f32 %v2178, 0.0
    %v2195 = vmax.f32 %v2179, 0.0
    %v2196 = vmax.f32 %v2180, 0.0
    %v2197 = vmax.f32 %v2181, 0.0
    %v2198 = vmax.f32 %v2182, 0.0
    %v2199 = vmax.f32 %v2183, 0.0
    %v2200 = vmax.f32 %v2184, 0.0
    %v2201 = vmax.f32 %v2185, 0.0
    %s2202 = smul.u32 2, 128
    %s2203 = smul.u32 %s2202, 7
    %s2204 = sshll.u32 %s2203, 4
    %2205 = dma.done %s593, %s2204
    %v2206 = vld [vmem:[#allocation4] sm:$0xff]
    %v2207 = vld [vmem:[#allocation4 + $0x8] sm:$0xff]
    %v2208 = vld [vmem:[#allocation4 + $0x10] sm:$0xff]
    %v2209 = vld [vmem:[#allocation4 + $0x18] sm:$0xff]
    %v2210 = vld [vmem:[#allocation4 + $0x20] sm:$0xff]
    %v2211 = vld [vmem:[#allocation4 + $0x28] sm:$0xff]
    %v2212 = vld [vmem:[#allocation4 + $0x30] sm:$0xff]
    %v2213 = vld [vmem:[#allocation4 + $0x38] sm:$0xff]
    %v2214 = vld [vmem:[#allocation4 + $0x40] sm:$0xff]
    %v2215 = vld [vmem:[#allocation4 + $0x48] sm:$0xff]
    %v2216 = vld [vmem:[#allocation4 + $0x50] sm:$0xff]
    %v2217 = vld [vmem:[#allocation4 + $0x58] sm:$0xff]
    %v2218 = vld [vmem:[#allocation4 + $0x60] sm:$0xff]
    %v2219 = vld [vmem:[#allocation4 + $0x68] sm:$0xff]
    %v2220 = vld [vmem:[#allocation4 + $0x70] sm:$0xff]
    %v2221 = vld [vmem:[#allocation4 + $0x78] sm:$0xff]
    %v2222 = vld [vmem:[#allocation4 + $0x80] sm:$0xff]
    %v2223 = vld [vmem:[#allocation4 + $0x88] sm:$0xff]
    %v2224 = vld [vmem:[#allocation4 + $0x90] sm:$0xff]
    %v2225 = vld [vmem:[#allocation4 + $0x98] sm:$0xff]
    %v2226 = vld [vmem:[#allocation4 + $0xa0] sm:$0xff]
    %v2227 = vld [vmem:[#allocation4 + $0xa8] sm:$0xff]
    %v2228 = vld [vmem:[#allocation4 + $0xb0] sm:$0xff]
    %v2229 = vld [vmem:[#allocation4 + $0xb8] sm:$0xff]
    %v2230 = vld [vmem:[#allocation4 + $0xc0] sm:$0xff]
    %v2231 = vld [vmem:[#allocation4 + $0xc8] sm:$0xff]
    %v2232 = vld [vmem:[#allocation4 + $0xd0] sm:$0xff]
    %v2233 = vld [vmem:[#allocation4 + $0xd8] sm:$0xff]
    %v2234 = vld [vmem:[#allocation4 + $0xe0] sm:$0xff]
    %v2235 = vld [vmem:[#allocation4 + $0xe8] sm:$0xff]
    %v2236 = vld [vmem:[#allocation4 + $0xf0] sm:$0xff]
    %v2237 = vld [vmem:[#allocation4 + $0xf8] sm:$0xff]
    %v2238 = vld [vmem:[#allocation4 + $0x100] sm:$0xff]
    %v2239 = vld [vmem:[#allocation4 + $0x108] sm:$0xff]
    %v2240 = vld [vmem:[#allocation4 + $0x110] sm:$0xff]
    %v2241 = vld [vmem:[#allocation4 + $0x118] sm:$0xff]
    %v2242 = vld [vmem:[#allocation4 + $0x120] sm:$0xff]
    %v2243 = vld [vmem:[#allocation4 + $0x128] sm:$0xff]
    %v2244 = vld [vmem:[#allocation4 + $0x130] sm:$0xff]
    %v2245 = vld [vmem:[#allocation4 + $0x138] sm:$0xff]
    %v2246 = vld [vmem:[#allocation4 + $0x140] sm:$0xff]
    %v2247 = vld [vmem:[#allocation4 + $0x148] sm:$0xff]
    %v2248 = vld [vmem:[#allocation4 + $0x150] sm:$0xff]
    %v2249 = vld [vmem:[#allocation4 + $0x158] sm:$0xff]
    %v2250 = vld [vmem:[#allocation4 + $0x160] sm:$0xff]
    %v2251 = vld [vmem:[#allocation4 + $0x168] sm:$0xff]
    %v2252 = vld [vmem:[#allocation4 + $0x170] sm:$0xff]
    %v2253 = vld [vmem:[#allocation4 + $0x178] sm:$0xff]
    %v2254 = vld [vmem:[#allocation4 + $0x180] sm:$0xff]
    %v2255 = vld [vmem:[#allocation4 + $0x188] sm:$0xff]
    %v2256 = vld [vmem:[#allocation4 + $0x190] sm:$0xff]
    %v2257 = vld [vmem:[#allocation4 + $0x198] sm:$0xff]
    %v2258 = vld [vmem:[#allocation4 + $0x1a0] sm:$0xff]
    %v2259 = vld [vmem:[#allocation4 + $0x1a8] sm:$0xff]
    %v2260 = vld [vmem:[#allocation4 + $0x1b0] sm:$0xff]
    %v2261 = vld [vmem:[#allocation4 + $0x1b8] sm:$0xff]
    %v2262 = vld [vmem:[#allocation4 + $0x1c0] sm:$0xff]
    %v2263 = vld [vmem:[#allocation4 + $0x1c8] sm:$0xff]
    %v2264 = vld [vmem:[#allocation4 + $0x1d0] sm:$0xff]
    %v2265 = vld [vmem:[#allocation4 + $0x1d8] sm:$0xff]
    %v2266 = vld [vmem:[#allocation4 + $0x1e0] sm:$0xff]
    %v2267 = vld [vmem:[#allocation4 + $0x1e8] sm:$0xff]
    %v2268 = vld [vmem:[#allocation4 + $0x1f0] sm:$0xff]
    %v2269 = vld [vmem:[#allocation4 + $0x1f8] sm:$0xff]
    %v2270 = vld [vmem:[#allocation4 + $0x200] sm:$0xff]
    %v2271 = vld [vmem:[#allocation4 + $0x208] sm:$0xff]
    %v2272 = vld [vmem:[#allocation4 + $0x210] sm:$0xff]
    %v2273 = vld [vmem:[#allocation4 + $0x218] sm:$0xff]
    %v2274 = vld [vmem:[#allocation4 + $0x220] sm:$0xff]
    %v2275 = vld [vmem:[#allocation4 + $0x228] sm:$0xff]
    %v2276 = vld [vmem:[#allocation4 + $0x230] sm:$0xff]
    %v2277 = vld [vmem:[#allocation4 + $0x238] sm:$0xff]
    %v2278 = vld [vmem:[#allocation4 + $0x240] sm:$0xff]
    %v2279 = vld [vmem:[#allocation4 + $0x248] sm:$0xff]
    %v2280 = vld [vmem:[#allocation4 + $0x250] sm:$0xff]
    %v2281 = vld [vmem:[#allocation4 + $0x258] sm:$0xff]
    %v2282 = vld [vmem:[#allocation4 + $0x260] sm:$0xff]
    %v2283 = vld [vmem:[#allocation4 + $0x268] sm:$0xff]
    %v2284 = vld [vmem:[#allocation4 + $0x270] sm:$0xff]
    %v2285 = vld [vmem:[#allocation4 + $0x278] sm:$0xff]
    %v2286 = vld [vmem:[#allocation4 + $0x280] sm:$0xff]
    %v2287 = vld [vmem:[#allocation4 + $0x288] sm:$0xff]
    %v2288 = vld [vmem:[#allocation4 + $0x290] sm:$0xff]
    %v2289 = vld [vmem:[#allocation4 + $0x298] sm:$0xff]
    %v2290 = vld [vmem:[#allocation4 + $0x2a0] sm:$0xff]
    %v2291 = vld [vmem:[#allocation4 + $0x2a8] sm:$0xff]
    %v2292 = vld [vmem:[#allocation4 + $0x2b0] sm:$0xff]
    %v2293 = vld [vmem:[#allocation4 + $0x2b8] sm:$0xff]
    %v2294 = vld [vmem:[#allocation4 + $0x2c0] sm:$0xff]
    %v2295 = vld [vmem:[#allocation4 + $0x2c8] sm:$0xff]
    %v2296 = vld [vmem:[#allocation4 + $0x2d0] sm:$0xff]
    %v2297 = vld [vmem:[#allocation4 + $0x2d8] sm:$0xff]
    %v2298 = vld [vmem:[#allocation4 + $0x2e0] sm:$0xff]
    %v2299 = vld [vmem:[#allocation4 + $0x2e8] sm:$0xff]
    %v2300 = vld [vmem:[#allocation4 + $0x2f0] sm:$0xff]
    %v2301 = vld [vmem:[#allocation4 + $0x2f8] sm:$0xff]
    %v2302 = vld [vmem:[#allocation4 + $0x300] sm:$0xff]
    %v2303 = vld [vmem:[#allocation4 + $0x308] sm:$0xff]
    %v2304 = vld [vmem:[#allocation4 + $0x310] sm:$0xff]
    %v2305 = vld [vmem:[#allocation4 + $0x318] sm:$0xff]
    %v2306 = vld [vmem:[#allocation4 + $0x320] sm:$0xff]
    %v2307 = vld [vmem:[#allocation4 + $0x328] sm:$0xff]
    %v2308 = vld [vmem:[#allocation4 + $0x330] sm:$0xff]
    %v2309 = vld [vmem:[#allocation4 + $0x338] sm:$0xff]
    %v2310 = vld [vmem:[#allocation4 + $0x340] sm:$0xff]
    %v2311 = vld [vmem:[#allocation4 + $0x348] sm:$0xff]
    %v2312 = vld [vmem:[#allocation4 + $0x350] sm:$0xff]
    %v2313 = vld [vmem:[#allocation4 + $0x358] sm:$0xff]
    %v2314 = vld [vmem:[#allocation4 + $0x360] sm:$0xff]
    %v2315 = vld [vmem:[#allocation4 + $0x368] sm:$0xff]
    %v2316 = vld [vmem:[#allocation4 + $0x370] sm:$0xff]
    %v2317 = vld [vmem:[#allocation4 + $0x378] sm:$0xff]
    %v2318 = vld [vmem:[#allocation4 + $0x380] sm:$0xff]
    %v2319 = vld [vmem:[#allocation4 + $0x388] sm:$0xff]
    %v2320 = vld [vmem:[#allocation4 + $0x390] sm:$0xff]
    %v2321 = vld [vmem:[#allocation4 + $0x398] sm:$0xff]
    %v2322 = vld [vmem:[#allocation4 + $0x3a0] sm:$0xff]
    %v2323 = vld [vmem:[#allocation4 + $0x3a8] sm:$0xff]
    %v2324 = vld [vmem:[#allocation4 + $0x3b0] sm:$0xff]
    %v2325 = vld [vmem:[#allocation4 + $0x3b8] sm:$0xff]
    %v2326 = vld [vmem:[#allocation4 + $0x3c0] sm:$0xff]
    %v2327 = vld [vmem:[#allocation4 + $0x3c8] sm:$0xff]
    %v2328 = vld [vmem:[#allocation4 + $0x3d0] sm:$0xff]
    %v2329 = vld [vmem:[#allocation4 + $0x3d8] sm:$0xff]
    %v2330 = vld [vmem:[#allocation4 + $0x3e0] sm:$0xff]
    %v2331 = vld [vmem:[#allocation4 + $0x3e8] sm:$0xff]
    %v2332 = vld [vmem:[#allocation4 + $0x3f0] sm:$0xff]
    %v2333 = vld [vmem:[#allocation4 + $0x3f8] sm:$0xff]
    %v2334 = vld [vmem:[#allocation4 + $0x400] sm:$0xff]
    %v2335 = vld [vmem:[#allocation4 + $0x408] sm:$0xff]
    %v2336 = vld [vmem:[#allocation4 + $0x410] sm:$0xff]
    %v2337 = vld [vmem:[#allocation4 + $0x418] sm:$0xff]
    %v2338 = vld [vmem:[#allocation4 + $0x420] sm:$0xff]
    %v2339 = vld [vmem:[#allocation4 + $0x428] sm:$0xff]
    %v2340 = vld [vmem:[#allocation4 + $0x430] sm:$0xff]
    %v2341 = vld [vmem:[#allocation4 + $0x438] sm:$0xff]
    %v2342 = vld [vmem:[#allocation4 + $0x440] sm:$0xff]
    %v2343 = vld [vmem:[#allocation4 + $0x448] sm:$0xff]
    %v2344 = vld [vmem:[#allocation4 + $0x450] sm:$0xff]
    %v2345 = vld [vmem:[#allocation4 + $0x458] sm:$0xff]
    %v2346 = vld [vmem:[#allocation4 + $0x460] sm:$0xff]
    %v2347 = vld [vmem:[#allocation4 + $0x468] sm:$0xff]
    %v2348 = vld [vmem:[#allocation4 + $0x470] sm:$0xff]
    %v2349 = vld [vmem:[#allocation4 + $0x478] sm:$0xff]
    %v2350 = vld [vmem:[#allocation4 + $0x480] sm:$0xff]
    %v2351 = vld [vmem:[#allocation4 + $0x488] sm:$0xff]
    %v2352 = vld [vmem:[#allocation4 + $0x490] sm:$0xff]
    %v2353 = vld [vmem:[#allocation4 + $0x498] sm:$0xff]
    %v2354 = vld [vmem:[#allocation4 + $0x4a0] sm:$0xff]
    %v2355 = vld [vmem:[#allocation4 + $0x4a8] sm:$0xff]
    %v2356 = vld [vmem:[#allocation4 + $0x4b0] sm:$0xff]
    %v2357 = vld [vmem:[#allocation4 + $0x4b8] sm:$0xff]
    %v2358 = vld [vmem:[#allocation4 + $0x4c0] sm:$0xff]
    %v2359 = vld [vmem:[#allocation4 + $0x4c8] sm:$0xff]
    %v2360 = vld [vmem:[#allocation4 + $0x4d0] sm:$0xff]
    %v2361 = vld [vmem:[#allocation4 + $0x4d8] sm:$0xff]
    %v2362 = vld [vmem:[#allocation4 + $0x4e0] sm:$0xff]
    %v2363 = vld [vmem:[#allocation4 + $0x4e8] sm:$0xff]
    %v2364 = vld [vmem:[#allocation4 + $0x4f0] sm:$0xff]
    %v2365 = vld [vmem:[#allocation4 + $0x4f8] sm:$0xff]
    %v2366 = vld [vmem:[#allocation4 + $0x500] sm:$0xff]
    %v2367 = vld [vmem:[#allocation4 + $0x508] sm:$0xff]
    %v2368 = vld [vmem:[#allocation4 + $0x510] sm:$0xff]
    %v2369 = vld [vmem:[#allocation4 + $0x518] sm:$0xff]
    %v2370 = vld [vmem:[#allocation4 + $0x520] sm:$0xff]
    %v2371 = vld [vmem:[#allocation4 + $0x528] sm:$0xff]
    %v2372 = vld [vmem:[#allocation4 + $0x530] sm:$0xff]
    %v2373 = vld [vmem:[#allocation4 + $0x538] sm:$0xff]
    %v2374 = vld [vmem:[#allocation4 + $0x540] sm:$0xff]
    %v2375 = vld [vmem:[#allocation4 + $0x548] sm:$0xff]
    %v2376 = vld [vmem:[#allocation4 + $0x550] sm:$0xff]
    %v2377 = vld [vmem:[#allocation4 + $0x558] sm:$0xff]
    %v2378 = vld [vmem:[#allocation4 + $0x560] sm:$0xff]
    %v2379 = vld [vmem:[#allocation4 + $0x568] sm:$0xff]
    %v2380 = vld [vmem:[#allocation4 + $0x570] sm:$0xff]
    %v2381 = vld [vmem:[#allocation4 + $0x578] sm:$0xff]
    %v2382 = vld [vmem:[#allocation4 + $0x580] sm:$0xff]
    %v2383 = vld [vmem:[#allocation4 + $0x588] sm:$0xff]
    %v2384 = vld [vmem:[#allocation4 + $0x590] sm:$0xff]
    %v2385 = vld [vmem:[#allocation4 + $0x598] sm:$0xff]
    %v2386 = vld [vmem:[#allocation4 + $0x5a0] sm:$0xff]
    %v2387 = vld [vmem:[#allocation4 + $0x5a8] sm:$0xff]
    %v2388 = vld [vmem:[#allocation4 + $0x5b0] sm:$0xff]
    %v2389 = vld [vmem:[#allocation4 + $0x5b8] sm:$0xff]
    %v2390 = vld [vmem:[#allocation4 + $0x5c0] sm:$0xff]
    %v2391 = vld [vmem:[#allocation4 + $0x5c8] sm:$0xff]
    %v2392 = vld [vmem:[#allocation4 + $0x5d0] sm:$0xff]
    %v2393 = vld [vmem:[#allocation4 + $0x5d8] sm:$0xff]
    %v2394 = vld [vmem:[#allocation4 + $0x5e0] sm:$0xff]
    %v2395 = vld [vmem:[#allocation4 + $0x5e8] sm:$0xff]
    %v2396 = vld [vmem:[#allocation4 + $0x5f0] sm:$0xff]
    %v2397 = vld [vmem:[#allocation4 + $0x5f8] sm:$0xff]
    %v2398 = vld [vmem:[#allocation4 + $0x600] sm:$0xff]
    %v2399 = vld [vmem:[#allocation4 + $0x608] sm:$0xff]
    %v2400 = vld [vmem:[#allocation4 + $0x610] sm:$0xff]
    %v2401 = vld [vmem:[#allocation4 + $0x618] sm:$0xff]
    %v2402 = vld [vmem:[#allocation4 + $0x620] sm:$0xff]
    %v2403 = vld [vmem:[#allocation4 + $0x628] sm:$0xff]
    %v2404 = vld [vmem:[#allocation4 + $0x630] sm:$0xff]
    %v2405 = vld [vmem:[#allocation4 + $0x638] sm:$0xff]
    %v2406 = vld [vmem:[#allocation4 + $0x640] sm:$0xff]
    %v2407 = vld [vmem:[#allocation4 + $0x648] sm:$0xff]
    %v2408 = vld [vmem:[#allocation4 + $0x650] sm:$0xff]
    %v2409 = vld [vmem:[#allocation4 + $0x658] sm:$0xff]
    %v2410 = vld [vmem:[#allocation4 + $0x660] sm:$0xff]
    %v2411 = vld [vmem:[#allocation4 + $0x668] sm:$0xff]
    %v2412 = vld [vmem:[#allocation4 + $0x670] sm:$0xff]
    %v2413 = vld [vmem:[#allocation4 + $0x678] sm:$0xff]
    %v2414 = vld [vmem:[#allocation4 + $0x680] sm:$0xff]
    %v2415 = vld [vmem:[#allocation4 + $0x688] sm:$0xff]
    %v2416 = vld [vmem:[#allocation4 + $0x690] sm:$0xff]
    %v2417 = vld [vmem:[#allocation4 + $0x698] sm:$0xff]
    %v2418 = vld [vmem:[#allocation4 + $0x6a0] sm:$0xff]
    %v2419 = vld [vmem:[#allocation4 + $0x6a8] sm:$0xff]
    %v2420 = vld [vmem:[#allocation4 + $0x6b0] sm:$0xff]
    %v2421 = vld [vmem:[#allocation4 + $0x6b8] sm:$0xff]
    %v2422 = vld [vmem:[#allocation4 + $0x6c0] sm:$0xff]
    %v2423 = vld [vmem:[#allocation4 + $0x6c8] sm:$0xff]
    %v2424 = vld [vmem:[#allocation4 + $0x6d0] sm:$0xff]
    %v2425 = vld [vmem:[#allocation4 + $0x6d8] sm:$0xff]
    %v2426 = vld [vmem:[#allocation4 + $0x6e0] sm:$0xff]
    %v2427 = vld [vmem:[#allocation4 + $0x6e8] sm:$0xff]
    %v2428 = vld [vmem:[#allocation4 + $0x6f0] sm:$0xff]
    %v2429 = vld [vmem:[#allocation4 + $0x6f8] sm:$0xff]
    %v2430 = vunpack.c.l.s8.bf16 %v2206
    %v2431 = vunpack.c.l.s8.bf16 %v2207
    %v2432 = vunpack.c.l.s8.bf16 %v2208
    %v2433 = vunpack.c.l.s8.bf16 %v2209
    %v2434 = vunpack.c.l.s8.bf16 %v2210
    %v2435 = vunpack.c.l.s8.bf16 %v2211
    %v2436 = vunpack.c.l.s8.bf16 %v2212
    %v2437 = vunpack.c.h.s8.bf16 %v2206
    %v2438 = vunpack.c.h.s8.bf16 %v2207
    %v2439 = vunpack.c.h.s8.bf16 %v2208
    %v2440 = vunpack.c.h.s8.bf16 %v2209
    %v2441 = vunpack.c.h.s8.bf16 %v2210
    %v2442 = vunpack.c.h.s8.bf16 %v2211
    %v2443 = vunpack.c.h.s8.bf16 %v2212
    %v2444 = vunpack.c.l.s8.bf16 %v2213
    %v2445 = vunpack.c.l.s8.bf16 %v2214
    %v2446 = vunpack.c.l.s8.bf16 %v2215
    %v2447 = vunpack.c.l.s8.bf16 %v2216
    %v2448 = vunpack.c.l.s8.bf16 %v2217
    %v2449 = vunpack.c.l.s8.bf16 %v2218
    %v2450 = vunpack.c.l.s8.bf16 %v2219
    %v2451 = vunpack.c.h.s8.bf16 %v2213
    %v2452 = vunpack.c.h.s8.bf16 %v2214
    %v2453 = vunpack.c.h.s8.bf16 %v2215
    %v2454 = vunpack.c.h.s8.bf16 %v2216
    %v2455 = vunpack.c.h.s8.bf16 %v2217
    %v2456 = vunpack.c.h.s8.bf16 %v2218
    %v2457 = vunpack.c.h.s8.bf16 %v2219
    %v2458 = vunpack.c.l.s8.bf16 %v2220
    %v2459 = vunpack.c.l.s8.bf16 %v2221
    %v2460 = vunpack.c.l.s8.bf16 %v2222
    %v2461 = vunpack.c.l.s8.bf16 %v2223
    %v2462 = vunpack.c.l.s8.bf16 %v2224
    %v2463 = vunpack.c.l.s8.bf16 %v2225
    %v2464 = vunpack.c.l.s8.bf16 %v2226
    %v2465 = vunpack.c.h.s8.bf16 %v2220
    %v2466 = vunpack.c.h.s8.bf16 %v2221
    %v2467 = vunpack.c.h.s8.bf16 %v2222
    %v2468 = vunpack.c.h.s8.bf16 %v2223
    %v2469 = vunpack.c.h.s8.bf16 %v2224
    %v2470 = vunpack.c.h.s8.bf16 %v2225
    %v2471 = vunpack.c.h.s8.bf16 %v2226
    %v2472 = vunpack.c.l.s8.bf16 %v2227
    %v2473 = vunpack.c.l.s8.bf16 %v2228
    %v2474 = vunpack.c.l.s8.bf16 %v2229
    %v2475 = vunpack.c.l.s8.bf16 %v2230
    %v2476 = vunpack.c.l.s8.bf16 %v2231
    %v2477 = vunpack.c.l.s8.bf16 %v2232
    %v2478 = vunpack.c.l.s8.bf16 %v2233
    %v2479 = vunpack.c.h.s8.bf16 %v2227
    %v2480 = vunpack.c.h.s8.bf16 %v2228
    %v2481 = vunpack.c.h.s8.bf16 %v2229
    %v2482 = vunpack.c.h.s8.bf16 %v2230
    %v2483 = vunpack.c.h.s8.bf16 %v2231
    %v2484 = vunpack.c.h.s8.bf16 %v2232
    %v2485 = vunpack.c.h.s8.bf16 %v2233
    %v2486 = vunpack.c.l.s8.bf16 %v2234
    %v2487 = vunpack.c.l.s8.bf16 %v2235
    %v2488 = vunpack.c.l.s8.bf16 %v2236
    %v2489 = vunpack.c.l.s8.bf16 %v2237
    %v2490 = vunpack.c.l.s8.bf16 %v2238
    %v2491 = vunpack.c.l.s8.bf16 %v2239
    %v2492 = vunpack.c.l.s8.bf16 %v2240
    %v2493 = vunpack.c.h.s8.bf16 %v2234
    %v2494 = vunpack.c.h.s8.bf16 %v2235
    %v2495 = vunpack.c.h.s8.bf16 %v2236
    %v2496 = vunpack.c.h.s8.bf16 %v2237
    %v2497 = vunpack.c.h.s8.bf16 %v2238
    %v2498 = vunpack.c.h.s8.bf16 %v2239
    %v2499 = vunpack.c.h.s8.bf16 %v2240
    %v2500 = vunpack.c.l.s8.bf16 %v2241
    %v2501 = vunpack.c.l.s8.bf16 %v2242
    %v2502 = vunpack.c.l.s8.bf16 %v2243
    %v2503 = vunpack.c.l.s8.bf16 %v2244
    %v2504 = vunpack.c.l.s8.bf16 %v2245
    %v2505 = vunpack.c.l.s8.bf16 %v2246
    %v2506 = vunpack.c.l.s8.bf16 %v2247
    %v2507 = vunpack.c.h.s8.bf16 %v2241
    %v2508 = vunpack.c.h.s8.bf16 %v2242
    %v2509 = vunpack.c.h.s8.bf16 %v2243
    %v2510 = vunpack.c.h.s8.bf16 %v2244
    %v2511 = vunpack.c.h.s8.bf16 %v2245
    %v2512 = vunpack.c.h.s8.bf16 %v2246
    %v2513 = vunpack.c.h.s8.bf16 %v2247
    %v2514 = vunpack.c.l.s8.bf16 %v2248
    %v2515 = vunpack.c.l.s8.bf16 %v2249
    %v2516 = vunpack.c.l.s8.bf16 %v2250
    %v2517 = vunpack.c.l.s8.bf16 %v2251
    %v2518 = vunpack.c.l.s8.bf16 %v2252
    %v2519 = vunpack.c.l.s8.bf16 %v2253
    %v2520 = vunpack.c.l.s8.bf16 %v2254
    %v2521 = vunpack.c.h.s8.bf16 %v2248
    %v2522 = vunpack.c.h.s8.bf16 %v2249
    %v2523 = vunpack.c.h.s8.bf16 %v2250
    %v2524 = vunpack.c.h.s8.bf16 %v2251
    %v2525 = vunpack.c.h.s8.bf16 %v2252
    %v2526 = vunpack.c.h.s8.bf16 %v2253
    %v2527 = vunpack.c.h.s8.bf16 %v2254
    %v2528 = vunpack.c.l.s8.bf16 %v2255
    %v2529 = vunpack.c.l.s8.bf16 %v2256
    %v2530 = vunpack.c.l.s8.bf16 %v2257
    %v2531 = vunpack.c.l.s8.bf16 %v2258
    %v2532 = vunpack.c.l.s8.bf16 %v2259
    %v2533 = vunpack.c.l.s8.bf16 %v2260
    %v2534 = vunpack.c.l.s8.bf16 %v2261
    %v2535 = vunpack.c.h.s8.bf16 %v2255
    %v2536 = vunpack.c.h.s8.bf16 %v2256
    %v2537 = vunpack.c.h.s8.bf16 %v2257
    %v2538 = vunpack.c.h.s8.bf16 %v2258
    %v2539 = vunpack.c.h.s8.bf16 %v2259
    %v2540 = vunpack.c.h.s8.bf16 %v2260
    %v2541 = vunpack.c.h.s8.bf16 %v2261
    %v2542 = vunpack.c.l.s8.bf16 %v2262
    %v2543 = vunpack.c.l.s8.bf16 %v2263
    %v2544 = vunpack.c.l.s8.bf16 %v2264
    %v2545 = vunpack.c.l.s8.bf16 %v2265
    %v2546 = vunpack.c.l.s8.bf16 %v2266
    %v2547 = vunpack.c.l.s8.bf16 %v2267
    %v2548 = vunpack.c.l.s8.bf16 %v2268
    %v2549 = vunpack.c.h.s8.bf16 %v2262
    %v2550 = vunpack.c.h.s8.bf16 %v2263
    %v2551 = vunpack.c.h.s8.bf16 %v2264
    %v2552 = vunpack.c.h.s8.bf16 %v2265
    %v2553 = vunpack.c.h.s8.bf16 %v2266
    %v2554 = vunpack.c.h.s8.bf16 %v2267
    %v2555 = vunpack.c.h.s8.bf16 %v2268
    %v2556 = vunpack.c.l.s8.bf16 %v2269
    %v2557 = vunpack.c.l.s8.bf16 %v2270
    %v2558 = vunpack.c.l.s8.bf16 %v2271
    %v2559 = vunpack.c.l.s8.bf16 %v2272
    %v2560 = vunpack.c.l.s8.bf16 %v2273
    %v2561 = vunpack.c.l.s8.bf16 %v2274
    %v2562 = vunpack.c.l.s8.bf16 %v2275
    %v2563 = vunpack.c.h.s8.bf16 %v2269
    %v2564 = vunpack.c.h.s8.bf16 %v2270
    %v2565 = vunpack.c.h.s8.bf16 %v2271
    %v2566 = vunpack.c.h.s8.bf16 %v2272
    %v2567 = vunpack.c.h.s8.bf16 %v2273
    %v2568 = vunpack.c.h.s8.bf16 %v2274
    %v2569 = vunpack.c.h.s8.bf16 %v2275
    %v2570 = vunpack.c.l.s8.bf16 %v2276
    %v2571 = vunpack.c.l.s8.bf16 %v2277
    %v2572 = vunpack.c.l.s8.bf16 %v2278
    %v2573 = vunpack.c.l.s8.bf16 %v2279
    %v2574 = vunpack.c.l.s8.bf16 %v2280
    %v2575 = vunpack.c.l.s8.bf16 %v2281
    %v2576 = vunpack.c.l.s8.bf16 %v2282
    %v2577 = vunpack.c.h.s8.bf16 %v2276
    %v2578 = vunpack.c.h.s8.bf16 %v2277
    %v2579 = vunpack.c.h.s8.bf16 %v2278
    %v2580 = vunpack.c.h.s8.bf16 %v2279
    %v2581 = vunpack.c.h.s8.bf16 %v2280
    %v2582 = vunpack.c.h.s8.bf16 %v2281
    %v2583 = vunpack.c.h.s8.bf16 %v2282
    %v2584 = vunpack.c.l.s8.bf16 %v2283
    %v2585 = vunpack.c.l.s8.bf16 %v2284
    %v2586 = vunpack.c.l.s8.bf16 %v2285
    %v2587 = vunpack.c.l.s8.bf16 %v2286
    %v2588 = vunpack.c.l.s8.bf16 %v2287
    %v2589 = vunpack.c.l.s8.bf16 %v2288
    %v2590 = vunpack.c.l.s8.bf16 %v2289
    %v2591 = vunpack.c.h.s8.bf16 %v2283
    %v2592 = vunpack.c.h.s8.bf16 %v2284
    %v2593 = vunpack.c.h.s8.bf16 %v2285
    %v2594 = vunpack.c.h.s8.bf16 %v2286
    %v2595 = vunpack.c.h.s8.bf16 %v2287
    %v2596 = vunpack.c.h.s8.bf16 %v2288
    %v2597 = vunpack.c.h.s8.bf16 %v2289
    %v2598 = vunpack.c.l.s8.bf16 %v2290
    %v2599 = vunpack.c.l.s8.bf16 %v2291
    %v2600 = vunpack.c.l.s8.bf16 %v2292
    %v2601 = vunpack.c.l.s8.bf16 %v2293
    %v2602 = vunpack.c.l.s8.bf16 %v2294
    %v2603 = vunpack.c.l.s8.bf16 %v2295
    %v2604 = vunpack.c.l.s8.bf16 %v2296
    %v2605 = vunpack.c.h.s8.bf16 %v2290
    %v2606 = vunpack.c.h.s8.bf16 %v2291
    %v2607 = vunpack.c.h.s8.bf16 %v2292
    %v2608 = vunpack.c.h.s8.bf16 %v2293
    %v2609 = vunpack.c.h.s8.bf16 %v2294
    %v2610 = vunpack.c.h.s8.bf16 %v2295
    %v2611 = vunpack.c.h.s8.bf16 %v2296
    %v2612 = vunpack.c.l.s8.bf16 %v2297
    %v2613 = vunpack.c.l.s8.bf16 %v2298
    %v2614 = vunpack.c.l.s8.bf16 %v2299
    %v2615 = vunpack.c.l.s8.bf16 %v2300
    %v2616 = vunpack.c.l.s8.bf16 %v2301
    %v2617 = vunpack.c.l.s8.bf16 %v2302
    %v2618 = vunpack.c.l.s8.bf16 %v2303
    %v2619 = vunpack.c.h.s8.bf16 %v2297
    %v2620 = vunpack.c.h.s8.bf16 %v2298
    %v2621 = vunpack.c.h.s8.bf16 %v2299
    %v2622 = vunpack.c.h.s8.bf16 %v2300
    %v2623 = vunpack.c.h.s8.bf16 %v2301
    %v2624 = vunpack.c.h.s8.bf16 %v2302
    %v2625 = vunpack.c.h.s8.bf16 %v2303
    %v2626 = vunpack.c.l.s8.bf16 %v2304
    %v2627 = vunpack.c.l.s8.bf16 %v2305
    %v2628 = vunpack.c.l.s8.bf16 %v2306
    %v2629 = vunpack.c.l.s8.bf16 %v2307
    %v2630 = vunpack.c.l.s8.bf16 %v2308
    %v2631 = vunpack.c.l.s8.bf16 %v2309
    %v2632 = vunpack.c.l.s8.bf16 %v2310
    %v2633 = vunpack.c.h.s8.bf16 %v2304
    %v2634 = vunpack.c.h.s8.bf16 %v2305
    %v2635 = vunpack.c.h.s8.bf16 %v2306
    %v2636 = vunpack.c.h.s8.bf16 %v2307
    %v2637 = vunpack.c.h.s8.bf16 %v2308
    %v2638 = vunpack.c.h.s8.bf16 %v2309
    %v2639 = vunpack.c.h.s8.bf16 %v2310
    %v2640 = vunpack.c.l.s8.bf16 %v2311
    %v2641 = vunpack.c.l.s8.bf16 %v2312
    %v2642 = vunpack.c.l.s8.bf16 %v2313
    %v2643 = vunpack.c.l.s8.bf16 %v2314
    %v2644 = vunpack.c.l.s8.bf16 %v2315
    %v2645 = vunpack.c.l.s8.bf16 %v2316
    %v2646 = vunpack.c.l.s8.bf16 %v2317
    %v2647 = vunpack.c.h.s8.bf16 %v2311
    %v2648 = vunpack.c.h.s8.bf16 %v2312
    %v2649 = vunpack.c.h.s8.bf16 %v2313
    %v2650 = vunpack.c.h.s8.bf16 %v2314
    %v2651 = vunpack.c.h.s8.bf16 %v2315
    %v2652 = vunpack.c.h.s8.bf16 %v2316
    %v2653 = vunpack.c.h.s8.bf16 %v2317
    %v2654 = vunpack.c.l.s8.bf16 %v2318
    %v2655 = vunpack.c.l.s8.bf16 %v2319
    %v2656 = vunpack.c.l.s8.bf16 %v2320
    %v2657 = vunpack.c.l.s8.bf16 %v2321
    %v2658 = vunpack.c.l.s8.bf16 %v2322
    %v2659 = vunpack.c.l.s8.bf16 %v2323
    %v2660 = vunpack.c.l.s8.bf16 %v2324
    %v2661 = vunpack.c.h.s8.bf16 %v2318
    %v2662 = vunpack.c.h.s8.bf16 %v2319
    %v2663 = vunpack.c.h.s8.bf16 %v2320
    %v2664 = vunpack.c.h.s8.bf16 %v2321
    %v2665 = vunpack.c.h.s8.bf16 %v2322
    %v2666 = vunpack.c.h.s8.bf16 %v2323
    %v2667 = vunpack.c.h.s8.bf16 %v2324
    %v2668 = vunpack.c.l.s8.bf16 %v2325
    %v2669 = vunpack.c.l.s8.bf16 %v2326
    %v2670 = vunpack.c.l.s8.bf16 %v2327
    %v2671 = vunpack.c.l.s8.bf16 %v2328
    %v2672 = vunpack.c.l.s8.bf16 %v2329
    %v2673 = vunpack.c.l.s8.bf16 %v2330
    %v2674 = vunpack.c.l.s8.bf16 %v2331
    %v2675 = vunpack.c.h.s8.bf16 %v2325
    %v2676 = vunpack.c.h.s8.bf16 %v2326
    %v2677 = vunpack.c.h.s8.bf16 %v2327
    %v2678 = vunpack.c.h.s8.bf16 %v2328
    %v2679 = vunpack.c.h.s8.bf16 %v2329
    %v2680 = vunpack.c.h.s8.bf16 %v2330
    %v2681 = vunpack.c.h.s8.bf16 %v2331
    %v2682 = vunpack.c.l.s8.bf16 %v2332
    %v2683 = vunpack.c.l.s8.bf16 %v2333
    %v2684 = vunpack.c.l.s8.bf16 %v2334
    %v2685 = vunpack.c.l.s8.bf16 %v2335
    %v2686 = vunpack.c.l.s8.bf16 %v2336
    %v2687 = vunpack.c.l.s8.bf16 %v2337
    %v2688 = vunpack.c.l.s8.bf16 %v2338
    %v2689 = vunpack.c.h.s8.bf16 %v2332
    %v2690 = vunpack.c.h.s8.bf16 %v2333
    %v2691 = vunpack.c.h.s8.bf16 %v2334
    %v2692 = vunpack.c.h.s8.bf16 %v2335
    %v2693 = vunpack.c.h.s8.bf16 %v2336
    %v2694 = vunpack.c.h.s8.bf16 %v2337
    %v2695 = vunpack.c.h.s8.bf16 %v2338
    %v2696 = vunpack.c.l.s8.bf16 %v2339
    %v2697 = vunpack.c.l.s8.bf16 %v2340
    %v2698 = vunpack.c.l.s8.bf16 %v2341
    %v2699 = vunpack.c.l.s8.bf16 %v2342
    %v2700 = vunpack.c.l.s8.bf16 %v2343
    %v2701 = vunpack.c.l.s8.bf16 %v2344
    %v2702 = vunpack.c.l.s8.bf16 %v2345
    %v2703 = vunpack.c.h.s8.bf16 %v2339
    %v2704 = vunpack.c.h.s8.bf16 %v2340
    %v2705 = vunpack.c.h.s8.bf16 %v2341
    %v2706 = vunpack.c.h.s8.bf16 %v2342
    %v2707 = vunpack.c.h.s8.bf16 %v2343
    %v2708 = vunpack.c.h.s8.bf16 %v2344
    %v2709 = vunpack.c.h.s8.bf16 %v2345
    %v2710 = vunpack.c.l.s8.bf16 %v2346
    %v2711 = vunpack.c.l.s8.bf16 %v2347
    %v2712 = vunpack.c.l.s8.bf16 %v2348
    %v2713 = vunpack.c.l.s8.bf16 %v2349
    %v2714 = vunpack.c.l.s8.bf16 %v2350
    %v2715 = vunpack.c.l.s8.bf16 %v2351
    %v2716 = vunpack.c.l.s8.bf16 %v2352
    %v2717 = vunpack.c.h.s8.bf16 %v2346
    %v2718 = vunpack.c.h.s8.bf16 %v2347
    %v2719 = vunpack.c.h.s8.bf16 %v2348
    %v2720 = vunpack.c.h.s8.bf16 %v2349
    %v2721 = vunpack.c.h.s8.bf16 %v2350
    %v2722 = vunpack.c.h.s8.bf16 %v2351
    %v2723 = vunpack.c.h.s8.bf16 %v2352
    %v2724 = vunpack.c.l.s8.bf16 %v2353
    %v2725 = vunpack.c.l.s8.bf16 %v2354
    %v2726 = vunpack.c.l.s8.bf16 %v2355
    %v2727 = vunpack.c.l.s8.bf16 %v2356
    %v2728 = vunpack.c.l.s8.bf16 %v2357
    %v2729 = vunpack.c.l.s8.bf16 %v2358
    %v2730 = vunpack.c.l.s8.bf16 %v2359
    %v2731 = vunpack.c.h.s8.bf16 %v2353
    %v2732 = vunpack.c.h.s8.bf16 %v2354
    %v2733 = vunpack.c.h.s8.bf16 %v2355
    %v2734 = vunpack.c.h.s8.bf16 %v2356
    %v2735 = vunpack.c.h.s8.bf16 %v2357
    %v2736 = vunpack.c.h.s8.bf16 %v2358
    %v2737 = vunpack.c.h.s8.bf16 %v2359
    %v2738 = vunpack.c.l.s8.bf16 %v2360
    %v2739 = vunpack.c.l.s8.bf16 %v2361
    %v2740 = vunpack.c.l.s8.bf16 %v2362
    %v2741 = vunpack.c.l.s8.bf16 %v2363
    %v2742 = vunpack.c.l.s8.bf16 %v2364
    %v2743 = vunpack.c.l.s8.bf16 %v2365
    %v2744 = vunpack.c.l.s8.bf16 %v2366
    %v2745 = vunpack.c.h.s8.bf16 %v2360
    %v2746 = vunpack.c.h.s8.bf16 %v2361
    %v2747 = vunpack.c.h.s8.bf16 %v2362
    %v2748 = vunpack.c.h.s8.bf16 %v2363
    %v2749 = vunpack.c.h.s8.bf16 %v2364
    %v2750 = vunpack.c.h.s8.bf16 %v2365
    %v2751 = vunpack.c.h.s8.bf16 %v2366
    %v2752 = vunpack.c.l.s8.bf16 %v2367
    %v2753 = vunpack.c.l.s8.bf16 %v2368
    %v2754 = vunpack.c.l.s8.bf16 %v2369
    %v2755 = vunpack.c.l.s8.bf16 %v2370
    %v2756 = vunpack.c.l.s8.bf16 %v2371
    %v2757 = vunpack.c.l.s8.bf16 %v2372
    %v2758 = vunpack.c.l.s8.bf16 %v2373
    %v2759 = vunpack.c.h.s8.bf16 %v2367
    %v2760 = vunpack.c.h.s8.bf16 %v2368
    %v2761 = vunpack.c.h.s8.bf16 %v2369
    %v2762 = vunpack.c.h.s8.bf16 %v2370
    %v2763 = vunpack.c.h.s8.bf16 %v2371
    %v2764 = vunpack.c.h.s8.bf16 %v2372
    %v2765 = vunpack.c.h.s8.bf16 %v2373
    %v2766 = vunpack.c.l.s8.bf16 %v2374
    %v2767 = vunpack.c.l.s8.bf16 %v2375
    %v2768 = vunpack.c.l.s8.bf16 %v2376
    %v2769 = vunpack.c.l.s8.bf16 %v2377
    %v2770 = vunpack.c.l.s8.bf16 %v2378
    %v2771 = vunpack.c.l.s8.bf16 %v2379
    %v2772 = vunpack.c.l.s8.bf16 %v2380
    %v2773 = vunpack.c.h.s8.bf16 %v2374
    %v2774 = vunpack.c.h.s8.bf16 %v2375
    %v2775 = vunpack.c.h.s8.bf16 %v2376
    %v2776 = vunpack.c.h.s8.bf16 %v2377
    %v2777 = vunpack.c.h.s8.bf16 %v2378
    %v2778 = vunpack.c.h.s8.bf16 %v2379
    %v2779 = vunpack.c.h.s8.bf16 %v2380
    %v2780 = vunpack.c.l.s8.bf16 %v2381
    %v2781 = vunpack.c.l.s8.bf16 %v2382
    %v2782 = vunpack.c.l.s8.bf16 %v2383
    %v2783 = vunpack.c.l.s8.bf16 %v2384
    %v2784 = vunpack.c.l.s8.bf16 %v2385
    %v2785 = vunpack.c.l.s8.bf16 %v2386
    %v2786 = vunpack.c.l.s8.bf16 %v2387
    %v2787 = vunpack.c.h.s8.bf16 %v2381
    %v2788 = vunpack.c.h.s8.bf16 %v2382
    %v2789 = vunpack.c.h.s8.bf16 %v2383
    %v2790 = vunpack.c.h.s8.bf16 %v2384
    %v2791 = vunpack.c.h.s8.bf16 %v2385
    %v2792 = vunpack.c.h.s8.bf16 %v2386
    %v2793 = vunpack.c.h.s8.bf16 %v2387
    %v2794 = vunpack.c.l.s8.bf16 %v2388
    %v2795 = vunpack.c.l.s8.bf16 %v2389
    %v2796 = vunpack.c.l.s8.bf16 %v2390
    %v2797 = vunpack.c.l.s8.bf16 %v2391
    %v2798 = vunpack.c.l.s8.bf16 %v2392
    %v2799 = vunpack.c.l.s8.bf16 %v2393
    %v2800 = vunpack.c.l.s8.bf16 %v2394
    %v2801 = vunpack.c.h.s8.bf16 %v2388
    %v2802 = vunpack.c.h.s8.bf16 %v2389
    %v2803 = vunpack.c.h.s8.bf16 %v2390
    %v2804 = vunpack.c.h.s8.bf16 %v2391
    %v2805 = vunpack.c.h.s8.bf16 %v2392
    %v2806 = vunpack.c.h.s8.bf16 %v2393
    %v2807 = vunpack.c.h.s8.bf16 %v2394
    %v2808 = vunpack.c.l.s8.bf16 %v2395
    %v2809 = vunpack.c.l.s8.bf16 %v2396
    %v2810 = vunpack.c.l.s8.bf16 %v2397
    %v2811 = vunpack.c.l.s8.bf16 %v2398
    %v2812 = vunpack.c.l.s8.bf16 %v2399
    %v2813 = vunpack.c.l.s8.bf16 %v2400
    %v2814 = vunpack.c.l.s8.bf16 %v2401
    %v2815 = vunpack.c.h.s8.bf16 %v2395
    %v2816 = vunpack.c.h.s8.bf16 %v2396
    %v2817 = vunpack.c.h.s8.bf16 %v2397
    %v2818 = vunpack.c.h.s8.bf16 %v2398
    %v2819 = vunpack.c.h.s8.bf16 %v2399
    %v2820 = vunpack.c.h.s8.bf16 %v2400
    %v2821 = vunpack.c.h.s8.bf16 %v2401
    %v2822 = vunpack.c.l.s8.bf16 %v2402
    %v2823 = vunpack.c.l.s8.bf16 %v2403
    %v2824 = vunpack.c.l.s8.bf16 %v2404
    %v2825 = vunpack.c.l.s8.bf16 %v2405
    %v2826 = vunpack.c.l.s8.bf16 %v2406
    %v2827 = vunpack.c.l.s8.bf16 %v2407
    %v2828 = vunpack.c.l.s8.bf16 %v2408
    %v2829 = vunpack.c.h.s8.bf16 %v2402
    %v2830 = vunpack.c.h.s8.bf16 %v2403
    %v2831 = vunpack.c.h.s8.bf16 %v2404
    %v2832 = vunpack.c.h.s8.bf16 %v2405
    %v2833 = vunpack.c.h.s8.bf16 %v2406
    %v2834 = vunpack.c.h.s8.bf16 %v2407
    %v2835 = vunpack.c.h.s8.bf16 %v2408
    %v2836 = vunpack.c.l.s8.bf16 %v2409
    %v2837 = vunpack.c.l.s8.bf16 %v2410
    %v2838 = vunpack.c.l.s8.bf16 %v2411
    %v2839 = vunpack.c.l.s8.bf16 %v2412
    %v2840 = vunpack.c.l.s8.bf16 %v2413
    %v2841 = vunpack.c.l.s8.bf16 %v2414
    %v2842 = vunpack.c.l.s8.bf16 %v2415
    %v2843 = vunpack.c.h.s8.bf16 %v2409
    %v2844 = vunpack.c.h.s8.bf16 %v2410
    %v2845 = vunpack.c.h.s8.bf16 %v2411
    %v2846 = vunpack.c.h.s8.bf16 %v2412
    %v2847 = vunpack.c.h.s8.bf16 %v2413
    %v2848 = vunpack.c.h.s8.bf16 %v2414
    %v2849 = vunpack.c.h.s8.bf16 %v2415
    %v2850 = vunpack.c.l.s8.bf16 %v2416
    %v2851 = vunpack.c.l.s8.bf16 %v2417
    %v2852 = vunpack.c.l.s8.bf16 %v2418
    %v2853 = vunpack.c.l.s8.bf16 %v2419
    %v2854 = vunpack.c.l.s8.bf16 %v2420
    %v2855 = vunpack.c.l.s8.bf16 %v2421
    %v2856 = vunpack.c.l.s8.bf16 %v2422
    %v2857 = vunpack.c.h.s8.bf16 %v2416
    %v2858 = vunpack.c.h.s8.bf16 %v2417
    %v2859 = vunpack.c.h.s8.bf16 %v2418
    %v2860 = vunpack.c.h.s8.bf16 %v2419
    %v2861 = vunpack.c.h.s8.bf16 %v2420
    %v2862 = vunpack.c.h.s8.bf16 %v2421
    %v2863 = vunpack.c.h.s8.bf16 %v2422
    %v2864 = vunpack.c.l.s8.bf16 %v2423
    %v2865 = vunpack.c.l.s8.bf16 %v2424
    %v2866 = vunpack.c.l.s8.bf16 %v2425
    %v2867 = vunpack.c.l.s8.bf16 %v2426
    %v2868 = vunpack.c.l.s8.bf16 %v2427
    %v2869 = vunpack.c.l.s8.bf16 %v2428
    %v2870 = vunpack.c.l.s8.bf16 %v2429
    %v2871 = vunpack.c.h.s8.bf16 %v2423
    %v2872 = vunpack.c.h.s8.bf16 %v2424
    %v2873 = vunpack.c.h.s8.bf16 %v2425
    %v2874 = vunpack.c.h.s8.bf16 %v2426
    %v2875 = vunpack.c.h.s8.bf16 %v2427
    %v2876 = vunpack.c.h.s8.bf16 %v2428
    %v2877 = vunpack.c.h.s8.bf16 %v2429
    %v2878 = vpack.c.bf16 %v2194, %v2186
    %v2879 = vpack.c.bf16 %v2195, %v2187
    %v2880 = vpack.c.bf16 %v2196, %v2188
    %v2881 = vpack.c.bf16 %v2197, %v2189
    %v2882 = vpack.c.bf16 %v2198, %v2190
    %v2883 = vpack.c.bf16 %v2199, %v2191
    %v2884 = vpack.c.bf16 %v2200, %v2192
    %v2885 = vpack.c.bf16 %v2201, %v2193
    %2886 = vmatprep.subr.bf16.mxu0 %v2431
    %2887 = vmatpush1.bf16.msra.mxu0 %v2430
    %2888 = vmatprep.subr.bf16.mxu0 %v2438
    %2889 = vmatpush1.bf16.msra.mxu0 %v2437
    %2890 = vmatprep.subr.bf16.mxu0 %v2445
    %2891 = vmatpush1.bf16.msra.mxu0 %v2444
    %2892 = vmatprep.subr.bf16.mxu0 %v2452
    %2893 = vmatpush1.bf16.msra.mxu0 %v2451
    %2894 = vmatprep.subr.bf16.mxu0 %v2459
    %2895 = vmatpush1.bf16.msra.mxu0 %v2458
    %2896 = vmatprep.subr.bf16.mxu0 %v2466
    %2897 = vmatpush1.bf16.msra.mxu0 %v2465
    %2898 = vmatprep.subr.bf16.mxu0 %v2473
    %2899 = vmatpush1.bf16.msra.mxu0 %v2472
    %2900 = vmatprep.subr.bf16.mxu0 %v2480
    %2901 = vmatpush1.bf16.msra.mxu0 %v2479
    %2902 = vmatprep.subr.bf16.mxu0 %v2487
    %2903 = vmatpush1.bf16.msra.mxu0 %v2486
    %2904 = vmatprep.subr.bf16.mxu0 %v2494
    %2905 = vmatpush1.bf16.msra.mxu0 %v2493
    %2906 = vmatprep.subr.bf16.mxu0 %v2501
    %2907 = vmatpush1.bf16.msra.mxu0 %v2500
    %2908 = vmatprep.subr.bf16.mxu0 %v2508
    %2909 = vmatpush1.bf16.msra.mxu0 %v2507
    %2910 = vmatprep.subr.bf16.mxu0 %v2515
    %2911 = vmatpush1.bf16.msra.mxu0 %v2514
    %2912 = vmatprep.subr.bf16.mxu0 %v2522
    %2913 = vmatpush1.bf16.msra.mxu0 %v2521
    %2914 = vmatprep.subr.bf16.mxu0 %v2529
    %2915 = vmatpush1.bf16.msra.mxu0 %v2528
    %2916 = vmatprep.subr.bf16.mxu0 %v2536
    %2917 = vmatpush1.bf16.msra.mxu0 %v2535
    %2918 = vmatprep.mubr.bf16.mxu0 %v2879
    %2919 = vmatmul.mubr.bf16.gmra.mrb[0].mxu0 %v2878
    %v2920 = vpop.f32.mrb[0].mxu0
    %v2921 = vadd.f32 0.0, %v2920
    %v2922 = vpop.f32.mrb[0].mxu0
    %v2923 = vadd.f32 0.0, %v2922
    %v2924 = vpop.f32.mrb[0].mxu0
    %v2925 = vadd.f32 0.0, %v2924
    %v2926 = vpop.f32.mrb[0].mxu0
    %v2927 = vadd.f32 0.0, %v2926
    %2928 = vdwg.mxu0
    %2929 = vmatprep.subr.bf16.mxu0 %v2543
    %2930 = vmatpush1.bf16.msra.mxu0 %v2542
    %2931 = vmatprep.subr.bf16.mxu0 %v2550
    %2932 = vmatpush1.bf16.msra.mxu0 %v2549
    %2933 = vmatprep.subr.bf16.mxu0 %v2557
    %2934 = vmatpush1.bf16.msra.mxu0 %v2556
    %2935 = vmatprep.subr.bf16.mxu0 %v2564
    %2936 = vmatpush1.bf16.msra.mxu0 %v2563
    %2937 = vmatprep.subr.bf16.mxu0 %v2571
    %2938 = vmatpush1.bf16.msra.mxu0 %v2570
    %2939 = vmatprep.subr.bf16.mxu0 %v2578
    %2940 = vmatpush1.bf16.msra.mxu0 %v2577
    %2941 = vmatprep.subr.bf16.mxu0 %v2585
    %2942 = vmatpush1.bf16.msra.mxu0 %v2584
    %2943 = vmatprep.subr.bf16.mxu0 %v2592
    %2944 = vmatpush1.bf16.msra.mxu0 %v2591
    %2945 = vmatprep.subr.bf16.mxu0 %v2599
    %2946 = vmatpush1.bf16.msra.mxu0 %v2598
    %2947 = vmatprep.subr.bf16.mxu0 %v2606
    %2948 = vmatpush1.bf16.msra.mxu0 %v2605
    %2949 = vmatprep.subr.bf16.mxu0 %v2613
    %2950 = vmatpush1.bf16.msra.mxu0 %v2612
    %2951 = vmatprep.subr.bf16.mxu0 %v2620
    %2952 = vmatpush1.bf16.msra.mxu0 %v2619
    %2953 = vmatprep.subr.bf16.mxu0 %v2627
    %2954 = vmatpush1.bf16.msra.mxu0 %v2626
    %2955 = vmatprep.subr.bf16.mxu0 %v2634
    %2956 = vmatpush1.bf16.msra.mxu0 %v2633
    %2957 = vmatprep.subr.bf16.mxu0 %v2641
    %2958 = vmatpush1.bf16.msra.mxu0 %v2640
    %2959 = vmatprep.subr.bf16.mxu0 %v2648
    %2960 = vmatpush1.bf16.msra.mxu0 %v2647
    %2961 = vmatprep.mubr.bf16.mxu0 %v2881
    %2962 = vmatmul.mubr.bf16.gmra.mrb[0].mxu0 %v2880
    %v2963 = vpop.f32.mrb[0].mxu0
    %v2964 = vadd.f32 %v2921, %v2963
    %v2965 = vpop.f32.mrb[0].mxu0
    %v2966 = vadd.f32 %v2923, %v2965
    %v2967 = vpop.f32.mrb[0].mxu0
    %v2968 = vadd.f32 %v2925, %v2967
    %v2969 = vpop.f32.mrb[0].mxu0
    %v2970 = vadd.f32 %v2927, %v2969
    %2971 = vdwg.mxu0
    %2972 = vmatprep.subr.bf16.mxu0 %v2655
    %2973 = vmatpush1.bf16.msra.mxu0 %v2654
    %2974 = vmatprep.subr.bf16.mxu0 %v2662
    %2975 = vmatpush1.bf16.msra.mxu0 %v2661
    %2976 = vmatprep.subr.bf16.mxu0 %v2669
    %2977 = vmatpush1.bf16.msra.mxu0 %v2668
    %2978 = vmatprep.subr.bf16.mxu0 %v2676
    %2979 = vmatpush1.bf16.msra.mxu0 %v2675
    %2980 = vmatprep.subr.bf16.mxu0 %v2683
    %2981 = vmatpush1.bf16.msra.mxu0 %v2682
    %2982 = vmatprep.subr.bf16.mxu0 %v2690
    %2983 = vmatpush1.bf16.msra.mxu0 %v2689
    %2984 = vmatprep.subr.bf16.mxu0 %v2697
    %2985 = vmatpush1.bf16.msra.mxu0 %v2696
    %2986 = vmatprep.subr.bf16.mxu0 %v2704
    %2987 = vmatpush1.bf16.msra.mxu0 %v2703
    %2988 = vmatprep.subr.bf16.mxu0 %v2711
    %2989 = vmatpush1.bf16.msra.mxu0 %v2710
    %2990 = vmatprep.subr.bf16.mxu0 %v2718
    %2991 = vmatpush1.bf16.msra.mxu0 %v2717
    %2992 = vmatprep.subr.bf16.mxu0 %v2725
    %2993 = vmatpush1.bf16.msra.mxu0 %v2724
    %2994 = vmatprep.subr.bf16.mxu0 %v2732
    %2995 = vmatpush1.bf16.msra.mxu0 %v2731
    %2996 = vmatprep.subr.bf16.mxu0 %v2739
    %2997 = vmatpush1.bf16.msra.mxu0 %v2738
    %2998 = vmatprep.subr.bf16.mxu0 %v2746
    %2999 = vmatpush1.bf16.msra.mxu0 %v2745
    %3000 = vmatprep.subr.bf16.mxu0 %v2753
    %3001 = vmatpush1.bf16.msra.mxu0 %v2752
    %3002 = vmatprep.subr.bf16.mxu0 %v2760
    %3003 = vmatpush1.bf16.msra.mxu0 %v2759
    %3004 = vmatprep.mubr.bf16.mxu0 %v2883
    %3005 = vmatmul.mubr.bf16.gmra.mrb[0].mxu0 %v2882
    %v3006 = vpop.f32.mrb[0].mxu0
    %v3007 = vadd.f32 %v2964, %v3006
    %v3008 = vpop.f32.mrb[0].mxu0
    %v3009 = vadd.f32 %v2966, %v3008
    %v3010 = vpop.f32.mrb[0].mxu0
    %v3011 = vadd.f32 %v2968, %v3010
    %v3012 = vpop.f32.mrb[0].mxu0
    %v3013 = vadd.f32 %v2970, %v3012
    %3014 = vdwg.mxu0
    %3015 = vmatprep.subr.bf16.mxu0 %v2767
    %3016 = vmatpush1.bf16.msra.mxu0 %v2766
    %3017 = vmatprep.subr.bf16.mxu0 %v2774
    %3018 = vmatpush1.bf16.msra.mxu0 %v2773
    %3019 = vmatprep.subr.bf16.mxu0 %v2781
    %3020 = vmatpush1.bf16.msra.mxu0 %v2780
    %3021 = vmatprep.subr.bf16.mxu0 %v2788
    %3022 = vmatpush1.bf16.msra.mxu0 %v2787
    %3023 = vmatprep.subr.bf16.mxu0 %v2795
    %3024 = vmatpush1.bf16.msra.mxu0 %v2794
    %3025 = vmatprep.subr.bf16.mxu0 %v2802
    %3026 = vmatpush1.bf16.msra.mxu0 %v2801
    %3027 = vmatprep.subr.bf16.mxu0 %v2809
    %3028 = vmatpush1.bf16.msra.mxu0 %v2808
    %3029 = vmatprep.subr.bf16.mxu0 %v2816
    %3030 = vmatpush1.bf16.msra.mxu0 %v2815
    %3031 = vmatprep.subr.bf16.mxu0 %v2823
    %3032 = vmatpush1.bf16.msra.mxu0 %v2822
    %3033 = vmatprep.subr.bf16.mxu0 %v2830
    %3034 = vmatpush1.bf16.msra.mxu0 %v2829
    %3035 = vmatprep.subr.bf16.mxu0 %v2837
    %3036 = vmatpush1.bf16.msra.mxu0 %v2836
    %3037 = vmatprep.subr.bf16.mxu0 %v2844
    %3038 = vmatpush1.bf16.msra.mxu0 %v2843
    %3039 = vmatprep.subr.bf16.mxu0 %v2851
    %3040 = vmatpush1.bf16.msra.mxu0 %v2850
    %3041 = vmatprep.subr.bf16.mxu0 %v2858
    %3042 = vmatpush1.bf16.msra.mxu0 %v2857
    %3043 = vmatprep.subr.bf16.mxu0 %v2865
    %3044 = vmatpush1.bf16.msra.mxu0 %v2864
    %3045 = vmatprep.subr.bf16.mxu0 %v2872
    %3046 = vmatpush1.bf16.msra.mxu0 %v2871
    %3047 = vmatprep.mubr.bf16.mxu0 %v2885
    %3048 = vmatmul.mubr.bf16.gmra.mrb[0].mxu0 %v2884
    %v3049 = vpop.f32.mrb[0].mxu0
    %v3050 = vadd.f32 %v3007, %v3049
    %v3051 = vpop.f32.mrb[0].mxu0
    %v3052 = vadd.f32 %v3009, %v3051
    %v3053 = vpop.f32.mrb[0].mxu0
    %v3054 = vadd.f32 %v3011, %v3053
    %v3055 = vpop.f32.mrb[0].mxu0
    %v3056 = vadd.f32 %v3013, %v3055
    %3057 = vdwg.mxu0
    %3058 = vmatprep.subr.bf16.mxu0 %v2433
    %3059 = vmatpush1.bf16.msra.mxu0 %v2432
    %3060 = vmatprep.subr.bf16.mxu0 %v2440
    %3061 = vmatpush1.bf16.msra.mxu0 %v2439
    %3062 = vmatprep.subr.bf16.mxu0 %v2447
    %3063 = vmatpush1.bf16.msra.mxu0 %v2446
    %3064 = vmatprep.subr.bf16.mxu0 %v2454
    %3065 = vmatpush1.bf16.msra.mxu0 %v2453
    %3066 = vmatprep.subr.bf16.mxu0 %v2461
    %3067 = vmatpush1.bf16.msra.mxu0 %v2460
    %3068 = vmatprep.subr.bf16.mxu0 %v2468
    %3069 = vmatpush1.bf16.msra.mxu0 %v2467
    %3070 = vmatprep.subr.bf16.mxu0 %v2475
    %3071 = vmatpush1.bf16.msra.mxu0 %v2474
    %3072 = vmatprep.subr.bf16.mxu0 %v2482
    %3073 = vmatpush1.bf16.msra.mxu0 %v2481
    %3074 = vmatprep.subr.bf16.mxu0 %v2489
    %3075 = vmatpush1.bf16.msra.mxu0 %v2488
    %3076 = vmatprep.subr.bf16.mxu0 %v2496
    %3077 = vmatpush1.bf16.msra.mxu0 %v2495
    %3078 = vmatprep.subr.bf16.mxu0 %v2503
    %3079 = vmatpush1.bf16.msra.mxu0 %v2502
    %3080 = vmatprep.subr.bf16.mxu0 %v2510
    %3081 = vmatpush1.bf16.msra.mxu0 %v2509
    %3082 = vmatprep.subr.bf16.mxu0 %v2517
    %3083 = vmatpush1.bf16.msra.mxu0 %v2516
    %3084 = vmatprep.subr.bf16.mxu0 %v2524
    %3085 = vmatpush1.bf16.msra.mxu0 %v2523
    %3086 = vmatprep.subr.bf16.mxu0 %v2531
    %3087 = vmatpush1.bf16.msra.mxu0 %v2530
    %3088 = vmatprep.subr.bf16.mxu0 %v2538
    %3089 = vmatpush1.bf16.msra.mxu0 %v2537
    %3090 = vmatprep.mubr.bf16.mxu0 %v2879
    %3091 = vmatmul.mubr.bf16.gmra.mrb[0].mxu0 %v2878
    %v3092 = vpop.f32.mrb[0].mxu0
    %v3093 = vadd.f32 0.0, %v3092
    %v3094 = vpop.f32.mrb[0].mxu0
    %v3095 = vadd.f32 0.0, %v3094
    %v3096 = vpop.f32.mrb[0].mxu0
    %v3097 = vadd.f32 0.0, %v3096
    %v3098 = vpop.f32.mrb[0].mxu0
    %v3099 = vadd.f32 0.0, %v3098
    %3100 = vdwg.mxu0
    %3101 = vmatprep.subr.bf16.mxu0 %v2545
    %3102 = vmatpush1.bf16.msra.mxu0 %v2544
    %3103 = vmatprep.subr.bf16.mxu0 %v2552
    %3104 = vmatpush1.bf16.msra.mxu0 %v2551
    %3105 = vmatprep.subr.bf16.mxu0 %v2559
    %3106 = vmatpush1.bf16.msra.mxu0 %v2558
    %3107 = vmatprep.subr.bf16.mxu0 %v2566
    %3108 = vmatpush1.bf16.msra.mxu0 %v2565
    %3109 = vmatprep.subr.bf16.mxu0 %v2573
    %3110 = vmatpush1.bf16.msra.mxu0 %v2572
    %3111 = vmatprep.subr.bf16.mxu0 %v2580
    %3112 = vmatpush1.bf16.msra.mxu0 %v2579
    %3113 = vmatprep.subr.bf16.mxu0 %v2587
    %3114 = vmatpush1.bf16.msra.mxu0 %v2586
    %3115 = vmatprep.subr.bf16.mxu0 %v2594
    %3116 = vmatpush1.bf16.msra.mxu0 %v2593
    %3117 = vmatprep.subr.bf16.mxu0 %v2601
    %3118 = vmatpush1.bf16.msra.mxu0 %v2600
    %3119 = vmatprep.subr.bf16.mxu0 %v2608
    %3120 = vmatpush1.bf16.msra.mxu0 %v2607
    %3121 = vmatprep.subr.bf16.mxu0 %v2615
    %3122 = vmatpush1.bf16.msra.mxu0 %v2614
    %3123 = vmatprep.subr.bf16.mxu0 %v2622
    %3124 = vmatpush1.bf16.msra.mxu0 %v2621
    %3125 = vmatprep.subr.bf16.mxu0 %v2629
    %3126 = vmatpush1.bf16.msra.mxu0 %v2628
    %3127 = vmatprep.subr.bf16.mxu0 %v2636
    %3128 = vmatpush1.bf16.msra.mxu0 %v2635
    %3129 = vmatprep.subr.bf16.mxu0 %v2643
    %3130 = vmatpush1.bf16.msra.mxu0 %v2642
    %3131 = vmatprep.subr.bf16.mxu0 %v2650
    %3132 = vmatpush1.bf16.msra.mxu0 %v2649
    %3133 = vmatprep.mubr.bf16.mxu0 %v2881
    %3134 = vmatmul.mubr.bf16.gmra.mrb[0].mxu0 %v2880
    %v3135 = vpop.f32.mrb[0].mxu0
    %v3136 = vadd.f32 %v3093, %v3135
    %v3137 = vpop.f32.mrb[0].mxu0
    %v3138 = vadd.f32 %v3095, %v3137
    %v3139 = vpop.f32.mrb[0].mxu0
    %v3140 = vadd.f32 %v3097, %v3139
    %v3141 = vpop.f32.mrb[0].mxu0
    %v3142 = vadd.f32 %v3099, %v3141
    %3143 = vdwg.mxu0
    %3144 = vmatprep.subr.bf16.mxu0 %v2657
    %3145 = vmatpush1.bf16.msra.mxu0 %v2656
    %3146 = vmatprep.subr.bf16.mxu0 %v2664
    %3147 = vmatpush1.bf16.msra.mxu0 %v2663
    %3148 = vmatprep.subr.bf16.mxu0 %v2671
    %3149 = vmatpush1.bf16.msra.mxu0 %v2670
    %3150 = vmatprep.subr.bf16.mxu0 %v2678
    %3151 = vmatpush1.bf16.msra.mxu0 %v2677
    %3152 = vmatprep.subr.bf16.mxu0 %v2685
    %3153 = vmatpush1.bf16.msra.mxu0 %v2684
    %3154 = vmatprep.subr.bf16.mxu0 %v2692
    %3155 = vmatpush1.bf16.msra.mxu0 %v2691
    %3156 = vmatprep.subr.bf16.mxu0 %v2699
    %3157 = vmatpush1.bf16.msra.mxu0 %v2698
    %3158 = vmatprep.subr.bf16.mxu0 %v2706
    %3159 = vmatpush1.bf16.msra.mxu0 %v2705
    %3160 = vmatprep.subr.bf16.mxu0 %v2713
    %3161 = vmatpush1.bf16.msra.mxu0 %v2712
    %3162 = vmatprep.subr.bf16.mxu0 %v2720
    %3163 = vmatpush1.bf16.msra.mxu0 %v2719
    %3164 = vmatprep.subr.bf16.mxu0 %v2727
    %3165 = vmatpush1.bf16.msra.mxu0 %v2726
    %3166 = vmatprep.subr.bf16.mxu0 %v2734
    %3167 = vmatpush1.bf16.msra.mxu0 %v2733
    %3168 = vmatprep.subr.bf16.mxu0 %v2741
    %3169 = vmatpush1.bf16.msra.mxu0 %v2740
    %3170 = vmatprep.subr.bf16.mxu0 %v2748
    %3171 = vmatpush1.bf16.msra.mxu0 %v2747
    %3172 = vmatprep.subr.bf16.mxu0 %v2755
    %3173 = vmatpush1.bf16.msra.mxu0 %v2754
    %3174 = vmatprep.subr.bf16.mxu0 %v2762
    %3175 = vmatpush1.bf16.msra.mxu0 %v2761
    %3176 = vmatprep.mubr.bf16.mxu0 %v2883
    %3177 = vmatmul.mubr.bf16.gmra.mrb[0].mxu0 %v2882
    %v3178 = vpop.f32.mrb[0].mxu0
    %v3179 = vadd.f32 %v3136, %v3178
    %v3180 = vpop.f32.mrb[0].mxu0
    %v3181 = vadd.f32 %v3138, %v3180
    %v3182 = vpop.f32.mrb[0].mxu0
    %v3183 = vadd.f32 %v3140, %v3182
    %v3184 = vpop.f32.mrb[0].mxu0
    %v3185 = vadd.f32 %v3142, %v3184
    %3186 = vdwg.mxu0
    %3187 = vmatprep.subr.bf16.mxu0 %v2769
    %3188 = vmatpush1.bf16.msra.mxu0 %v2768
    %3189 = vmatprep.subr.bf16.mxu0 %v2776
    %3190 = vmatpush1.bf16.msra.mxu0 %v2775
    %3191 = vmatprep.subr.bf16.mxu0 %v2783
    %3192 = vmatpush1.bf16.msra.mxu0 %v2782
    %3193 = vmatprep.subr.bf16.mxu0 %v2790
    %3194 = vmatpush1.bf16.msra.mxu0 %v2789
    %3195 = vmatprep.subr.bf16.mxu0 %v2797
    %3196 = vmatpush1.bf16.msra.mxu0 %v2796
    %3197 = vmatprep.subr.bf16.mxu0 %v2804
    %3198 = vmatpush1.bf16.msra.mxu0 %v2803
    %3199 = vmatprep.subr.bf16.mxu0 %v2811
    %3200 = vmatpush1.bf16.msra.mxu0 %v2810
    %3201 = vmatprep.subr.bf16.mxu0 %v2818
    %3202 = vmatpush1.bf16.msra.mxu0 %v2817
    %3203 = vmatprep.subr.bf16.mxu0 %v2825
    %3204 = vmatpush1.bf16.msra.mxu0 %v2824
    %3205 = vmatprep.subr.bf16.mxu0 %v2832
    %3206 = vmatpush1.bf16.msra.mxu0 %v2831
    %3207 = vmatprep.subr.bf16.mxu0 %v2839
    %3208 = vmatpush1.bf16.msra.mxu0 %v2838
    %3209 = vmatprep.subr.bf16.mxu0 %v2846
    %3210 = vmatpush1.bf16.msra.mxu0 %v2845
    %3211 = vmatprep.subr.bf16.mxu0 %v2853
    %3212 = vmatpush1.bf16.msra.mxu0 %v2852
    %3213 = vmatprep.subr.bf16.mxu0 %v2860
    %3214 = vmatpush1.bf16.msra.mxu0 %v2859
    %3215 = vmatprep.subr.bf16.mxu0 %v2867
    %3216 = vmatpush1.bf16.msra.mxu0 %v2866
    %3217 = vmatprep.subr.bf16.mxu0 %v2874
    %3218 = vmatpush1.bf16.msra.mxu0 %v2873
    %3219 = vmatprep.mubr.bf16.mxu0 %v2885
    %3220 = vmatmul.mubr.bf16.gmra.mrb[0].mxu0 %v2884
    %v3221 = vpop.f32.mrb[0].mxu0
    %v3222 = vadd.f32 %v3179, %v3221
    %v3223 = vpop.f32.mrb[0].mxu0
    %v3224 = vadd.f32 %v3181, %v3223
    %v3225 = vpop.f32.mrb[0].mxu0
    %v3226 = vadd.f32 %v3183, %v3225
    %v3227 = vpop.f32.mrb[0].mxu0
    %v3228 = vadd.f32 %v3185, %v3227
    %3229 = vdwg.mxu0
    %3230 = vmatprep.subr.bf16.mxu0 %v2435
    %3231 = vmatpush1.bf16.msra.mxu0 %v2434
    %3232 = vmatprep.subr.bf16.mxu0 %v2442
    %3233 = vmatpush1.bf16.msra.mxu0 %v2441
    %3234 = vmatprep.subr.bf16.mxu0 %v2449
    %3235 = vmatpush1.bf16.msra.mxu0 %v2448
    %3236 = vmatprep.subr.bf16.mxu0 %v2456
    %3237 = vmatpush1.bf16.msra.mxu0 %v2455
    %3238 = vmatprep.subr.bf16.mxu0 %v2463
    %3239 = vmatpush1.bf16.msra.mxu0 %v2462
    %3240 = vmatprep.subr.bf16.mxu0 %v2470
    %3241 = vmatpush1.bf16.msra.mxu0 %v2469
    %3242 = vmatprep.subr.bf16.mxu0 %v2477
    %3243 = vmatpush1.bf16.msra.mxu0 %v2476
    %3244 = vmatprep.subr.bf16.mxu0 %v2484
    %3245 = vmatpush1.bf16.msra.mxu0 %v2483
    %3246 = vmatprep.subr.bf16.mxu0 %v2491
    %3247 = vmatpush1.bf16.msra.mxu0 %v2490
    %3248 = vmatprep.subr.bf16.mxu0 %v2498
    %3249 = vmatpush1.bf16.msra.mxu0 %v2497
    %3250 = vmatprep.subr.bf16.mxu0 %v2505
    %3251 = vmatpush1.bf16.msra.mxu0 %v2504
    %3252 = vmatprep.subr.bf16.mxu0 %v2512
    %3253 = vmatpush1.bf16.msra.mxu0 %v2511
    %3254 = vmatprep.subr.bf16.mxu0 %v2519
    %3255 = vmatpush1.bf16.msra.mxu0 %v2518
    %3256 = vmatprep.subr.bf16.mxu0 %v2526
    %3257 = vmatpush1.bf16.msra.mxu0 %v2525
    %3258 = vmatprep.subr.bf16.mxu0 %v2533
    %3259 = vmatpush1.bf16.msra.mxu0 %v2532
    %3260 = vmatprep.subr.bf16.mxu0 %v2540
    %3261 = vmatpush1.bf16.msra.mxu0 %v2539
    %3262 = vmatprep.mubr.bf16.mxu0 %v2879
    %3263 = vmatmul.mubr.bf16.gmra.mrb[0].mxu0 %v2878
    %v3264 = vpop.f32.mrb[0].mxu0
    %v3265 = vadd.f32 0.0, %v3264
    %v3266 = vpop.f32.mrb[0].mxu0
    %v3267 = vadd.f32 0.0, %v3266
    %v3268 = vpop.f32.mrb[0].mxu0
    %v3269 = vadd.f32 0.0, %v3268
    %v3270 = vpop.f32.mrb[0].mxu0
    %v3271 = vadd.f32 0.0, %v3270
    %3272 = vdwg.mxu0
    %3273 = vmatprep.subr.bf16.mxu0 %v2547
    %3274 = vmatpush1.bf16.msra.mxu0 %v2546
    %3275 = vmatprep.subr.bf16.mxu0 %v2554
    %3276 = vmatpush1.bf16.msra.mxu0 %v2553
    %3277 = vmatprep.subr.bf16.mxu0 %v2561
    %3278 = vmatpush1.bf16.msra.mxu0 %v2560
    %3279 = vmatprep.subr.bf16.mxu0 %v2568
    %3280 = vmatpush1.bf16.msra.mxu0 %v2567
    %3281 = vmatprep.subr.bf16.mxu0 %v2575
    %3282 = vmatpush1.bf16.msra.mxu0 %v2574
    %3283 = vmatprep.subr.bf16.mxu0 %v2582
    %3284 = vmatpush1.bf16.msra.mxu0 %v2581
    %3285 = vmatprep.subr.bf16.mxu0 %v2589
    %3286 = vmatpush1.bf16.msra.mxu0 %v2588
    %3287 = vmatprep.subr.bf16.mxu0 %v2596
    %3288 = vmatpush1.bf16.msra.mxu0 %v2595
    %3289 = vmatprep.subr.bf16.mxu0 %v2603
    %3290 = vmatpush1.bf16.msra.mxu0 %v2602
    %3291 = vmatprep.subr.bf16.mxu0 %v2610
    %3292 = vmatpush1.bf16.msra.mxu0 %v2609
    %3293 = vmatprep.subr.bf16.mxu0 %v2617
    %3294 = vmatpush1.bf16.msra.mxu0 %v2616
    %3295 = vmatprep.subr.bf16.mxu0 %v2624
    %3296 = vmatpush1.bf16.msra.mxu0 %v2623
    %3297 = vmatprep.subr.bf16.mxu0 %v2631
    %3298 = vmatpush1.bf16.msra.mxu0 %v2630
    %3299 = vmatprep.subr.bf16.mxu0 %v2638
    %3300 = vmatpush1.bf16.msra.mxu0 %v2637
    %3301 = vmatprep.subr.bf16.mxu0 %v2645
    %3302 = vmatpush1.bf16.msra.mxu0 %v2644
    %3303 = vmatprep.subr.bf16.mxu0 %v2652
    %3304 = vmatpush1.bf16.msra.mxu0 %v2651
    %3305 = vmatprep.mubr.bf16.mxu0 %v2881
    %3306 = vmatmul.mubr.bf16.gmra.mrb[0].mxu0 %v2880
    %v3307 = vpop.f32.mrb[0].mxu0
    %v3308 = vadd.f32 %v3265, %v3307
    %v3309 = vpop.f32.mrb[0].mxu0
    %v3310 = vadd.f32 %v3267, %v3309
    %v3311 = vpop.f32.mrb[0].mxu0
    %v3312 = vadd.f32 %v3269, %v3311
    %v3313 = vpop.f32.mrb[0].mxu0
    %v3314 = vadd.f32 %v3271, %v3313
    %3315 = vdwg.mxu0
    %3316 = vmatprep.subr.bf16.mxu0 %v2659
    %3317 = vmatpush1.bf16.msra.mxu0 %v2658
    %3318 = vmatprep.subr.bf16.mxu0 %v2666
    %3319 = vmatpush1.bf16.msra.mxu0 %v2665
    %3320 = vmatprep.subr.bf16.mxu0 %v2673
    %3321 = vmatpush1.bf16.msra.mxu0 %v2672
    %3322 = vmatprep.subr.bf16.mxu0 %v2680
    %3323 = vmatpush1.bf16.msra.mxu0 %v2679
    %3324 = vmatprep.subr.bf16.mxu0 %v2687
    %3325 = vmatpush1.bf16.msra.mxu0 %v2686
    %3326 = vmatprep.subr.bf16.mxu0 %v2694
    %3327 = vmatpush1.bf16.msra.mxu0 %v2693
    %3328 = vmatprep.subr.bf16.mxu0 %v2701
    %3329 = vmatpush1.bf16.msra.mxu0 %v2700
    %3330 = vmatprep.subr.bf16.mxu0 %v2708
    %3331 = vmatpush1.bf16.msra.mxu0 %v2707
    %3332 = vmatprep.subr.bf16.mxu0 %v2715
    %3333 = vmatpush1.bf16.msra.mxu0 %v2714
    %3334 = vmatprep.subr.bf16.mxu0 %v2722
    %3335 = vmatpush1.bf16.msra.mxu0 %v2721
    %3336 = vmatprep.subr.bf16.mxu0 %v2729
    %3337 = vmatpush1.bf16.msra.mxu0 %v2728
    %3338 = vmatprep.subr.bf16.mxu0 %v2736
    %3339 = vmatpush1.bf16.msra.mxu0 %v2735
    %3340 = vmatprep.subr.bf16.mxu0 %v2743
    %3341 = vmatpush1.bf16.msra.mxu0 %v2742
    %3342 = vmatprep.subr.bf16.mxu0 %v2750
    %3343 = vmatpush1.bf16.msra.mxu0 %v2749
    %3344 = vmatprep.subr.bf16.mxu0 %v2757
    %3345 = vmatpush1.bf16.msra.mxu0 %v2756
    %3346 = vmatprep.subr.bf16.mxu0 %v2764
    %3347 = vmatpush1.bf16.msra.mxu0 %v2763
    %3348 = vmatprep.mubr.bf16.mxu0 %v2883
    %3349 = vmatmul.mubr.bf16.gmra.mrb[0].mxu0 %v2882
    %v3350 = vpop.f32.mrb[0].mxu0
    %v3351 = vadd.f32 %v3308, %v3350
    %v3352 = vpop.f32.mrb[0].mxu0
    %v3353 = vadd.f32 %v3310, %v3352
    %v3354 = vpop.f32.mrb[0].mxu0
    %v3355 = vadd.f32 %v3312, %v3354
    %v3356 = vpop.f32.mrb[0].mxu0
    %v3357 = vadd.f32 %v3314, %v3356
    %3358 = vdwg.mxu0
    %3359 = vmatprep.subr.bf16.mxu0 %v2771
    %3360 = vmatpush1.bf16.msra.mxu0 %v2770
    %3361 = vmatprep.subr.bf16.mxu0 %v2778
    %3362 = vmatpush1.bf16.msra.mxu0 %v2777
    %3363 = vmatprep.subr.bf16.mxu0 %v2785
    %3364 = vmatpush1.bf16.msra.mxu0 %v2784
    %3365 = vmatprep.subr.bf16.mxu0 %v2792
    %3366 = vmatpush1.bf16.msra.mxu0 %v2791
    %3367 = vmatprep.subr.bf16.mxu0 %v2799
    %3368 = vmatpush1.bf16.msra.mxu0 %v2798
    %3369 = vmatprep.subr.bf16.mxu0 %v2806
    %3370 = vmatpush1.bf16.msra.mxu0 %v2805
    %3371 = vmatprep.subr.bf16.mxu0 %v2813
    %3372 = vmatpush1.bf16.msra.mxu0 %v2812
    %3373 = vmatprep.subr.bf16.mxu0 %v2820
    %3374 = vmatpush1.bf16.msra.mxu0 %v2819
    %3375 = vmatprep.subr.bf16.mxu0 %v2827
    %3376 = vmatpush1.bf16.msra.mxu0 %v2826
    %3377 = vmatprep.subr.bf16.mxu0 %v2834
    %3378 = vmatpush1.bf16.msra.mxu0 %v2833
    %3379 = vmatprep.subr.bf16.mxu0 %v2841
    %3380 = vmatpush1.bf16.msra.mxu0 %v2840
    %3381 = vmatprep.subr.bf16.mxu0 %v2848
    %3382 = vmatpush1.bf16.msra.mxu0 %v2847
    %3383 = vmatprep.subr.bf16.mxu0 %v2855
    %3384 = vmatpush1.bf16.msra.mxu0 %v2854
    %3385 = vmatprep.subr.bf16.mxu0 %v2862
    %3386 = vmatpush1.bf16.msra.mxu0 %v2861
    %3387 = vmatprep.subr.bf16.mxu0 %v2869
    %3388 = vmatpush1.bf16.msra.mxu0 %v2868
    %3389 = vmatprep.subr.bf16.mxu0 %v2876
    %3390 = vmatpush1.bf16.msra.mxu0 %v2875
    %3391 = vmatprep.mubr.bf16.mxu0 %v2885
    %3392 = vmatmul.mubr.bf16.gmra.mrb[0].mxu0 %v2884
    %v3393 = vpop.f32.mrb[0].mxu0
    %v3394 = vadd.f32 %v3351, %v3393
    %v3395 = vpop.f32.mrb[0].mxu0
    %v3396 = vadd.f32 %v3353, %v3395
    %v3397 = vpop.f32.mrb[0].mxu0
    %v3398 = vadd.f32 %v3355, %v3397
    %v3399 = vpop.f32.mrb[0].mxu0
    %v3400 = vadd.f32 %v3357, %v3399
    %3401 = vdwg.mxu0
    %3402 = vmatprep.subr.bf16.mxu0 0
    %3403 = vmatpush1.bf16.msra.mxu0 %v2436
    %3404 = vmatprep.subr.bf16.mxu0 0
    %3405 = vmatpush1.bf16.msra.mxu0 %v2443
    %3406 = vmatprep.subr.bf16.mxu0 0
    %3407 = vmatpush1.bf16.msra.mxu0 %v2450
    %3408 = vmatprep.subr.bf16.mxu0 0
    %3409 = vmatpush1.bf16.msra.mxu0 %v2457
    %3410 = vmatprep.subr.bf16.mxu0 0
    %3411 = vmatpush1.bf16.msra.mxu0 %v2464
    %3412 = vmatprep.subr.bf16.mxu0 0
    %3413 = vmatpush1.bf16.msra.mxu0 %v2471
    %3414 = vmatprep.subr.bf16.mxu0 0
    %3415 = vmatpush1.bf16.msra.mxu0 %v2478
    %3416 = vmatprep.subr.bf16.mxu0 0
    %3417 = vmatpush1.bf16.msra.mxu0 %v2485
    %3418 = vmatprep.subr.bf16.mxu0 0
    %3419 = vmatpush1.bf16.msra.mxu0 %v2492
    %3420 = vmatprep.subr.bf16.mxu0 0
    %3421 = vmatpush1.bf16.msra.mxu0 %v2499
    %3422 = vmatprep.subr.bf16.mxu0 0
    %3423 = vmatpush1.bf16.msra.mxu0 %v2506
    %3424 = vmatprep.subr.bf16.mxu0 0
    %3425 = vmatpush1.bf16.msra.mxu0 %v2513
    %3426 = vmatprep.subr.bf16.mxu0 0
    %3427 = vmatpush1.bf16.msra.mxu0 %v2520
    %3428 = vmatprep.subr.bf16.mxu0 0
    %3429 = vmatpush1.bf16.msra.mxu0 %v2527
    %3430 = vmatprep.subr.bf16.mxu0 0
    %3431 = vmatpush1.bf16.msra.mxu0 %v2534
    %3432 = vmatprep.subr.bf16.mxu0 0
    %3433 = vmatpush1.bf16.msra.mxu0 %v2541
    %3434 = vmatprep.mubr.bf16.mxu0 %v2879
    %3435 = vmatmul.mubr.bf16.gmra.mrb[0].mxu0 %v2878
    %v3436 = vpop.f32.mrb[0].mxu0
    %v3437 = vadd.f32 0.0, %v3436
    %v3438 = vpop.f32.mrb[0].mxu0
    %v3439 = vpop.f32.mrb[0].mxu0
    %v3440 = vadd.f32 0.0, %v3439
    %v3441 = vpop.f32.mrb[0].mxu0
    %3442 = vdwg.mxu0
    %3443 = vmatprep.subr.bf16.mxu0 0
    %3444 = vmatpush1.bf16.msra.mxu0 %v2548
    %3445 = vmatprep.subr.bf16.mxu0 0
    %3446 = vmatpush1.bf16.msra.mxu0 %v2555
    %3447 = vmatprep.subr.bf16.mxu0 0
    %3448 = vmatpush1.bf16.msra.mxu0 %v2562
    %3449 = vmatprep.subr.bf16.mxu0 0
    %3450 = vmatpush1.bf16.msra.mxu0 %v2569
    %3451 = vmatprep.subr.bf16.mxu0 0
    %3452 = vmatpush1.bf16.msra.mxu0 %v2576
    %3453 = vmatprep.subr.bf16.mxu0 0
    %3454 = vmatpush1.bf16.msra.mxu0 %v2583
    %3455 = vmatprep.subr.bf16.mxu0 0
    %3456 = vmatpush1.bf16.msra.mxu0 %v2590
    %3457 = vmatprep.subr.bf16.mxu0 0
    %3458 = vmatpush1.bf16.msra.mxu0 %v2597
    %3459 = vmatprep.subr.bf16.mxu0 0
    %3460 = vmatpush1.bf16.msra.mxu0 %v2604
    %3461 = vmatprep.subr.bf16.mxu0 0
    %3462 = vmatpush1.bf16.msra.mxu0 %v2611
    %3463 = vmatprep.subr.bf16.mxu0 0
    %3464 = vmatpush1.bf16.msra.mxu0 %v2618
    %3465 = vmatprep.subr.bf16.mxu0 0
    %3466 = vmatpush1.bf16.msra.mxu0 %v2625
    %3467 = vmatprep.subr.bf16.mxu0 0
    %3468 = vmatpush1.bf16.msra.mxu0 %v2632
    %3469 = vmatprep.subr.bf16.mxu0 0
    %3470 = vmatpush1.bf16.msra.mxu0 %v2639
    %3471 = vmatprep.subr.bf16.mxu0 0
    %3472 = vmatpush1.bf16.msra.mxu0 %v2646
    %3473 = vmatprep.subr.bf16.mxu0 0
    %3474 = vmatpush1.bf16.msra.mxu0 %v2653
    %3475 = vmatprep.mubr.bf16.mxu0 %v2881
    %3476 = vmatmul.mubr.bf16.gmra.mrb[0].mxu0 %v2880
    %v3477 = vpop.f32.mrb[0].mxu0
    %v3478 = vadd.f32 %v3437, %v3477
    %v3479 = vpop.f32.mrb[0].mxu0
    %v3480 = vpop.f32.mrb[0].mxu0
    %v3481 = vadd.f32 %v3440, %v3480
    %v3482 = vpop.f32.mrb[0].mxu0
    %3483 = vdwg.mxu0
    %3484 = vmatprep.subr.bf16.mxu0 0
    %3485 = vmatpush1.bf16.msra.mxu0 %v2660
    %3486 = vmatprep.subr.bf16.mxu0 0
    %3487 = vmatpush1.bf16.msra.mxu0 %v2667
    %3488 = vmatprep.subr.bf16.mxu0 0
    %3489 = vmatpush1.bf16.msra.mxu0 %v2674
    %3490 = vmatprep.subr.bf16.mxu0 0
    %3491 = vmatpush1.bf16.msra.mxu0 %v2681
    %3492 = vmatprep.subr.bf16.mxu0 0
    %3493 = vmatpush1.bf16.msra.mxu0 %v2688
    %3494 = vmatprep.subr.bf16.mxu0 0
    %3495 = vmatpush1.bf16.msra.mxu0 %v2695
    %3496 = vmatprep.subr.bf16.mxu0 0
    %3497 = vmatpush1.bf16.msra.mxu0 %v2702
    %3498 = vmatprep.subr.bf16.mxu0 0
    %3499 = vmatpush1.bf16.msra.mxu0 %v2709
    %3500 = vmatprep.subr.bf16.mxu0 0
    %3501 = vmatpush1.bf16.msra.mxu0 %v2716
    %3502 = vmatprep.subr.bf16.mxu0 0
    %3503 = vmatpush1.bf16.msra.mxu0 %v2723
    %3504 = vmatprep.subr.bf16.mxu0 0
    %3505 = vmatpush1.bf16.msra.mxu0 %v2730
    %3506 = vmatprep.subr.bf16.mxu0 0
    %3507 = vmatpush1.bf16.msra.mxu0 %v2737
    %3508 = vmatprep.subr.bf16.mxu0 0
    %3509 = vmatpush1.bf16.msra.mxu0 %v2744
    %3510 = vmatprep.subr.bf16.mxu0 0
    %3511 = vmatpush1.bf16.msra.mxu0 %v2751
    %3512 = vmatprep.subr.bf16.mxu0 0
    %3513 = vmatpush1.bf16.msra.mxu0 %v2758
    %3514 = vmatprep.subr.bf16.mxu0 0
    %3515 = vmatpush1.bf16.msra.mxu0 %v2765
    %3516 = vmatprep.mubr.bf16.mxu0 %v2883
    %3517 = vmatmul.mubr.bf16.gmra.mrb[0].mxu0 %v2882
    %v3518 = vpop.f32.mrb[0].mxu0
    %v3519 = vadd.f32 %v3478, %v3518
    %v3520 = vpop.f32.mrb[0].mxu0
    %v3521 = vpop.f32.mrb[0].mxu0
    %v3522 = vadd.f32 %v3481, %v3521
    %v3523 = vpop.f32.mrb[0].mxu0
    %3524 = vdwg.mxu0
    %3525 = vmatprep.subr.bf16.mxu0 0
    %3526 = vmatpush1.bf16.msra.mxu0 %v2772
    %3527 = vmatprep.subr.bf16.mxu0 0
    %3528 = vmatpush1.bf16.msra.mxu0 %v2779
    %3529 = vmatprep.subr.bf16.mxu0 0
    %3530 = vmatpush1.bf16.msra.mxu0 %v2786
    %3531 = vmatprep.subr.bf16.mxu0 0
    %3532 = vmatpush1.bf16.msra.mxu0 %v2793
    %3533 = vmatprep.subr.bf16.mxu0 0
    %3534 = vmatpush1.bf16.msra.mxu0 %v2800
    %3535 = vmatprep.subr.bf16.mxu0 0
    %3536 = vmatpush1.bf16.msra.mxu0 %v2807
    %3537 = vmatprep.subr.bf16.mxu0 0
    %3538 = vmatpush1.bf16.msra.mxu0 %v2814
    %3539 = vmatprep.subr.bf16.mxu0 0
    %3540 = vmatpush1.bf16.msra.mxu0 %v2821
    %3541 = vmatprep.subr.bf16.mxu0 0
    %3542 = vmatpush1.bf16.msra.mxu0 %v2828
    %3543 = vmatprep.subr.bf16.mxu0 0
    %3544 = vmatpush1.bf16.msra.mxu0 %v2835
    %3545 = vmatprep.subr.bf16.mxu0 0
    %3546 = vmatpush1.bf16.msra.mxu0 %v2842
    %3547 = vmatprep.subr.bf16.mxu0 0
    %3548 = vmatpush1.bf16.msra.mxu0 %v2849
    %3549 = vmatprep.subr.bf16.mxu0 0
    %3550 = vmatpush1.bf16.msra.mxu0 %v2856
    %3551 = vmatprep.subr.bf16.mxu0 0
    %3552 = vmatpush1.bf16.msra.mxu0 %v2863
    %3553 = vmatprep.subr.bf16.mxu0 0
    %3554 = vmatpush1.bf16.msra.mxu0 %v2870
    %3555 = vmatprep.subr.bf16.mxu0 0
    %3556 = vmatpush1.bf16.msra.mxu0 %v2877
    %3557 = vmatprep.mubr.bf16.mxu0 %v2885
    %3558 = vmatmul.mubr.bf16.gmra.mrb[0].mxu0 %v2884
    %v3559 = vpop.f32.mrb[0].mxu0
    %v3560 = vadd.f32 %v3519, %v3559
    %v3561 = vpop.f32.mrb[0].mxu0
    %v3562 = vpop.f32.mrb[0].mxu0
    %v3563 = vadd.f32 %v3522, %v3562
    %v3564 = vpop.f32.mrb[0].mxu0
    %3565 = vdwg.mxu0
    %v3566 = vld [vmem:[%s10] sm:$0x7f]
    %v3568 = vlaneseq
    %v3569 = vshrl.u32 %v3568, 7
    %v3570 = vsub.s32 0, %v3569
    %v3571 = vrot.slane %v3566, %v3570
    %v3572 = vlaneseq
    %v3573 = vshrl.u32 %v3572, 7
    %v3574 = vsub.s32 1, %v3573
    %v3575 = vrot.slane %v3566, %v3574
    %v3576 = vlaneseq
    %v3577 = vshrl.u32 %v3576, 7
    %v3578 = vsub.s32 2, %v3577
    %v3579 = vrot.slane %v3566, %v3578
    %v3580 = vlaneseq
    %v3581 = vshrl.u32 %v3580, 7
    %v3582 = vsub.s32 3, %v3581
    %v3583 = vrot.slane %v3566, %v3582
    %v3584 = vlaneseq
    %v3585 = vshrl.u32 %v3584, 7
    %v3586 = vsub.s32 4, %v3585
    %v3587 = vrot.slane %v3566, %v3586
    %v3588 = vlaneseq
    %v3589 = vshrl.u32 %v3588, 7
    %v3590 = vsub.s32 5, %v3589
    %v3591 = vrot.slane %v3566, %v3590
    %v3592 = vlaneseq
    %v3593 = vshrl.u32 %v3592, 7
    %v3594 = vsub.s32 6, %v3593
    %v3595 = vrot.slane %v3566, %v3594
    %v3603 = vmul.f32 %v3050, %v3571
    %v3604 = vmul.f32 %v3052, %v3575
    %v3605 = vmul.f32 %v3222, %v3579
    %v3606 = vmul.f32 %v3224, %v3583
    %v3607 = vmul.f32 %v3394, %v3587
    %v3608 = vmul.f32 %v3396, %v3591
    %v3609 = vmul.f32 %v3560, %v3595
    %v3610 = vmul.f32 %v3054, %v3571
    %v3611 = vmul.f32 %v3056, %v3575
    %v3612 = vmul.f32 %v3226, %v3579
    %v3613 = vmul.f32 %v3228, %v3583
    %v3614 = vmul.f32 %v3398, %v3587
    %v3615 = vmul.f32 %v3400, %v3591
    %v3616 = vmul.f32 %v3563, %v3595
    %v3617 = vld [vmem:[%s11] sm:$0x7f]
    %v3619 = vlaneseq
    %v3620 = vshrl.u32 %v3619, 7
    %v3621 = vsub.s32 0, %v3620
    %v3622 = vrot.slane %v3617, %v3621
    %v3623 = vlaneseq
    %v3624 = vshrl.u32 %v3623, 7
    %v3625 = vsub.s32 1, %v3624
    %v3626 = vrot.slane %v3617, %v3625
    %v3627 = vlaneseq
    %v3628 = vshrl.u32 %v3627, 7
    %v3629 = vsub.s32 2, %v3628
    %v3630 = vrot.slane %v3617, %v3629
    %v3631 = vlaneseq
    %v3632 = vshrl.u32 %v3631, 7
    %v3633 = vsub.s32 3, %v3632
    %v3634 = vrot.slane %v3617, %v3633
    %v3635 = vlaneseq
    %v3636 = vshrl.u32 %v3635, 7
    %v3637 = vsub.s32 4, %v3636
    %v3638 = vrot.slane %v3617, %v3637
    %v3639 = vlaneseq
    %v3640 = vshrl.u32 %v3639, 7
    %v3641 = vsub.s32 5, %v3640
    %v3642 = vrot.slane %v3617, %v3641
    %v3643 = vlaneseq
    %v3644 = vshrl.u32 %v3643, 7
    %v3645 = vsub.s32 6, %v3644
    %v3646 = vrot.slane %v3617, %v3645
    %v3654 = vadd.f32 %v3603, %v3622
    %v3655 = vadd.f32 %v3604, %v3626
    %v3656 = vadd.f32 %v3605, %v3630
    %v3657 = vadd.f32 %v3606, %v3634
    %v3658 = vadd.f32 %v3607, %v3638
    %v3659 = vadd.f32 %v3608, %v3642
    %v3660 = vadd.f32 %v3609, %v3646
    %v3661 = vadd.f32 %v3610, %v3622
    %v3662 = vadd.f32 %v3611, %v3626
    %v3663 = vadd.f32 %v3612, %v3630
    %v3664 = vadd.f32 %v3613, %v3634
    %v3665 = vadd.f32 %v3614, %v3638
    %v3666 = vadd.f32 %v3615, %v3642
    %v3667 = vadd.f32 %v3616, %v3646
    %v3668 = vtanh.pop %v3654
    %v3669 = vtanh.pop %v3655
    %v3670 = vtanh.pop %v3656
    %v3671 = vtanh.pop %v3657
    %v3672 = vtanh.pop %v3658
    %v3673 = vtanh.pop %v3659
    %v3674 = vtanh.pop %v3660
    %v3675 = vtanh.pop %v3661
    %v3676 = vtanh.pop %v3662
    %v3677 = vtanh.pop %v3663
    %v3678 = vtanh.pop %v3664
    %v3679 = vtanh.pop %v3665
    %v3680 = vtanh.pop %v3666
    %v3681 = vtanh.pop %v3667
    %3682 = vst [vmem:[#allocation6] sm:$0xff] %v3668
    %3683 = vst [vmem:[#allocation6 + $0x8] sm:$0xff] %v3669
    %3684 = vst [vmem:[#allocation6 + $0x10] sm:$0xff] %v3670
    %3685 = vst [vmem:[#allocation6 + $0x18] sm:$0xff] %v3671
    %3686 = vst [vmem:[#allocation6 + $0x20] sm:$0xff] %v3672
    %3687 = vst [vmem:[#allocation6 + $0x28] sm:$0xff] %v3673
    %vm3688 = vcmask 130048
    %3689 = vst.msk [vmem:[#allocation6 + $0x30] sm:$0xff] %vm3688, %v3674
    %3690 = vst [vmem:[#allocation6 + $0x38] sm:$0xff] %v3675
    %3691 = vst [vmem:[#allocation6 + $0x40] sm:$0xff] %v3676
    %3692 = vst [vmem:[#allocation6 + $0x48] sm:$0xff] %v3677
    %3693 = vst [vmem:[#allocation6 + $0x50] sm:$0xff] %v3678
    %3694 = vst [vmem:[#allocation6 + $0x58] sm:$0xff] %v3679
    %3695 = vst [vmem:[#allocation6 + $0x60] sm:$0xff] %v3680
    %3696 = vst.msk [vmem:[#allocation6 + $0x68] sm:$0xff] %vm3688, %v3681
    // Predicated region
    $region140: #{tpu_custom_call.1} parent=1 // pred_check
      _
    $region141: #{tpu_custom_call.1} parent=1 // pred_check_branch
      %3698 = sbr.rel (0) target = $region143
    $region142: #{tpu_custom_call.1} parent=1 // pred_region
      %s3700 = ssub.s32 1792, 1792
      %3701 = vsyncadd [#allocation7], %s3700
      %s3702 = sshll.u32 [#allocation6], 4
      %s3703 = int_to_ptr.vmem [resolvable:$true] %s3702
      %3708 = dma.vmem_to_hbm [thread:$0]  %s3703, 1792, %s12, [#allocation7], 896, 896, 56
    $region143: #{tpu_custom_call.1} parent=1 // pred_fallthru
      _
    // Predicated region
    $region144: #{tpu_custom_call.1} parent=1 // pred_check
      _
    $region145: #{tpu_custom_call.1} parent=1 // pred_check_branch
      %3710 = sbr.rel (0) target = $region147
    $region146: #{tpu_custom_call.1} parent=1 // pred_region
      %3711 = dma.done [#allocation7], 1792
    $region147: #{tpu_custom_call.1} parent=1 // pred_fallthru
      _
    %3712 = vsyncpa [#allocation7], 1
  %3713 = vsyncmov [#allocation5]
  %s3714 = vpop.sfrf %3713
  %p3715 = scmp.eq.s32.totalorder %s3714, 0
  %p3716 = pneg %p3715
  %3718 = shalt.err (%p3716)
  %s3719 = scalar_lea.sflag [#allocation5], 1
  %3720 = vsyncmov %s3719
  %s3721 = vpop.sfrf %3720
  %p3722 = scmp.eq.s32.totalorder %s3721, 0
  %p3723 = pneg %p3722
  %3725 = shalt.err (%p3723)
  %s3726 = scalar_lea.sflag [#allocation5], 2
  %3727 = vsyncmov %s3726
  %s3728 = vpop.sfrf %3727
  %p3729 = scmp.eq.s32.totalorder %s3728, 0
  %p3730 = pneg %p3729
  %3732 = shalt.err (%p3730)

</llo_original>
